<compile_context>
chip_gen: v6e
topology: v6e:2x2x1
jax: 0.10.0
libtpu: 0.0.40
codegen_flags: <defaults>
</compile_context>

<pallas_src>
import math
from functools import partial

import jax
import jax.numpy as jnp
from jax import lax
from jax.experimental import pallas as pl
from jax.experimental.pallas import tpu as pltpu


# ----------------------------- in-kernel helpers -----------------------------

def _erf(x):
    # Abramowitz & Stegun 7.1.26 rational approximation of erf (f32 VPU/EUP ops).
    a1, a2, a3, a4, a5 = 0.254829592, -0.284496736, 1.421413741, -1.453152027, 1.061405429
    p = 0.3275911
    sgn = jnp.where(x >= 0.0, 1.0, -1.0)
    ax = jnp.abs(x)
    t = 1.0 / (1.0 + p * ax)
    poly = ((((a5 * t + a4) * t + a3) * t + a2) * t + a1) * t
    return sgn * (1.0 - poly * jnp.exp(-ax * ax))


def _gelu(x):
    # PyTorch F.gelu (exact, erf-based)
    return 0.5 * x * (1.0 + _erf(x * (1.0 / math.sqrt(2.0))))


# --------------------------------- the kernel --------------------------------

def _ts_layer_kernel(
    # inputs (order matches in_specs / call args)
    x_ref, mask_ref, pe_ref, wp_t_ref, bp_ref,
    wqkv_t_ref, bqkv_ref, wo_attn_t_ref,
    l1w_t_ref, l1b_ref, l2w_t_ref, vecs_ref,
    wo_t_ref, bo_ref,
    # output
    out_ref,
    # scratch (persists across grid steps; re-initialized at l == 0 per batch tile)
    h_scr,
    *, TB, S, D, H, FEAT_IN, FEAT_OUT, mxu_dtype,
):
    hd = D // H
    BS = TB * S
    sqrt_d = math.sqrt(D)

    l = pl.program_id(1)
    n_layers = pl.num_programs(1)

    def wdot(a, w):
        # MXU matmul: cast activation to the (possibly bf16) weight dtype,
        # always accumulate in f32.
        return jnp.dot(a.astype(w.dtype), w, preferred_element_type=jnp.float32)

    # ---- per-batch-tile init (l == 0): project_inp * sqrt(d) + fixed PE ----
    @pl.when(l == 0)
    def _init():
        xb = x_ref[...].reshape(BS, FEAT_IN)                       # (TB*S, FEAT_IN)
        h0 = (wdot(xb, wp_t_ref[...]) + bp_ref[...]) * sqrt_d
        h0 = h0.reshape(TB, S, D) + pe_ref[...][None, :, :]        # add PE per row
        h_scr[...] = h0.reshape(BS, D)                             # dropout (pos_enc) = id

    h = h_scr[...]                                                 # (TB*S, D) f32 residual

    # packed per-layer vectors: [attn_out_b, l2b, bn1_scale, bn1_shift, bn2_scale, bn2_shift]
    vecs = vecs_ref[0]                                             # (6, D)
    attn_ob, l2b = vecs[0:1], vecs[1:2]
    bn1_s, bn1_b = vecs[2:3], vecs[3:4]
    bn2_s, bn2_b = vecs[4:5], vecs[5:6]

    # ---------------- fused QKV (attention scale already folded into Wq/bq) ----------------
    qkv = wdot(h, wqkv_t_ref[0]) + bqkv_ref[0]                     # (TB*S, 3D) f32

    def split_heads(x2d):
        x4 = x2d.reshape(TB, S, H, hd)
        return jnp.transpose(x4, (0, 2, 1, 3)).reshape(TB * H, S, hd).astype(mxu_dtype)

    qh = split_heads(qkv[:, 0:D])                                  # (TB*H, S, hd)
    kh = split_heads(qkv[:, D:2 * D])
    vh = split_heads(qkv[:, 2 * D:3 * D])

    # key-padding bias rebuilt from the resident mask block (tiny: TB*H*S elems)
    keep = mask_ref[...]                                           # (TB, 1, S)  1=keep 0=pad
    key_bias = jnp.broadcast_to((1.0 - keep) * (-1e30), (TB, H, S)).reshape(TB * H, 1, S)

    # ---------------- attention (single leading batch dim = TB*H) ----------------
    scores = jnp.einsum('bqd,bkd->bqk', qh, kh,
                        preferred_element_type=jnp.float32)        # (TB*H, S, S)
    scores = scores + key_bias
    m = jnp.max(scores, axis=-1, keepdims=True)
    e = jnp.exp(scores - m)                                        # unnormalized probs
    denom = jnp.sum(e, axis=-1, keepdims=True)
    ctx = jnp.einsum('bqk,bkd->bqd', e.astype(mxu_dtype), vh,
                     preferred_element_type=jnp.float32)           # (TB*H, S, hd)
    ctx = ctx * pl.reciprocal(denom, approx=True)                  # deferred softmax norm (EUP)

    # concat heads -> one full-width (D x D) out-projection matmul
    ctx = jnp.transpose(ctx.reshape(TB, H, S, hd), (0, 2, 1, 3)).reshape(BS, D)
    attn = wdot(ctx, wo_attn_t_ref[0]) + attn_ob                   # (TB*S, D)

    h = h + attn                                                   # residual (dropout1 = id)
    h = h * bn1_s + bn1_b                                          # BatchNorm1d eval (folded)

    # ---------------- position-wise feed-forward (exact erf GELU) ----------------
    f1 = _gelu(wdot(h, l1w_t_ref[0]) + l1b_ref[0])                 # (TB*S, DFF)
    f2 = wdot(f1, l2w_t_ref[0]) + l2b                              # (TB*S, D)
    h = h + f2                                                     # residual (dropout2 = id)
    h = h * bn2_s + bn2_b                                          # BatchNorm1d eval (folded)

    h_scr[...] = h

    # ---------------- final activation + output linear (lane-padded feat dim) ----------------
    @pl.when(l == n_layers - 1)
    def _final():
        hf = _gelu(h)                                              # outer dropout1 = id
        o = wdot(hf, wo_t_ref[...]) + bo_ref[...]                  # (TB*S, FEAT_OUT)
        out_ref[...] = o.reshape(TB, S, FEAT_OUT).astype(out_ref.dtype)


# --------------------------------- wrapper ------------------------------------

def _round_up(x, m):
    return ((x + m - 1) // m) * m


def _vmem_plan(B, S, D, DFF, H, FEAT_IN, FEAT_OUT, w_bytes, vmem_cap):
    """Pick the batch tile (largest divisor of B that fits) and a VMEM limit."""
    f32 = 4
    # streamed per-layer weights (double-buffered) + per-layer vectors
    per_layer = (4 * D * D + 2 * D * DFF) * w_bytes + (3 * D + DFF + 6 * D) * f32
    # grid-invariant residents
    resident = (FEAT_IN * D + D * FEAT_OUT) * w_bytes + (S * D + D + FEAT_OUT) * f32
    fixed = 2 * per_layer + resident

    def est(tb):
        io = (2 * tb * S * FEAT_IN + 2 * tb * S + tb * S * FEAT_OUT) * f32
        scratch = tb * S * D * f32
        trans = tb * (4 * S * D            # qkv
                      + 3 * S * D          # per-head q/k/v layouts
                      + 2 * H * S * S      # scores + exp
                      + 2 * S * D          # ctx + concat
                      + S * DFF            # ffn hidden
                      + 2 * S * D) * f32   # residual temps
        return fixed + io + scratch + trans

    budget = max(int(vmem_cap * 0.55), 24 << 20)
    tb = 1
    for cand in range(B, 0, -1):
        if B % cand:
            continue
        if est(cand) <= budget:
            tb = cand
            break
    # TODO(synk): for very long S the (TB*H, S, S) transients need head-looping /
    # flash-style KV tiling on v7x (64 MiB VMEM); not implemented here.
    limit = int(est(tb) * 1.5) + (4 << 20)
    limit = max(32 << 20, min(limit, vmem_cap - (16 << 20)))
    return tb, limit


def fixed_positional_encoding(max_len, d_model):
    position = jnp.arange(max_len, dtype=jnp.float32)[:, None]
    div_term = jnp.exp(jnp.arange(0, d_model, 2, dtype=jnp.float32)
                       * (-math.log(10000.0) / d_model))
    pe = jnp.zeros((max_len, d_model), jnp.float32)
    pe = pe.at[:, 0::2].set(jnp.sin(position * div_term))
    pe = pe.at[:, 1::2].set(jnp.cos(position * div_term))
    return pe


def init_params(key, feat_dim, d_model, num_layers, dim_feedforward, max_len, seq_len):
    D, L, DFF = d_model, num_layers, dim_feedforward
    keys = iter(jax.random.split(key, 64))

    def nrm(shape, scale=0.05):
        return jax.random.normal(next(keys), shape, jnp.float32) * scale

    return dict(
        pe=fixed_positional_encoding(max_len, D)[:seq_len],      # (S, D)
        wp_t=nrm((feat_dim, D)), bp=nrm((1, D)),                 # project_inp (transposed)
        wq_t=nrm((L, D, D)), bq=nrm((L, 1, D)),                  # in_proj chunks (transposed)
        wk_t=nrm((L, D, D)), bk=nrm((L, 1, D)),
        wv_t=nrm((L, D, D)), bv=nrm((L, 1, D)),
        attn_out_w_t=nrm((L, D, D)), attn_out_b=nrm((L, 1, D)),
        l1w_t=nrm((L, D, DFF)), l1b=nrm((L, 1, DFF)),
        l2w_t=nrm((L, DFF, D)), l2b=nrm((L, 1, D)),
        bn1_g=1.0 + nrm((L, 1, D)), bn1_b=nrm((L, 1, D)),
        bn1_m=nrm((L, 1, D)), bn1_v=1.0 + jnp.abs(nrm((L, 1, D))),
        bn2_g=1.0 + nrm((L, 1, D)), bn2_b=nrm((L, 1, D)),
        bn2_m=nrm((L, 1, D)), bn2_v=1.0 + jnp.abs(nrm((L, 1, D))),
        wo_t=nrm((D, feat_dim)), bo=nrm((1, feat_dim)),          # output_layer (transposed)
    )


def ts_transformer_forward(X, padding_masks, params, *, d_model, n_heads,
                           num_layers, dim_feedforward,
                           mxu_dtype=jnp.bfloat16, batch_tile=None):
    """mxu_dtype=jnp.bfloat16 (default) uses bf16 MXU inputs with f32 accumulation
    (recommended on v5e/v6e/v7x); pass jnp.float32 for closest PyTorch parity."""
    B, S, feat_dim = X.shape
    D, H, L, DFF = d_model, n_heads, num_layers, dim_feedforward
    hd = D // H
    FEAT_IN = _round_up(feat_dim, 128)                 # lane-dense input load
    FEAT_OUT = _round_up(feat_dim, 128)                # lane-dense output store
    f32 = jnp.float32
    eps = 1e-5
    w_bytes = jnp.dtype(mxu_dtype).itemsize

    try:
        vmem_cap = int(pltpu.get_tpu_info().vmem_capacity_bytes)
    except Exception:
        vmem_cap = 64 << 20                            # conservative (v7x per-TC)

    TB, vmem_limit = _vmem_plan(B, S, D, DFF, H, FEAT_IN, FEAT_OUT, w_bytes, vmem_cap)
    if batch_tile is not None:
        TB = batch_tile
        assert B % TB == 0
    # (v7x hint: prefer B//TB even so the 2 TensorCores get balanced work.)

    # ---- inputs (lane-padded features) ----
    x = jnp.zeros((B, S, FEAT_IN), f32).at[:, :, :feat_dim].set(X.astype(f32))
    mask = padding_masks.astype(f32).reshape(B, 1, S)  # 1.0 keep, 0.0 padding

    # ---- weight prep: transpose for activation@weight, fuse QKV, fold scale & BN ----
    attn_scale = 1.0 / math.sqrt(hd)
    wqkv_t = jnp.concatenate(
        [params["wq_t"] * attn_scale, params["wk_t"], params["wv_t"]], axis=-1
    ).astype(mxu_dtype)                                            # (L, D, 3D)
    bqkv = jnp.concatenate(
        [params["bq"] * attn_scale, params["bk"], params["bv"]], axis=-1
    ).astype(f32)                                                  # (L, 1, 3D)
    wo_attn_t = params["attn_out_w_t"].astype(mxu_dtype)           # (L, D, D)

    bn1_s = params["bn1_g"] * lax.rsqrt(params["bn1_v"] + eps)
    bn1_b = params["bn1_b"] - params["bn1_m"] * bn1_s
    bn2_s = params["bn2_g"] * lax.rsqrt(params["bn2_v"] + eps)
    bn2_b = params["bn2_b"] - params["bn2_m"] * bn2_s
    vecs = jnp.concatenate(
        [params["attn_out_b"], params["l2b"], bn1_s, bn1_b, bn2_s, bn2_b], axis=1
    ).astype(f32)                                                  # (L, 6, D)

    l1w_t = params["l1w_t"].astype(mxu_dtype)
    l2w_t = params["l2w_t"].astype(mxu_dtype)
    wp_t = jnp.zeros((FEAT_IN, D), f32).at[:feat_dim].set(params["wp_t"]).astype(mxu_dtype)
    wo_t = jnp.zeros((D, FEAT_OUT), f32).at[:, :feat_dim].set(params["wo_t"]).astype(mxu_dtype)
    bo = jnp.zeros((1, FEAT_OUT), f32).at[:, :feat_dim].set(params["bo"])

    args = (x, mask, params["pe"], wp_t, params["bp"],
            wqkv_t, bqkv, wo_attn_t, l1w_t, params["l1b"], l2w_t, vecs,
            wo_t, bo)

    # Grid: (batch tiles, layers).  Batch axis is "parallel" (megacore-shardable);
    # the layer axis is the streamed "arbitrary" axis — per-layer weights are
    # double-buffered across it and the residual stream is carried in VMEM scratch.
    def inv2(b, l): return (0, 0)
    def batch3(b, l): return (b, 0, 0)
    def layer3(b, l): return (l, 0, 0)

    in_specs = [
        pl.BlockSpec((TB, S, FEAT_IN), batch3),        # x (lane-padded)
        pl.BlockSpec((TB, 1, S), batch3),              # padding mask
        pl.BlockSpec((S, D), inv2),                    # pe (grid-invariant, resident)
        pl.BlockSpec((FEAT_IN, D), inv2),              # wp_t
        pl.BlockSpec((1, D), inv2),                    # bp
        pl.BlockSpec((1, D, 3 * D), layer3),           # fused qkv weight (streamed)
        pl.BlockSpec((1, 1, 3 * D), layer3),           # fused qkv bias
        pl.BlockSpec((1, D, D), layer3),               # attn out-projection weight
        pl.BlockSpec((1, D, DFF), layer3),             # linear1 w
        pl.BlockSpec((1, 1, DFF), layer3),             # linear1 b
        pl.BlockSpec((1, DFF, D), layer3),             # linear2 w
        pl.BlockSpec((1, 6, D), layer3),               # packed per-layer vectors
        pl.BlockSpec((D, FEAT_OUT), inv2),             # output layer w (lane-padded)
        pl.BlockSpec((1, FEAT_OUT), inv2),             # output layer b (lane-padded)
    ]
    out_spec = pl.BlockSpec((TB, S, FEAT_OUT), batch3)

    kernel = partial(_ts_layer_kernel, TB=TB, S=S, D=D, H=H,
                     FEAT_IN=FEAT_IN, FEAT_OUT=FEAT_OUT, mxu_dtype=mxu_dtype)

    out = pl.pallas_call(
        kernel,
        out_shape=jax.ShapeDtypeStruct((B, S, FEAT_OUT), jnp.float32),
        grid=(B // TB, L),
        in_specs=in_specs,
        out_specs=out_spec,
        scratch_shapes=[pltpu.VMEM((TB * S, D), jnp.float32)],   # residual stream h
        compiler_params=pltpu.CompilerParams(
            dimension_semantics=("parallel", "arbitrary"),
            vmem_limit_bytes=int(vmem_limit)),
    )(*args)
    return out[:, :, :feat_dim]                        # drop lane padding


# ----------------------------------- main --------------------------------------

if __name__ == "__main__":
    B, S = 2, 8
    FEAT_DIM, MAX_LEN = 8, 16
    D_MODEL, N_HEADS, N_LAYERS, D_FF = 32, 4, 2, 64

    key = jax.random.PRNGKey(0)
    kx, kp = jax.random.split(key)
    X = jax.random.normal(kx, (B, S, FEAT_DIM), jnp.float32)
    # padding_masks: 1 = keep, 0 = padding (second sequence has 2 padded steps)
    padding_masks = jnp.array([[1] * S, [1] * 6 + [0] * 2], dtype=jnp.bool_)

    params = init_params(kp, FEAT_DIM, D_MODEL, N_LAYERS, D_FF, MAX_LEN, S)

    out = ts_transformer_forward(
        X, padding_masks, params,
        d_model=D_MODEL, n_heads=N_HEADS, num_layers=N_LAYERS,
        dim_feedforward=D_FF,
    )
    jax.block_until_ready(out)
    assert out.shape == (B, S, FEAT_DIM) and out.dtype == jnp.float32
    assert bool(jnp.all(jnp.isfinite(out)))
    print("KERNEL_OK")
</pallas_src>

<mosaic_0001>
module attributes {stable_mosaic.version = 11 : i64} {
  func.func @_ts_layer_kernel(%arg0: i32, %arg1: i32, %arg2: memref<2x8x128xf32, #tpu.memory_space<vmem>>, %arg3: memref<2x1x8xf32, #tpu.memory_space<vmem>>, %arg4: memref<8x32xf32, #tpu.memory_space<vmem>>, %arg5: memref<128x32xbf16, #tpu.memory_space<vmem>>, %arg6: memref<1x32xf32, #tpu.memory_space<vmem>>, %arg7: memref<1x32x96xbf16, #tpu.memory_space<vmem>>, %arg8: memref<1x1x96xf32, #tpu.memory_space<vmem>>, %arg9: memref<1x32x32xbf16, #tpu.memory_space<vmem>>, %arg10: memref<1x32x64xbf16, #tpu.memory_space<vmem>>, %arg11: memref<1x1x64xf32, #tpu.memory_space<vmem>>, %arg12: memref<1x64x32xbf16, #tpu.memory_space<vmem>>, %arg13: memref<1x6x32xf32, #tpu.memory_space<vmem>>, %arg14: memref<32x128xbf16, #tpu.memory_space<vmem>>, %arg15: memref<1x128xf32, #tpu.memory_space<vmem>>, %arg16: memref<2x8x128xf32, #tpu.memory_space<vmem>>, %arg17: memref<16x32xf32, #tpu.memory_space<vmem>>) attributes {dimension_semantics = [#tpu.dimension_semantics<parallel>, #tpu.dimension_semantics<arbitrary>], iteration_bounds = array<i64: 1, 2>, scalar_prefetch = 0 : i64, scratch_operands = 1 : i64, tpu.core_type = #tpu.core_type<tc>, window_params = [{transform_indices = @transform_0, window_bounds = array<i64: 2, 8, 128>}, {transform_indices = @transform_1, window_bounds = array<i64: 2, 1, 8>}, {pipeline_mode = #tpu.pipeline_mode<synchronous>, transform_indices = @transform_2, window_bounds = array<i64: 8, 32>}, {pipeline_mode = #tpu.pipeline_mode<synchronous>, transform_indices = @transform_3, window_bounds = array<i64: 128, 32>}, {pipeline_mode = #tpu.pipeline_mode<synchronous>, transform_indices = @transform_4, window_bounds = array<i64: 1, 32>}, {transform_indices = @transform_5, window_bounds = array<i64: 1, 32, 96>}, {transform_indices = @transform_6, window_bounds = array<i64: 1, 1, 96>}, {transform_indices = @transform_7, window_bounds = array<i64: 1, 32, 32>}, {transform_indices = @transform_8, window_bounds = array<i64: 1, 32, 64>}, {transform_indices = @transform_9, window_bounds = array<i64: 1, 1, 64>}, {transform_indices = @transform_10, window_bounds = array<i64: 1, 64, 32>}, {transform_indices = @transform_11, window_bounds = array<i64: 1, 6, 32>}, {pipeline_mode = #tpu.pipeline_mode<synchronous>, transform_indices = @transform_12, window_bounds = array<i64: 32, 128>}, {pipeline_mode = #tpu.pipeline_mode<synchronous>, transform_indices = @transform_13, window_bounds = array<i64: 1, 128>}, {transform_indices = @transform_14, window_bounds = array<i64: 2, 8, 128>}]} {
    %c0_i32 = arith.constant 0 : i32
    %0 = arith.cmpi eq, %arg1, %c0_i32 : i32
    %1 = arith.extui %0 : i1 to i32
    %c0_i32_0 = arith.constant 0 : i32
    %2 = arith.cmpi ne, %1, %c0_i32_0 : i32
    scf.if %2 {
      %c0_54 = arith.constant 0 : index
      %c0_55 = arith.constant 0 : index
      %c0_56 = arith.constant 0 : index
      %136 = vector.load %arg2[%c0_54, %c0_55, %c0_56] : memref<2x8x128xf32, #tpu.memory_space<vmem>>, vector<2x8x128xf32>
      %137 = vector.shape_cast %136 : vector<2x8x128xf32> to vector<16x128xf32>
      %c0_57 = arith.constant 0 : index
      %c0_58 = arith.constant 0 : index
      %138 = vector.load %arg5[%c0_57, %c0_58] : memref<128x32xbf16, #tpu.memory_space<vmem>>, vector<128x32xbf16>
      %139 = arith.truncf %137 : vector<16x128xf32> to vector<16x128xbf16>
      %cst_59 = arith.constant dense<0.000000e+00> : vector<16x32xf32>
      %140 = tpu.matmul %139, %138, %cst_59 {dimension_numbers = #tpu.dot_dimension_numbers<[1], [0], [0], [1], [0, 0, 1, 1], [], []>} : vector<16x128xbf16>, vector<128x32xbf16>, vector<16x32xf32> -> vector<16x32xf32>
      %c0_60 = arith.constant 0 : index
      %c0_61 = arith.constant 0 : index
      %141 = vector.load %arg6[%c0_60, %c0_61] : memref<1x32xf32, #tpu.memory_space<vmem>>, vector<1x32xf32>
      %142 = vector.broadcast %141 : vector<1x32xf32> to vector<16x32xf32>
      %143 = arith.addf %140, %142 : vector<16x32xf32>
      %cst_62 = arith.constant 5.65685415 : f32
      %144 = vector.broadcast %cst_62 : f32 to vector<16x32xf32>
      %145 = arith.mulf %143, %144 : vector<16x32xf32>
      %146 = vector.shape_cast %145 : vector<16x32xf32> to vector<2x8x32xf32>
      %c0_63 = arith.constant 0 : index
      %c0_64 = arith.constant 0 : index
      %147 = vector.load %arg4[%c0_63, %c0_64] : memref<8x32xf32, #tpu.memory_space<vmem>>, vector<8x32xf32>
      %148 = vector.shape_cast %147 : vector<8x32xf32> to vector<1x8x32xf32>
      %149 = vector.broadcast %148 : vector<1x8x32xf32> to vector<2x8x32xf32>
      %150 = arith.addf %146, %149 : vector<2x8x32xf32>
      %151 = vector.shape_cast %150 : vector<2x8x32xf32> to vector<16x32xf32>
      %c0_65 = arith.constant 0 : index
      %c0_66 = arith.constant 0 : index
      %152 = vector.load %arg17[%c0_65, %c0_66] : memref<16x32xf32, #tpu.memory_space<vmem>>, vector<16x32xf32>
      tpu.vector_store %arg17[%c0_65, %c0_66], %151 {strides = array<i32>} : memref<16x32xf32, #tpu.memory_space<vmem>>, vector<16x32xf32>,
    } else {
    }
    %c0 = arith.constant 0 : index
    %c0_1 = arith.constant 0 : index
    %3 = vector.load %arg17[%c0, %c0_1] : memref<16x32xf32, #tpu.memory_space<vmem>>, vector<16x32xf32>
    %c0_2 = arith.constant 0 : index
    %c0_3 = arith.constant 0 : index
    %c0_4 = arith.constant 0 : index
    %4 = vector.load %arg13[%c0_2, %c0_3, %c0_4] : memref<1x6x32xf32, #tpu.memory_space<vmem>>, vector<1x6x32xf32>
    %5 = vector.shape_cast %4 : vector<1x6x32xf32> to vector<6x32xf32>
    %6 = vector.extract_strided_slice %5 {offsets = [0, 0], sizes = [1, 32], strides = [1, 1]} : vector<6x32xf32> to vector<1x32xf32>
    %7 = vector.extract_strided_slice %5 {offsets = [1, 0], sizes = [1, 32], strides = [1, 1]} : vector<6x32xf32> to vector<1x32xf32>
    %8 = vector.extract_strided_slice %5 {offsets = [2, 0], sizes = [1, 32], strides = [1, 1]} : vector<6x32xf32> to vector<1x32xf32>
    %9 = vector.extract_strided_slice %5 {offsets = [3, 0], sizes = [1, 32], strides = [1, 1]} : vector<6x32xf32> to vector<1x32xf32>
    %10 = vector.extract_strided_slice %5 {offsets = [4, 0], sizes = [1, 32], strides = [1, 1]} : vector<6x32xf32> to vector<1x32xf32>
    %11 = vector.extract_strided_slice %5 {offsets = [5, 0], sizes = [1, 32], strides = [1, 1]} : vector<6x32xf32> to vector<1x32xf32>
    %c0_5 = arith.constant 0 : index
    %c0_6 = arith.constant 0 : index
    %c0_7 = arith.constant 0 : index
    %12 = vector.load %arg7[%c0_5, %c0_6, %c0_7] : memref<1x32x96xbf16, #tpu.memory_space<vmem>>, vector<1x32x96xbf16>
    %13 = vector.shape_cast %12 : vector<1x32x96xbf16> to vector<32x96xbf16>
    %14 = arith.truncf %3 : vector<16x32xf32> to vector<16x32xbf16>
    %cst = arith.constant dense<0.000000e+00> : vector<16x96xf32>
    %15 = tpu.matmul %14, %13, %cst {dimension_numbers = #tpu.dot_dimension_numbers<[1], [0], [0], [1], [0, 0, 1, 1], [], []>} : vector<16x32xbf16>, vector<32x96xbf16>, vector<16x96xf32> -> vector<16x96xf32>
    %c0_8 = arith.constant 0 : index
    %c0_9 = arith.constant 0 : index
    %c0_10 = arith.constant 0 : index
    %16 = vector.load %arg8[%c0_8, %c0_9, %c0_10] : memref<1x1x96xf32, #tpu.memory_space<vmem>>, vector<1x1x96xf32>
    %17 = vector.shape_cast %16 : vector<1x1x96xf32> to vector<1x96xf32>
    %18 = vector.broadcast %17 : vector<1x96xf32> to vector<16x96xf32>
    %19 = arith.addf %15, %18 : vector<16x96xf32>
    %20 = vector.extract_strided_slice %19 {offsets = [0, 0], sizes = [16, 32], strides = [1, 1]} : vector<16x96xf32> to vector<16x32xf32>
    %21 = vector.shape_cast %20 : vector<16x32xf32> to vector<2x8x4x8xf32>
    %22 = tpu.transpose %21, [0, 2, 1, 3] : vector<2x8x4x8xf32> -> vector<2x4x8x8xf32>
    %23 = vector.shape_cast %22 : vector<2x4x8x8xf32> to vector<8x8x8xf32>
    %24 = arith.truncf %23 : vector<8x8x8xf32> to vector<8x8x8xbf16>
    %25 = vector.extract_strided_slice %19 {offsets = [0, 32], sizes = [16, 32], strides = [1, 1]} : vector<16x96xf32> to vector<16x32xf32>
    %26 = vector.shape_cast %25 : vector<16x32xf32> to vector<2x8x4x8xf32>
    %27 = tpu.transpose %26, [0, 2, 1, 3] : vector<2x8x4x8xf32> -> vector<2x4x8x8xf32>
    %28 = vector.shape_cast %27 : vector<2x4x8x8xf32> to vector<8x8x8xf32>
    %29 = arith.truncf %28 : vector<8x8x8xf32> to vector<8x8x8xbf16>
    %30 = vector.extract_strided_slice %19 {offsets = [0, 64], sizes = [16, 32], strides = [1, 1]} : vector<16x96xf32> to vector<16x32xf32>
    %31 = vector.shape_cast %30 : vector<16x32xf32> to vector<2x8x4x8xf32>
    %32 = tpu.transpose %31, [0, 2, 1, 3] : vector<2x8x4x8xf32> -> vector<2x4x8x8xf32>
    %33 = vector.shape_cast %32 : vector<2x4x8x8xf32> to vector<8x8x8xf32>
    %34 = arith.truncf %33 : vector<8x8x8xf32> to vector<8x8x8xbf16>
    %c0_11 = arith.constant 0 : index
    %c0_12 = arith.constant 0 : index
    %c0_13 = arith.constant 0 : index
    %35 = vector.load %arg3[%c0_11, %c0_12, %c0_13] : memref<2x1x8xf32, #tpu.memory_space<vmem>>, vector<2x1x8xf32>
    %cst_14 = arith.constant 1.000000e+00 : f32
    %36 = vector.broadcast %cst_14 : f32 to vector<2x1x8xf32>
    %37 = arith.subf %36, %35 : vector<2x1x8xf32>
    %cst_15 = arith.constant -1.000000e+30 : f32
    %38 = vector.broadcast %cst_15 : f32 to vector<2x1x8xf32>
    %39 = arith.mulf %37, %38 : vector<2x1x8xf32>
    %40 = vector.shape_cast %39 : vector<2x1x8xf32> to vector<2x1x8xf32>
    %41 = vector.broadcast %40 : vector<2x1x8xf32> to vector<2x4x8xf32>
    %42 = vector.shape_cast %41 : vector<2x4x8xf32> to vector<8x1x8xf32>
    "tpu.trace_start"() <{level = 10 : i32, message = "bqd,bkd->bqk"}> : () -> ()
    %cst_16 = arith.constant dense<0.000000e+00> : vector<8x8x8xf32>
    %43 = tpu.matmul %24, %29, %cst_16 {dimension_numbers = #tpu.dot_dimension_numbers<[2], [2], [1], [1], [0, 0, 0, 1, 1, 1], [0], [0]>} : vector<8x8x8xbf16>, vector<8x8x8xbf16>, vector<8x8x8xf32> -> vector<8x8x8xf32>
    "tpu.trace_stop"() : () -> ()
    %44 = vector.broadcast %42 : vector<8x1x8xf32> to vector<8x8x8xf32>
    %45 = arith.addf %43, %44 : vector<8x8x8xf32>
    %cst_17 = arith.constant dense<0xFF800000> : vector<8x8xf32>
    %46 = vector.multi_reduction <maximumf>, %45, %cst_17 [2] : vector<8x8x8xf32> to vector<8x8xf32>
    %47 = vector.shape_cast %46 : vector<8x8xf32> to vector<8x8x1xf32>
    %48 = vector.broadcast %47 : vector<8x8x1xf32> to vector<8x8x8xf32>
    %49 = arith.subf %45, %48 : vector<8x8x8xf32>
    %50 = math.exp %49 : vector<8x8x8xf32>
    %cst_18 = arith.constant dense<0.000000e+00> : vector<8x8xf32>
    %51 = vector.multi_reduction <add>, %50, %cst_18 [2] : vector<8x8x8xf32> to vector<8x8xf32>
    %52 = vector.shape_cast %51 : vector<8x8xf32> to vector<8x8x1xf32>
    %53 = arith.truncf %50 : vector<8x8x8xf32> to vector<8x8x8xbf16>
    "tpu.trace_start"() <{level = 10 : i32, message = "bqk,bkd->bqd"}> : () -> ()
    %cst_19 = arith.constant dense<0.000000e+00> : vector<8x8x8xf32>
    %54 = tpu.matmul %53, %34, %cst_19 {dimension_numbers = #tpu.dot_dimension_numbers<[2], [1], [1], [2], [0, 0, 0, 1, 1, 2], [0], [0]>} : vector<8x8x8xbf16>, vector<8x8x8xbf16>, vector<8x8x8xf32> -> vector<8x8x8xf32>
    "tpu.trace_stop"() : () -> ()
    %55 = tpu.reciprocal %52 {approx = true} : vector<8x8x1xf32> -> vector<8x8x1xf32>
    %56 = vector.broadcast %55 : vector<8x8x1xf32> to vector<8x8x8xf32>
    %57 = arith.mulf %54, %56 : vector<8x8x8xf32>
    %58 = vector.shape_cast %57 : vector<8x8x8xf32> to vector<2x4x8x8xf32>
    %59 = tpu.transpose %58, [0, 2, 1, 3] : vector<2x4x8x8xf32> -> vector<2x8x4x8xf32>
    %60 = vector.shape_cast %59 : vector<2x8x4x8xf32> to vector<16x32xf32>
    %c0_20 = arith.constant 0 : index
    %c0_21 = arith.constant 0 : index
    %c0_22 = arith.constant 0 : index
    %61 = vector.load %arg9[%c0_20, %c0_21, %c0_22] : memref<1x32x32xbf16, #tpu.memory_space<vmem>>, vector<1x32x32xbf16>
    %62 = vector.shape_cast %61 : vector<1x32x32xbf16> to vector<32x32xbf16>
    %63 = arith.truncf %60 : vector<16x32xf32> to vector<16x32xbf16>
    %cst_23 = arith.constant dense<0.000000e+00> : vector<16x32xf32>
    %64 = tpu.matmul %63, %62, %cst_23 {dimension_numbers = #tpu.dot_dimension_numbers<[1], [0], [0], [1], [0, 0, 1, 1], [], []>} : vector<16x32xbf16>, vector<32x32xbf16>, vector<16x32xf32> -> vector<16x32xf32>
    %65 = vector.broadcast %6 : vector<1x32xf32> to vector<16x32xf32>
    %66 = arith.addf %64, %65 : vector<16x32xf32>
    %67 = arith.addf %3, %66 : vector<16x32xf32>
    %68 = vector.broadcast %8 : vector<1x32xf32> to vector<16x32xf32>
    %69 = arith.mulf %67, %68 : vector<16x32xf32>
    %70 = vector.broadcast %9 : vector<1x32xf32> to vector<16x32xf32>
    %71 = arith.addf %69, %70 : vector<16x32xf32>
    %c0_24 = arith.constant 0 : index
    %c0_25 = arith.constant 0 : index
    %c0_26 = arith.constant 0 : index
    %72 = vector.load %arg10[%c0_24, %c0_25, %c0_26] : memref<1x32x64xbf16, #tpu.memory_space<vmem>>, vector<1x32x64xbf16>
    %73 = vector.shape_cast %72 : vector<1x32x64xbf16> to vector<32x64xbf16>
    %74 = arith.truncf %71 : vector<16x32xf32> to vector<16x32xbf16>
    %cst_27 = arith.constant dense<0.000000e+00> : vector<16x64xf32>
    %75 = tpu.matmul %74, %73, %cst_27 {dimension_numbers = #tpu.dot_dimension_numbers<[1], [0], [0], [1], [0, 0, 1, 1], [], []>} : vector<16x32xbf16>, vector<32x64xbf16>, vector<16x64xf32> -> vector<16x64xf32>
    %c0_28 = arith.constant 0 : index
    %c0_29 = arith.constant 0 : index
    %c0_30 = arith.constant 0 : index
    %76 = vector.load %arg11[%c0_28, %c0_29, %c0_30] : memref<1x1x64xf32, #tpu.memory_space<vmem>>, vector<1x1x64xf32>
    %77 = vector.shape_cast %76 : vector<1x1x64xf32> to vector<1x64xf32>
    %78 = vector.broadcast %77 : vector<1x64xf32> to vector<16x64xf32>
    %79 = arith.addf %75, %78 : vector<16x64xf32>
    %cst_31 = arith.constant 5.000000e-01 : f32
    %80 = vector.broadcast %cst_31 : f32 to vector<16x64xf32>
    %81 = arith.mulf %80, %79 : vector<16x64xf32>
    %cst_32 = arith.constant 0.707106769 : f32
    %82 = vector.broadcast %cst_32 : f32 to vector<16x64xf32>
    %83 = arith.mulf %79, %82 : vector<16x64xf32>
    %cst_33 = arith.constant 0.000000e+00 : f32
    %84 = vector.broadcast %cst_33 : f32 to vector<16x64xf32>
    %85 = arith.cmpf oge, %83, %84 : vector<16x64xf32>
    %cst_34 = arith.constant 1.000000e+00 : f32
    %cst_35 = arith.constant -1.000000e+00 : f32
    %86 = vector.broadcast %cst_34 : f32 to vector<16x64xf32>
    %87 = vector.broadcast %cst_35 : f32 to vector<16x64xf32>
    %88 = arith.select %85, %86, %87 : vector<16x64xi1>, vector<16x64xf32>
    %89 = math.absf %83 : vector<16x64xf32>
    %cst_36 = arith.constant 0.327591091 : f32
    %90 = vector.broadcast %cst_36 : f32 to vector<16x64xf32>
    %91 = arith.mulf %90, %89 : vector<16x64xf32>
    %cst_37 = arith.constant 1.000000e+00 : f32
    %92 = vector.broadcast %cst_37 : f32 to vector<16x64xf32>
    %93 = arith.addf %92, %91 : vector<16x64xf32>
    %cst_38 = arith.constant 1.000000e+00 : f32
    %94 = vector.broadcast %cst_38 : f32 to vector<16x64xf32>
    %95 = arith.divf %94, %93 : vector<16x64xf32>
    %cst_39 = arith.constant 1.06140542 : f32
    %96 = vector.broadcast %cst_39 : f32 to vector<16x64xf32>
    %97 = arith.mulf %96, %95 : vector<16x64xf32>
    %cst_40 = arith.constant -1.45315206 : f32
    %98 = vector.broadcast %cst_40 : f32 to vector<16x64xf32>
    %99 = arith.addf %97, %98 : vector<16x64xf32>
    %100 = arith.mulf %99, %95 : vector<16x64xf32>
    %cst_41 = arith.constant 1.42141378 : f32
    %101 = vector.broadcast %cst_41 : f32 to vector<16x64xf32>
    %102 = arith.addf %100, %101 : vector<16x64xf32>
    %103 = arith.mulf %102, %95 : vector<16x64xf32>
    %cst_42 = arith.constant -0.284496725 : f32
    %104 = vector.broadcast %cst_42 : f32 to vector<16x64xf32>
    %105 = arith.addf %103, %104 : vector<16x64xf32>
    %106 = arith.mulf %105, %95 : vector<16x64xf32>
    %cst_43 = arith.constant 0.254829586 : f32
    %107 = vector.broadcast %cst_43 : f32 to vector<16x64xf32>
    %108 = arith.addf %106, %107 : vector<16x64xf32>
    %109 = arith.mulf %108, %95 : vector<16x64xf32>
    %cst_44 = arith.constant 0.000000e+00 : f32
    %110 = vector.broadcast %cst_44 : f32 to vector<16x64xf32>
    %111 = arith.subf %110, %89 : vector<16x64xf32>
    %112 = arith.mulf %111, %89 : vector<16x64xf32>
    %113 = math.exp %112 : vector<16x64xf32>
    %114 = arith.mulf %109, %113 : vector<16x64xf32>
    %cst_45 = arith.constant 1.000000e+00 : f32
    %115 = vector.broadcast %cst_45 : f32 to vector<16x64xf32>
    %116 = arith.subf %115, %114 : vector<16x64xf32>
    %117 = arith.mulf %88, %116 : vector<16x64xf32>
    %cst_46 = arith.constant 1.000000e+00 : f32
    %118 = vector.broadcast %cst_46 : f32 to vector<16x64xf32>
    %119 = arith.addf %118, %117 : vector<16x64xf32>
    %120 = arith.mulf %81, %119 : vector<16x64xf32>
    %c0_47 = arith.constant 0 : index
    %c0_48 = arith.constant 0 : index
    %c0_49 = arith.constant 0 : index
    %121 = vector.load %arg12[%c0_47, %c0_48, %c0_49] : memref<1x64x32xbf16, #tpu.memory_space<vmem>>, vector<1x64x32xbf16>
    %122 = vector.shape_cast %121 : vector<1x64x32xbf16> to vector<64x32xbf16>
    %123 = arith.truncf %120 : vector<16x64xf32> to vector<16x64xbf16>
    %cst_50 = arith.constant dense<0.000000e+00> : vector<16x32xf32>
    %124 = tpu.matmul %123, %122, %cst_50 {dimension_numbers = #tpu.dot_dimension_numbers<[1], [0], [0], [1], [0, 0, 1, 1], [], []>} : vector<16x64xbf16>, vector<64x32xbf16>, vector<16x32xf32> -> vector<16x32xf32>
    %125 = vector.broadcast %7 : vector<1x32xf32> to vector<16x32xf32>
    %126 = arith.addf %124, %125 : vector<16x32xf32>
    %127 = arith.addf %71, %126 : vector<16x32xf32>
    %128 = vector.broadcast %10 : vector<1x32xf32> to vector<16x32xf32>
    %129 = arith.mulf %127, %128 : vector<16x32xf32>
    %130 = vector.broadcast %11 : vector<1x32xf32> to vector<16x32xf32>
    %131 = arith.addf %129, %130 : vector<16x32xf32>
    %c0_51 = arith.constant 0 : index
    %c0_52 = arith.constant 0 : index
    %132 = vector.load %arg17[%c0_51, %c0_52] : memref<16x32xf32, #tpu.memory_space<vmem>>, vector<16x32xf32>
    tpu.vector_store %arg17[%c0_51, %c0_52], %131 {strides = array<i32>} : memref<16x32xf32, #tpu.memory_space<vmem>>, vector<16x32xf32>,
    %c1_i32 = arith.constant 1 : i32
    %133 = arith.cmpi eq, %arg1, %c1_i32 : i32
    %134 = arith.extui %133 : i1 to i32
    %c0_i32_53 = arith.constant 0 : i32
    %135 = arith.cmpi ne, %134, %c0_i32_53 : i32
    scf.if %135 {
      %cst_54 = arith.constant 5.000000e-01 : f32
      %136 = vector.broadcast %cst_54 : f32 to vector<16x32xf32>
      %137 = arith.mulf %136, %131 : vector<16x32xf32>
      %cst_55 = arith.constant 0.707106769 : f32
      %138 = vector.broadcast %cst_55 : f32 to vector<16x32xf32>
      %139 = arith.mulf %131, %138 : vector<16x32xf32>
      %cst_56 = arith.constant 0.000000e+00 : f32
      %140 = vector.broadcast %cst_56 : f32 to vector<16x32xf32>
      %141 = arith.cmpf oge, %139, %140 : vector<16x32xf32>
      %cst_57 = arith.constant 1.000000e+00 : f32
      %cst_58 = arith.constant -1.000000e+00 : f32
      %142 = vector.broadcast %cst_57 : f32 to vector<16x32xf32>
      %143 = vector.broadcast %cst_58 : f32 to vector<16x32xf32>
      %144 = arith.select %141, %142, %143 : vector<16x32xi1>, vector<16x32xf32>
      %145 = math.absf %139 : vector<16x32xf32>
      %cst_59 = arith.constant 0.327591091 : f32
      %146 = vector.broadcast %cst_59 : f32 to vector<16x32xf32>
      %147 = arith.mulf %146, %145 : vector<16x32xf32>
      %cst_60 = arith.constant 1.000000e+00 : f32
      %148 = vector.broadcast %cst_60 : f32 to vector<16x32xf32>
      %149 = arith.addf %148, %147 : vector<16x32xf32>
      %cst_61 = arith.constant 1.000000e+00 : f32
      %150 = vector.broadcast %cst_61 : f32 to vector<16x32xf32>
      %151 = arith.divf %150, %149 : vector<16x32xf32>
      %cst_62 = arith.constant 1.06140542 : f32
      %152 = vector.broadcast %cst_62 : f32 to vector<16x32xf32>
      %153 = arith.mulf %152, %151 : vector<16x32xf32>
      %cst_63 = arith.constant -1.45315206 : f32
      %154 = vector.broadcast %cst_63 : f32 to vector<16x32xf32>
      %155 = arith.addf %153, %154 : vector<16x32xf32>
      %156 = arith.mulf %155, %151 : vector<16x32xf32>
      %cst_64 = arith.constant 1.42141378 : f32
      %157 = vector.broadcast %cst_64 : f32 to vector<16x32xf32>
      %158 = arith.addf %156, %157 : vector<16x32xf32>
      %159 = arith.mulf %158, %151 : vector<16x32xf32>
      %cst_65 = arith.constant -0.284496725 : f32
      %160 = vector.broadcast %cst_65 : f32 to vector<16x32xf32>
      %161 = arith.addf %159, %160 : vector<16x32xf32>
      %162 = arith.mulf %161, %151 : vector<16x32xf32>
      %cst_66 = arith.constant 0.254829586 : f32
      %163 = vector.broadcast %cst_66 : f32 to vector<16x32xf32>
      %164 = arith.addf %162, %163 : vector<16x32xf32>
      %165 = arith.mulf %164, %151 : vector<16x32xf32>
      %cst_67 = arith.constant 0.000000e+00 : f32
      %166 = vector.broadcast %cst_67 : f32 to vector<16x32xf32>
      %167 = arith.subf %166, %145 : vector<16x32xf32>
      %168 = arith.mulf %167, %145 : vector<16x32xf32>
      %169 = math.exp %168 : vector<16x32xf32>
      %170 = arith.mulf %165, %169 : vector<16x32xf32>
      %cst_68 = arith.constant 1.000000e+00 : f32
      %171 = vector.broadcast %cst_68 : f32 to vector<16x32xf32>
      %172 = arith.subf %171, %170 : vector<16x32xf32>
      %173 = arith.mulf %144, %172 : vector<16x32xf32>
      %cst_69 = arith.constant 1.000000e+00 : f32
      %174 = vector.broadcast %cst_69 : f32 to vector<16x32xf32>
      %175 = arith.addf %174, %173 : vector<16x32xf32>
      %176 = arith.mulf %137, %175 : vector<16x32xf32>
      %c0_70 = arith.constant 0 : index
      %c0_71 = arith.constant 0 : index
      %177 = vector.load %arg14[%c0_70, %c0_71] : memref<32x128xbf16, #tpu.memory_space<vmem>>, vector<32x128xbf16>
      %178 = arith.truncf %176 : vector<16x32xf32> to vector<16x32xbf16>
      %cst_72 = arith.constant dense<0.000000e+00> : vector<16x128xf32>
      %179 = tpu.matmul %178, %177, %cst_72 {dimension_numbers = #tpu.dot_dimension_numbers<[1], [0], [0], [1], [0, 0, 1, 1], [], []>} : vector<16x32xbf16>, vector<32x128xbf16>, vector<16x128xf32> -> vector<16x128xf32>
      %c0_73 = arith.constant 0 : index
      %c0_74 = arith.constant 0 : index
      %180 = vector.load %arg15[%c0_73, %c0_74] : memref<1x128xf32, #tpu.memory_space<vmem>>, vector<1x128xf32>
      %181 = vector.broadcast %180 : vector<1x128xf32> to vector<16x128xf32>
      %182 = arith.addf %179, %181 : vector<16x128xf32>
      %183 = vector.shape_cast %182 : vector<16x128xf32> to vector<2x8x128xf32>
      %c0_75 = arith.constant 0 : index
      %c0_76 = arith.constant 0 : index
      %c0_77 = arith.constant 0 : index
      %184 = vector.load %arg16[%c0_75, %c0_76, %c0_77] : memref<2x8x128xf32, #tpu.memory_space<vmem>>, vector<2x8x128xf32>
      tpu.vector_store %arg16[%c0_75, %c0_76, %c0_77], %183 {strides = array<i32>} : memref<2x8x128xf32, #tpu.memory_space<vmem>>, vector<2x8x128xf32>,
    } else {
    }
    return
  }
  func.func @transform_0(%arg0: i32, %arg1: i32) -> (i32, i32, i32) {
    %c0_i32 = arith.constant 0 : i32
    %c0_i32_0 = arith.constant 0 : i32
    %c0_i32_1 = arith.constant 0 : i32
    return %arg0, %c0_i32, %c0_i32_0 : i32, i32, i32
  }
  func.func @transform_1(%arg0: i32, %arg1: i32) -> (i32, i32, i32) {
    %c0_i32 = arith.constant 0 : i32
    %c0_i32_0 = arith.constant 0 : i32
    %c0_i32_1 = arith.constant 0 : i32
    return %arg0, %c0_i32, %c0_i32_0 : i32, i32, i32
  }
  func.func @transform_2(%arg0: i32, %arg1: i32) -> (i32, i32) {
    %c0_i32 = arith.constant 0 : i32
    %c0_i32_0 = arith.constant 0 : i32
    %c0_i32_1 = arith.constant 0 : i32
    return %c0_i32, %c0_i32_0 : i32, i32
  }
  func.func @transform_3(%arg0: i32, %arg1: i32) -> (i32, i32) {
    %c0_i32 = arith.constant 0 : i32
    %c0_i32_0 = arith.constant 0 : i32
    %c0_i32_1 = arith.constant 0 : i32
    return %c0_i32, %c0_i32_0 : i32, i32
  }
  func.func @transform_4(%arg0: i32, %arg1: i32) -> (i32, i32) {
    %c0_i32 = arith.constant 0 : i32
    %c0_i32_0 = arith.constant 0 : i32
    %c0_i32_1 = arith.constant 0 : i32
    return %c0_i32, %c0_i32_0 : i32, i32
  }
  func.func @transform_5(%arg0: i32, %arg1: i32) -> (i32, i32, i32) {
    %c0_i32 = arith.constant 0 : i32
    %c0_i32_0 = arith.constant 0 : i32
    %c0_i32_1 = arith.constant 0 : i32
    return %arg1, %c0_i32, %c0_i32_0 : i32, i32, i32
  }
  func.func @transform_6(%arg0: i32, %arg1: i32) -> (i32, i32, i32) {
    %c0_i32 = arith.constant 0 : i32
    %c0_i32_0 = arith.constant 0 : i32
    %c0_i32_1 = arith.constant 0 : i32
    return %arg1, %c0_i32, %c0_i32_0 : i32, i32, i32
  }
  func.func @transform_7(%arg0: i32, %arg1: i32) -> (i32, i32, i32) {
    %c0_i32 = arith.constant 0 : i32
    %c0_i32_0 = arith.constant 0 : i32
    %c0_i32_1 = arith.constant 0 : i32
    return %arg1, %c0_i32, %c0_i32_0 : i32, i32, i32
  }
  func.func @transform_8(%arg0: i32, %arg1: i32) -> (i32, i32, i32) {
    %c0_i32 = arith.constant 0 : i32
    %c0_i32_0 = arith.constant 0 : i32
    %c0_i32_1 = arith.constant 0 : i32
    return %arg1, %c0_i32, %c0_i32_0 : i32, i32, i32
  }
  func.func @transform_9(%arg0: i32, %arg1: i32) -> (i32, i32, i32) {
    %c0_i32 = arith.constant 0 : i32
    %c0_i32_0 = arith.constant 0 : i32
    %c0_i32_1 = arith.constant 0 : i32
    return %arg1, %c0_i32, %c0_i32_0 : i32, i32, i32
  }
  func.func @transform_10(%arg0: i32, %arg1: i32) -> (i32, i32, i32) {
    %c0_i32 = arith.constant 0 : i32
    %c0_i32_0 = arith.constant 0 : i32
    %c0_i32_1 = arith.constant 0 : i32
    return %arg1, %c0_i32, %c0_i32_0 : i32, i32, i32
  }
  func.func @transform_11(%arg0: i32, %arg1: i32) -> (i32, i32, i32) {
    %c0_i32 = arith.constant 0 : i32
    %c0_i32_0 = arith.constant 0 : i32
    %c0_i32_1 = arith.constant 0 : i32
    return %arg1, %c0_i32, %c0_i32_0 : i32, i32, i32
  }
  func.func @transform_12(%arg0: i32, %arg1: i32) -> (i32, i32) {
    %c0_i32 = arith.constant 0 : i32
    %c0_i32_0 = arith.constant 0 : i32
    %c0_i32_1 = arith.constant 0 : i32
    return %c0_i32, %c0_i32_0 : i32, i32
  }
  func.func @transform_13(%arg0: i32, %arg1: i32) -> (i32, i32) {
    %c0_i32 = arith.constant 0 : i32
    %c0_i32_0 = arith.constant 0 : i32
    %c0_i32_1 = arith.constant 0 : i32
    return %c0_i32, %c0_i32_0 : i32, i32
  }
  func.func @transform_14(%arg0: i32, %arg1: i32) -> (i32, i32, i32) {
    %c0_i32 = arith.constant 0 : i32
    %c0_i32_0 = arith.constant 0 : i32
    %c0_i32_1 = arith.constant 0 : i32
    return %arg0, %c0_i32, %c0_i32_0 : i32, i32, i32
  }
}

</mosaic_0001>

<llo_original>
// kernel: tpu_custom_call.1
$region0: #{tpu_custom_call.1}
  #allocation0 [shape = 'u32[]', space=smem, size = 0x4, offset = 0x4, fixed_abs, tag = 'smem constant byte address 0x4 - core index']
  #allocation1 [shape = 'u32[144,128]{1,0:T(1,128)}', space=vmem, size = 0x12000, scoped, tag = 'internal scratch']
  #allocation2 [shape = 'f32[16,32]{1,0:T(8,128)}', space=vmem, size = 0x2000, scoped, tag = 'scratch operand']
  %s0 = inlined_call_operand.vmem [shape: f32[2,8,128], index: 0, kind: input, shape index: {}]
  %s1 = inlined_call_operand.vmem [shape: f32[2,1,8], index: 1, kind: input, shape index: {}]
  %s2 = inlined_call_operand.vmem [shape: f32[8,32], index: 2, kind: input, shape index: {}]
  %s3 = inlined_call_operand.vmem [shape: bf16[128,32], index: 3, kind: input, shape index: {}]
  %s4 = inlined_call_operand.vmem [shape: f32[1,32], index: 4, kind: input, shape index: {}]
  %s5 = inlined_call_operand.vmem [shape: bf16[2,32,96], index: 5, kind: input, shape index: {}]
  %s6 = inlined_call_operand.vmem [shape: f32[2,1,96], index: 6, kind: input, shape index: {}]
  %s7 = inlined_call_operand.vmem [shape: bf16[2,32,32], index: 7, kind: input, shape index: {}]
  %s8 = inlined_call_operand.vmem [shape: bf16[2,32,64], index: 8, kind: input, shape index: {}]
  %s9 = inlined_call_operand.vmem [shape: f32[2,1,64], index: 9, kind: input, shape index: {}]
  %s10 = inlined_call_operand.vmem [shape: bf16[2,64,32], index: 10, kind: input, shape index: {}]
  %s11 = inlined_call_operand.vmem [shape: f32[2,6,32], index: 11, kind: input, shape index: {}]
  %s12 = inlined_call_operand.vmem [shape: bf16[32,128], index: 12, kind: input, shape index: {}]
  %s13 = inlined_call_operand.vmem [shape: f32[1,128], index: 13, kind: input, shape index: {}]
  %s14 = inlined_call_operand.hbm [shape: f32[2,8,128], index: 14, kind: output, shape index: {}]
  %s15 = sld [smem:[#allocation0]]
  $region97: #{tpu_custom_call.1} parent=0
    _
  %s17 = ssub.s32 1, %s15
  %s18 = scalar_select 0, %s17, %s15
  $region1: #{tpu_custom_call.1} parent=0
    #allocation3 [shape = 'u8[8192]{0}', space=vmem, size = 0x2000, scoped, tag = 'output window, operand 0, single buffered']
    #allocation4 [shape = 's32[2]{0}', space=sflag, size = 0x8, scoped, tag = 'scoped memory for tpu_custom_call.1']
    %19 = vsyncpa [#allocation4], 0
    loop: start=0, step=1, limit=4
    $region2: #{tpu_custom_call.1} parent=1 // loop_pre_header
      _
    $region3: #{tpu_custom_call.1} parent=1 // loop_header
      %s21 = sphi 0, %s25
      %p22 = scmp.ge.s32.totalorder %s21, 4
      %s28 = sphi 0, %s40
      %s29 = sphi 0, %s36
      %s30 = sphi 0, %s28
      %s31 = sphi 0, %s29
      %s32 = sphi 0, %s30
      %s33 = sphi 0, %s31
      %s43 = sphi 0, %s45
      %s46 = sphi 0, %s43
      %s47 = sphi 0, %s46
      %s63 = sphi 0, %s47
      %s69 = sphi 0, %s71
      %s72 = sphi 0, %s69
      %s73 = sphi 0, %s72
      %s89 = sphi 0, %s73
      %s93 = sphi 0, %s93
      %s95 = sphi 0, %s93
      %s96 = sphi 0, %s95
      %s110 = sphi 0, %s96
      %s114 = sphi 0, %s114
      %s116 = sphi 0, %s114
      %s117 = sphi 0, %s116
      %s131 = sphi 0, %s117
      %s135 = sphi 0, %s135
      %s137 = sphi 0, %s135
      %s138 = sphi 0, %s137
      %s152 = sphi 0, %s138
      %s158 = sphi 0, %s160
      %s161 = sphi 0, %s158
      %s162 = sphi 0, %s161
      %s178 = sphi 0, %s162
      %s184 = sphi 0, %s186
      %s187 = sphi 0, %s184
      %s188 = sphi 0, %s187
      %s204 = sphi 0, %s188
      %s210 = sphi 0, %s212
      %s213 = sphi 0, %s210
      %s214 = sphi 0, %s213
      %s230 = sphi 0, %s214
      %s236 = sphi 0, %s238
      %s239 = sphi 0, %s236
      %s240 = sphi 0, %s239
      %s256 = sphi 0, %s240
      %s262 = sphi 0, %s264
      %s265 = sphi 0, %s262
      %s266 = sphi 0, %s265
      %s282 = sphi 0, %s266
      %s288 = sphi 0, %s290
      %s291 = sphi 0, %s288
      %s292 = sphi 0, %s291
      %s308 = sphi 0, %s292
      %s314 = sphi 0, %s316
      %s317 = sphi 0, %s314
      %s318 = sphi 0, %s317
      %s334 = sphi 0, %s318
      %s338 = sphi 0, %s338
      %s340 = sphi 0, %s338
      %s341 = sphi 0, %s340
      %s355 = sphi 0, %s341
      %s359 = sphi 0, %s359
      %s361 = sphi 0, %s359
      %s362 = sphi 0, %s361
      %s376 = sphi 0, %s362
      %s382 = sphi 0, %s384
      %s385 = sphi 0, %s382
      %s386 = sphi 0, %s385
      %s402 = sphi 0, %s386
    $region4: #{tpu_custom_call.1} parent=1 // loop_header_branch
      %24 = sbr.rel (%p22) target = $region8
    $region5: #{tpu_custom_call.1} parent=1 // loop_body
      %s26 = ssub.s32 %s21, 1
      %s27 = ssub.s32 %s21, 2
      %s34 = sadd.s32 1, %s29
      %p35 = scmp.ge.s32.totalorder %s34, 2
      %s36 = scalar_select %p35, 0, %s34
      %s37 = sadd.s32 1, %s28
      %s38 = scalar_select %p35, %s37, %s28
      %p39 = scmp.ge.s32.totalorder %s38, 1
      %s40 = scalar_select %p39, 0, %s38
      %s41 = ssub.s32 %s28, %s40
      %p42 = scmp.eq.s32.totalorder %s41, 0
      %s44 = sadd.s32 %s43, 1
      %s45 = scalar_select %p42, %s43, %s44
      %p48 = pneg %p42
      %p49 = scmp.eq.s32.totalorder %s21, 1
      %p50 = por %p48, %p49
      %p51 = scmp.ne.s32.totalorder %s43, %s46
      %p52 = scmp.eq.s32.totalorder %s21, 0
      %p53 = por %p51, %p52
      %p54 = scmp.ne.s32.totalorder %s43, %s46
      %p55 = scmp.eq.s32.totalorder %s26, 1
      %p56 = por %p54, %p55
      %p57 = scmp.ne.s32.totalorder %s46, %s47
      %p58 = scmp.eq.s32.totalorder %s26, 0
      %p59 = por %p57, %p58
      %p60 = scmp.ne.s32.totalorder %s46, %s47
      %p61 = scmp.eq.s32.totalorder %s27, 1
      %p62 = por %p60, %p61
      %p64 = scmp.ne.s32.totalorder %s47, %s63
      %p65 = scmp.eq.s32.totalorder %s27, 0
      %p66 = por %p64, %p65
      %s67 = ssub.s32 %s28, %s40
      %p68 = scmp.eq.s32.totalorder %s67, 0
      %s70 = sadd.s32 %s69, 1
      %s71 = scalar_select %p68, %s69, %s70
      %p74 = pneg %p68
      %p75 = scmp.eq.s32.totalorder %s21, 1
      %p76 = por %p74, %p75
      %p77 = scmp.ne.s32.totalorder %s69, %s72
      %p78 = scmp.eq.s32.totalorder %s21, 0
      %p79 = por %p77, %p78
      %p80 = scmp.ne.s32.totalorder %s69, %s72
      %p81 = scmp.eq.s32.totalorder %s26, 1
      %p82 = por %p80, %p81
      %p83 = scmp.ne.s32.totalorder %s72, %s73
      %p84 = scmp.eq.s32.totalorder %s26, 0
      %p85 = por %p83, %p84
      %p86 = scmp.ne.s32.totalorder %s72, %s73
      %p87 = scmp.eq.s32.totalorder %s27, 1
      %p88 = por %p86, %p87
      %p90 = scmp.ne.s32.totalorder %s73, %s89
      %p91 = scmp.eq.s32.totalorder %s27, 0
      %p92 = por %p90, %p91
      %s94 = sadd.s32 %s93, 1
      %p97 = scmp.eq.s32.totalorder %s21, 1
      %p98 = scmp.ne.s32.totalorder %s93, %s95
      %p99 = scmp.eq.s32.totalorder %s21, 0
      %p100 = por %p98, %p99
      %p101 = scmp.ne.s32.totalorder %s93, %s95
      %p102 = scmp.eq.s32.totalorder %s26, 1
      %p103 = por %p101, %p102
      %p104 = scmp.ne.s32.totalorder %s95, %s96
      %p105 = scmp.eq.s32.totalorder %s26, 0
      %p106 = por %p104, %p105
      %p107 = scmp.ne.s32.totalorder %s95, %s96
      %p108 = scmp.eq.s32.totalorder %s27, 1
      %p109 = por %p107, %p108
      %p111 = scmp.ne.s32.totalorder %s96, %s110
      %p112 = scmp.eq.s32.totalorder %s27, 0
      %p113 = por %p111, %p112
      %s115 = sadd.s32 %s114, 1
      %p118 = scmp.eq.s32.totalorder %s21, 1
      %p119 = scmp.ne.s32.totalorder %s114, %s116
      %p120 = scmp.eq.s32.totalorder %s21, 0
      %p121 = por %p119, %p120
      %p122 = scmp.ne.s32.totalorder %s114, %s116
      %p123 = scmp.eq.s32.totalorder %s26, 1
      %p124 = por %p122, %p123
      %p125 = scmp.ne.s32.totalorder %s116, %s117
      %p126 = scmp.eq.s32.totalorder %s26, 0
      %p127 = por %p125, %p126
      %p128 = scmp.ne.s32.totalorder %s116, %s117
      %p129 = scmp.eq.s32.totalorder %s27, 1
      %p130 = por %p128, %p129
      %p132 = scmp.ne.s32.totalorder %s117, %s131
      %p133 = scmp.eq.s32.totalorder %s27, 0
      %p134 = por %p132, %p133
      %s136 = sadd.s32 %s135, 1
      %p139 = scmp.eq.s32.totalorder %s21, 1
      %p140 = scmp.ne.s32.totalorder %s135, %s137
      %p141 = scmp.eq.s32.totalorder %s21, 0
      %p142 = por %p140, %p141
      %p143 = scmp.ne.s32.totalorder %s135, %s137
      %p144 = scmp.eq.s32.totalorder %s26, 1
      %p145 = por %p143, %p144
      %p146 = scmp.ne.s32.totalorder %s137, %s138
      %p147 = scmp.eq.s32.totalorder %s26, 0
      %p148 = por %p146, %p147
      %p149 = scmp.ne.s32.totalorder %s137, %s138
      %p150 = scmp.eq.s32.totalorder %s27, 1
      %p151 = por %p149, %p150
      %p153 = scmp.ne.s32.totalorder %s138, %s152
      %p154 = scmp.eq.s32.totalorder %s27, 0
      %p155 = por %p153, %p154
      %s156 = ssub.s32 %s29, %s36
      %p157 = scmp.eq.s32.totalorder %s156, 0
      %s159 = sadd.s32 %s158, 1
      %s160 = scalar_select %p157, %s158, %s159
      %p163 = pneg %p157
      %p164 = scmp.eq.s32.totalorder %s21, 1
      %p165 = por %p163, %p164
      %p166 = scmp.ne.s32.totalorder %s158, %s161
      %p167 = scmp.eq.s32.totalorder %s21, 0
      %p168 = por %p166, %p167
      %p169 = scmp.ne.s32.totalorder %s158, %s161
      %p170 = scmp.eq.s32.totalorder %s26, 1
      %p171 = por %p169, %p170
      %p172 = scmp.ne.s32.totalorder %s161, %s162
      %p173 = scmp.eq.s32.totalorder %s26, 0
      %p174 = por %p172, %p173
      %p175 = scmp.ne.s32.totalorder %s161, %s162
      %p176 = scmp.eq.s32.totalorder %s27, 1
      %p177 = por %p175, %p176
      %p179 = scmp.ne.s32.totalorder %s162, %s178
      %p180 = scmp.eq.s32.totalorder %s27, 0
      %p181 = por %p179, %p180
      %s182 = ssub.s32 %s29, %s36
      %p183 = scmp.eq.s32.totalorder %s182, 0
      %s185 = sadd.s32 %s184, 1
      %s186 = scalar_select %p183, %s184, %s185
      %p189 = pneg %p183
      %p190 = scmp.eq.s32.totalorder %s21, 1
      %p191 = por %p189, %p190
      %p192 = scmp.ne.s32.totalorder %s184, %s187
      %p193 = scmp.eq.s32.totalorder %s21, 0
      %p194 = por %p192, %p193
      %p195 = scmp.ne.s32.totalorder %s184, %s187
      %p196 = scmp.eq.s32.totalorder %s26, 1
      %p197 = por %p195, %p196
      %p198 = scmp.ne.s32.totalorder %s187, %s188
      %p199 = scmp.eq.s32.totalorder %s26, 0
      %p200 = por %p198, %p199
      %p201 = scmp.ne.s32.totalorder %s187, %s188
      %p202 = scmp.eq.s32.totalorder %s27, 1
      %p203 = por %p201, %p202
      %p205 = scmp.ne.s32.totalorder %s188, %s204
      %p206 = scmp.eq.s32.totalorder %s27, 0
      %p207 = por %p205, %p206
      %s208 = ssub.s32 %s29, %s36
      %p209 = scmp.eq.s32.totalorder %s208, 0
      %s211 = sadd.s32 %s210, 1
      %s212 = scalar_select %p209, %s210, %s211
      %p215 = pneg %p209
      %p216 = scmp.eq.s32.totalorder %s21, 1
      %p217 = por %p215, %p216
      %p218 = scmp.ne.s32.totalorder %s210, %s213
      %p219 = scmp.eq.s32.totalorder %s21, 0
      %p220 = por %p218, %p219
      %p221 = scmp.ne.s32.totalorder %s210, %s213
      %p222 = scmp.eq.s32.totalorder %s26, 1
      %p223 = por %p221, %p222
      %p224 = scmp.ne.s32.totalorder %s213, %s214
      %p225 = scmp.eq.s32.totalorder %s26, 0
      %p226 = por %p224, %p225
      %p227 = scmp.ne.s32.totalorder %s213, %s214
      %p228 = scmp.eq.s32.totalorder %s27, 1
      %p229 = por %p227, %p228
      %p231 = scmp.ne.s32.totalorder %s214, %s230
      %p232 = scmp.eq.s32.totalorder %s27, 0
      %p233 = por %p231, %p232
      %s234 = ssub.s32 %s29, %s36
      %p235 = scmp.eq.s32.totalorder %s234, 0
      %s237 = sadd.s32 %s236, 1
      %s238 = scalar_select %p235, %s236, %s237
      %p241 = pneg %p235
      %p242 = scmp.eq.s32.totalorder %s21, 1
      %p243 = por %p241, %p242
      %p244 = scmp.ne.s32.totalorder %s236, %s239
      %p245 = scmp.eq.s32.totalorder %s21, 0
      %p246 = por %p244, %p245
      %p247 = scmp.ne.s32.totalorder %s236, %s239
      %p248 = scmp.eq.s32.totalorder %s26, 1
      %p249 = por %p247, %p248
      %p250 = scmp.ne.s32.totalorder %s239, %s240
      %p251 = scmp.eq.s32.totalorder %s26, 0
      %p252 = por %p250, %p251
      %p253 = scmp.ne.s32.totalorder %s239, %s240
      %p254 = scmp.eq.s32.totalorder %s27, 1
      %p255 = por %p253, %p254
      %p257 = scmp.ne.s32.totalorder %s240, %s256
      %p258 = scmp.eq.s32.totalorder %s27, 0
      %p259 = por %p257, %p258
      %s260 = ssub.s32 %s29, %s36
      %p261 = scmp.eq.s32.totalorder %s260, 0
      %s263 = sadd.s32 %s262, 1
      %s264 = scalar_select %p261, %s262, %s263
      %p267 = pneg %p261
      %p268 = scmp.eq.s32.totalorder %s21, 1
      %p269 = por %p267, %p268
      %p270 = scmp.ne.s32.totalorder %s262, %s265
      %p271 = scmp.eq.s32.totalorder %s21, 0
      %p272 = por %p270, %p271
      %p273 = scmp.ne.s32.totalorder %s262, %s265
      %p274 = scmp.eq.s32.totalorder %s26, 1
      %p275 = por %p273, %p274
      %p276 = scmp.ne.s32.totalorder %s265, %s266
      %p277 = scmp.eq.s32.totalorder %s26, 0
      %p278 = por %p276, %p277
      %p279 = scmp.ne.s32.totalorder %s265, %s266
      %p280 = scmp.eq.s32.totalorder %s27, 1
      %p281 = por %p279, %p280
      %p283 = scmp.ne.s32.totalorder %s266, %s282
      %p284 = scmp.eq.s32.totalorder %s27, 0
      %p285 = por %p283, %p284
      %s286 = ssub.s32 %s29, %s36
      %p287 = scmp.eq.s32.totalorder %s286, 0
      %s289 = sadd.s32 %s288, 1
      %s290 = scalar_select %p287, %s288, %s289
      %p293 = pneg %p287
      %p294 = scmp.eq.s32.totalorder %s21, 1
      %p295 = por %p293, %p294
      %p296 = scmp.ne.s32.totalorder %s288, %s291
      %p297 = scmp.eq.s32.totalorder %s21, 0
      %p298 = por %p296, %p297
      %p299 = scmp.ne.s32.totalorder %s288, %s291
      %p300 = scmp.eq.s32.totalorder %s26, 1
      %p301 = por %p299, %p300
      %p302 = scmp.ne.s32.totalorder %s291, %s292
      %p303 = scmp.eq.s32.totalorder %s26, 0
      %p304 = por %p302, %p303
      %p305 = scmp.ne.s32.totalorder %s291, %s292
      %p306 = scmp.eq.s32.totalorder %s27, 1
      %p307 = por %p305, %p306
      %p309 = scmp.ne.s32.totalorder %s292, %s308
      %p310 = scmp.eq.s32.totalorder %s27, 0
      %p311 = por %p309, %p310
      %s312 = ssub.s32 %s29, %s36
      %p313 = scmp.eq.s32.totalorder %s312, 0
      %s315 = sadd.s32 %s314, 1
      %s316 = scalar_select %p313, %s314, %s315
      %p319 = pneg %p313
      %p320 = scmp.eq.s32.totalorder %s21, 1
      %p321 = por %p319, %p320
      %p322 = scmp.ne.s32.totalorder %s314, %s317
      %p323 = scmp.eq.s32.totalorder %s21, 0
      %p324 = por %p322, %p323
      %p325 = scmp.ne.s32.totalorder %s314, %s317
      %p326 = scmp.eq.s32.totalorder %s26, 1
      %p327 = por %p325, %p326
      %p328 = scmp.ne.s32.totalorder %s317, %s318
      %p329 = scmp.eq.s32.totalorder %s26, 0
      %p330 = por %p328, %p329
      %p331 = scmp.ne.s32.totalorder %s317, %s318
      %p332 = scmp.eq.s32.totalorder %s27, 1
      %p333 = por %p331, %p332
      %p335 = scmp.ne.s32.totalorder %s318, %s334
      %p336 = scmp.eq.s32.totalorder %s27, 0
      %p337 = por %p335, %p336
      %s339 = sadd.s32 %s338, 1
      %p342 = scmp.eq.s32.totalorder %s21, 1
      %p343 = scmp.ne.s32.totalorder %s338, %s340
      %p344 = scmp.eq.s32.totalorder %s21, 0
      %p345 = por %p343, %p344
      %p346 = scmp.ne.s32.totalorder %s338, %s340
      %p347 = scmp.eq.s32.totalorder %s26, 1
      %p348 = por %p346, %p347
      %p349 = scmp.ne.s32.totalorder %s340, %s341
      %p350 = scmp.eq.s32.totalorder %s26, 0
      %p351 = por %p349, %p350
      %p352 = scmp.ne.s32.totalorder %s340, %s341
      %p353 = scmp.eq.s32.totalorder %s27, 1
      %p354 = por %p352, %p353
      %p356 = scmp.ne.s32.totalorder %s341, %s355
      %p357 = scmp.eq.s32.totalorder %s27, 0
      %p358 = por %p356, %p357
      %s360 = sadd.s32 %s359, 1
      %p363 = scmp.eq.s32.totalorder %s21, 1
      %p364 = scmp.ne.s32.totalorder %s359, %s361
      %p365 = scmp.eq.s32.totalorder %s21, 0
      %p366 = por %p364, %p365
      %p367 = scmp.ne.s32.totalorder %s359, %s361
      %p368 = scmp.eq.s32.totalorder %s26, 1
      %p369 = por %p367, %p368
      %p370 = scmp.ne.s32.totalorder %s361, %s362
      %p371 = scmp.eq.s32.totalorder %s26, 0
      %p372 = por %p370, %p371
      %p373 = scmp.ne.s32.totalorder %s361, %s362
      %p374 = scmp.eq.s32.totalorder %s27, 1
      %p375 = por %p373, %p374
      %p377 = scmp.ne.s32.totalorder %s362, %s376
      %p378 = scmp.eq.s32.totalorder %s27, 0
      %p379 = por %p377, %p378
      %s380 = ssub.s32 %s28, %s40
      %p381 = scmp.eq.s32.totalorder %s380, 0
      %s383 = sadd.s32 %s382, 1
      %s384 = scalar_select %p381, %s382, %s383
      %p387 = pneg %p381
      %p388 = scmp.eq.s32.totalorder %s21, 1
      %p389 = por %p387, %p388
      %p390 = scmp.ne.s32.totalorder %s382, %s385
      %p391 = scmp.eq.s32.totalorder %s21, 0
      %p392 = por %p390, %p391
      %p393 = scmp.ne.s32.totalorder %s382, %s385
      %p394 = scmp.eq.s32.totalorder %s26, 1
      %p395 = por %p393, %p394
      %p396 = scmp.ne.s32.totalorder %s385, %s386
      %p397 = scmp.eq.s32.totalorder %s26, 0
      %p398 = por %p396, %p397
      %p399 = scmp.ne.s32.totalorder %s385, %s386
      %p400 = scmp.eq.s32.totalorder %s27, 1
      %p401 = por %p399, %p400
      %p403 = scmp.ne.s32.totalorder %s386, %s402
      %p404 = scmp.eq.s32.totalorder %s27, 0
      %p405 = por %p403, %p404
      %p406 = scmp.le.s32.totalorder 1, %s21
      %p407 = scmp.lt.s32.totalorder %s21, 3
      %p408 = pnand %p406, %p407
      %p409 = pneg %p408
      // Predicated region
      $region9: #{tpu_custom_call.1} parent=5 // pred_check
        _
      $region10: #{tpu_custom_call.1} parent=5 // pred_check_branch
        %411 = sbr.rel (%p408) target = $region12
      $region11: #{tpu_custom_call.1} parent=5 // pred_region
        %s412 = ssub.s32 %s21, 1
        // Predicated region
        $region13: #{tpu_custom_call.1} parent=11 // pred_check
          %p413 = pneg %p59
        $region14: #{tpu_custom_call.1} parent=11 // pred_check_branch
          %415 = sbr.rel (%p413) target = $region16
        $region15: #{tpu_custom_call.1} parent=11 // pred_region
          %s416 = smul.u32 2, %s30
          %p417 = scmp.lt.s32.totalorder %s416, 1
          %s418 = scalar_select %p417, %s416, 1
          %s419 = smul.addr %s418, 8
          %s420 = scalar_lea.vmem %s0, %s419
          %s421 = smul.u32 2, %s30
        $region16: #{tpu_custom_call.1} parent=11 // pred_fallthru
          _
        // Predicated region
        $region17: #{tpu_custom_call.1} parent=11 // pred_check
          %p422 = pneg %p85
        $region18: #{tpu_custom_call.1} parent=11 // pred_check_branch
          %424 = sbr.rel (%p422) target = $region20
        $region19: #{tpu_custom_call.1} parent=11 // pred_region
          %s425 = smul.u32 2, %s30
          %p426 = scmp.lt.s32.totalorder %s425, 1
          %s427 = scalar_select %p426, %s425, 1
          %s428 = scalar_lea.vmem %s1, %s427
          %s429 = smul.u32 2, %s30
        $region20: #{tpu_custom_call.1} parent=11 // pred_fallthru
          _
        // Predicated region
        $region21: #{tpu_custom_call.1} parent=11 // pred_check
          %p430 = pneg %p106
        $region22: #{tpu_custom_call.1} parent=11 // pred_check_branch
          %432 = sbr.rel (%p430) target = $region24
        $region23: #{tpu_custom_call.1} parent=11 // pred_region
          _
        $region24: #{tpu_custom_call.1} parent=11 // pred_fallthru
          _
        // Predicated region
        $region25: #{tpu_custom_call.1} parent=11 // pred_check
          %p433 = pneg %p127
        $region26: #{tpu_custom_call.1} parent=11 // pred_check_branch
          %435 = sbr.rel (%p433) target = $region28
        $region27: #{tpu_custom_call.1} parent=11 // pred_region
          _
        $region28: #{tpu_custom_call.1} parent=11 // pred_fallthru
          _
        // Predicated region
        $region29: #{tpu_custom_call.1} parent=11 // pred_check
          %p436 = pneg %p148
        $region30: #{tpu_custom_call.1} parent=11 // pred_check_branch
          %438 = sbr.rel (%p436) target = $region32
        $region31: #{tpu_custom_call.1} parent=11 // pred_region
          _
        $region32: #{tpu_custom_call.1} parent=11 // pred_fallthru
          _
        // Predicated region
        $region33: #{tpu_custom_call.1} parent=11 // pred_check
          %p439 = pneg %p351
        $region34: #{tpu_custom_call.1} parent=11 // pred_check_branch
          %441 = sbr.rel (%p439) target = $region36
        $region35: #{tpu_custom_call.1} parent=11 // pred_region
          _
        $region36: #{tpu_custom_call.1} parent=11 // pred_fallthru
          _
        // Predicated region
        $region37: #{tpu_custom_call.1} parent=11 // pred_check
          %p442 = pneg %p372
        $region38: #{tpu_custom_call.1} parent=11 // pred_check_branch
          %444 = sbr.rel (%p442) target = $region40
        $region39: #{tpu_custom_call.1} parent=11 // pred_region
          _
        $region40: #{tpu_custom_call.1} parent=11 // pred_fallthru
          _
      $region12: #{tpu_custom_call.1} parent=5 // pred_fallthru
        _
      %p445 = scmp.lt.s32.totalorder %s21, 2
      // Predicated region
      $region41: #{tpu_custom_call.1} parent=5 // pred_check
        %p446 = pneg %p445
      $region42: #{tpu_custom_call.1} parent=5 // pred_check_branch
        %448 = sbr.rel (%p446) target = $region44
      $region43: #{tpu_custom_call.1} parent=5 // pred_region
        // Predicated region
        $region45: #{tpu_custom_call.1} parent=43 // pred_check
          %p449 = pneg %p168
        $region46: #{tpu_custom_call.1} parent=43 // pred_check_branch
          %451 = sbr.rel (%p449) target = $region48
        $region47: #{tpu_custom_call.1} parent=43 // pred_region
          %p452 = scmp.lt.s32.totalorder %s29, 1
          %s453 = scalar_select %p452, %s29, 1
          %s454 = smul.addr %s453, 4
          %s455 = smul.addr %s454, 4
          %s456 = scalar_lea.vmem %s5, %s455
        $region48: #{tpu_custom_call.1} parent=43 // pred_fallthru
          _
        // Predicated region
        $region49: #{tpu_custom_call.1} parent=43 // pred_check
          %p457 = pneg %p194
        $region50: #{tpu_custom_call.1} parent=43 // pred_check_branch
          %459 = sbr.rel (%p457) target = $region52
        $region51: #{tpu_custom_call.1} parent=43 // pred_region
          %p460 = scmp.lt.s32.totalorder %s29, 1
          %s461 = scalar_select %p460, %s29, 1
          %s462 = scalar_lea.vmem %s6, %s461
        $region52: #{tpu_custom_call.1} parent=43 // pred_fallthru
          _
        // Predicated region
        $region53: #{tpu_custom_call.1} parent=43 // pred_check
          %p463 = pneg %p220
        $region54: #{tpu_custom_call.1} parent=43 // pred_check_branch
          %465 = sbr.rel (%p463) target = $region56
        $region55: #{tpu_custom_call.1} parent=43 // pred_region
          %p466 = scmp.lt.s32.totalorder %s29, 1
          %s467 = scalar_select %p466, %s29, 1
          %s468 = smul.addr %s467, 4
          %s469 = smul.addr %s468, 4
          %s470 = scalar_lea.vmem %s7, %s469
        $region56: #{tpu_custom_call.1} parent=43 // pred_fallthru
          _
        // Predicated region
        $region57: #{tpu_custom_call.1} parent=43 // pred_check
          %p471 = pneg %p246
        $region58: #{tpu_custom_call.1} parent=43 // pred_check_branch
          %473 = sbr.rel (%p471) target = $region60
        $region59: #{tpu_custom_call.1} parent=43 // pred_region
          %p474 = scmp.lt.s32.totalorder %s29, 1
          %s475 = scalar_select %p474, %s29, 1
          %s476 = smul.addr %s475, 4
          %s477 = smul.addr %s476, 4
          %s478 = scalar_lea.vmem %s8, %s477
        $region60: #{tpu_custom_call.1} parent=43 // pred_fallthru
          _
        // Predicated region
        $region61: #{tpu_custom_call.1} parent=43 // pred_check
          %p479 = pneg %p272
        $region62: #{tpu_custom_call.1} parent=43 // pred_check_branch
          %481 = sbr.rel (%p479) target = $region64
        $region63: #{tpu_custom_call.1} parent=43 // pred_region
          %p482 = scmp.lt.s32.totalorder %s29, 1
          %s483 = scalar_select %p482, %s29, 1
          %s484 = scalar_lea.vmem %s9, %s483
        $region64: #{tpu_custom_call.1} parent=43 // pred_fallthru
          _
        // Predicated region
        $region65: #{tpu_custom_call.1} parent=43 // pred_check
          %p485 = pneg %p298
        $region66: #{tpu_custom_call.1} parent=43 // pred_check_branch
          %487 = sbr.rel (%p485) target = $region68
        $region67: #{tpu_custom_call.1} parent=43 // pred_region
          %p488 = scmp.lt.s32.totalorder %s29, 1
          %s489 = scalar_select %p488, %s29, 1
          %s490 = smul.addr %s489, 8
          %s491 = smul.addr %s490, 4
          %s492 = scalar_lea.vmem %s10, %s491
        $region68: #{tpu_custom_call.1} parent=43 // pred_fallthru
          _
        // Predicated region
        $region69: #{tpu_custom_call.1} parent=43 // pred_check
          %p493 = pneg %p324
        $region70: #{tpu_custom_call.1} parent=43 // pred_check_branch
          %495 = sbr.rel (%p493) target = $region72
        $region71: #{tpu_custom_call.1} parent=43 // pred_region
          %p496 = scmp.lt.s32.totalorder %s29, 1
          %s497 = scalar_select %p496, %s29, 1
          %s498 = smul.addr %s497, 8
          %s499 = scalar_lea.vmem %s11, %s498
        $region72: #{tpu_custom_call.1} parent=43 // pred_fallthru
          _
      $region44: #{tpu_custom_call.1} parent=5 // pred_fallthru
        _
      %p500 = scmp.le.s32.totalorder 1, %s21
      %p501 = scmp.lt.s32.totalorder %s21, 3
      %p502 = pnand %p500, %p501
      %p503 = pneg %p502
      // Predicated region
      $region73: #{tpu_custom_call.1} parent=5 // pred_check
        _
      $region74: #{tpu_custom_call.1} parent=5 // pred_check_branch
        %505 = sbr.rel (%p502) target = $region76
      $region75: #{tpu_custom_call.1} parent=5 // pred_region
        %s506 = ssub.s32 %s21, 1
        %s507 = smul.u32 2, %s30
        %p508 = scmp.lt.s32.totalorder %s507, 1
        %s509 = scalar_select %p508, %s507, 1
        %s510 = smul.addr %s509, 8
        %s511 = scalar_lea.vmem %s0, %s510
        %p512 = pneg %p59
        %p513 = pneg %p56
        %s514 = smul.u32 2, %s30
        %p515 = scmp.lt.s32.totalorder %s514, 1
        %s516 = scalar_select %p515, %s514, 1
        %s517 = scalar_lea.vmem %s1, %s516
        %p518 = pneg %p85
        %p519 = pneg %p82
        %p520 = pneg %p106
        %p521 = pneg %p103
        %p522 = pneg %p127
        %p523 = pneg %p124
        %p524 = pneg %p148
        %p525 = pneg %p145
        %p526 = scmp.lt.s32.totalorder %s31, 1
        %s527 = scalar_select %p526, %s31, 1
        %s528 = smul.addr %s527, 4
        %s529 = smul.addr %s528, 4
        %s530 = scalar_lea.vmem %s5, %s529
        %p531 = pneg %p174
        %p532 = pneg %p171
        %p533 = scmp.lt.s32.totalorder %s31, 1
        %s534 = scalar_select %p533, %s31, 1
        %s535 = scalar_lea.vmem %s6, %s534
        %p536 = pneg %p200
        %p537 = pneg %p197
        %p538 = scmp.lt.s32.totalorder %s31, 1
        %s539 = scalar_select %p538, %s31, 1
        %s540 = smul.addr %s539, 4
        %s541 = smul.addr %s540, 4
        %s542 = scalar_lea.vmem %s7, %s541
        %p543 = pneg %p226
        %p544 = pneg %p223
        %p545 = scmp.lt.s32.totalorder %s31, 1
        %s546 = scalar_select %p545, %s31, 1
        %s547 = smul.addr %s546, 4
        %s548 = smul.addr %s547, 4
        %s549 = scalar_lea.vmem %s8, %s548
        %p550 = pneg %p252
        %p551 = pneg %p249
        %p552 = scmp.lt.s32.totalorder %s31, 1
        %s553 = scalar_select %p552, %s31, 1
        %s554 = scalar_lea.vmem %s9, %s553
        %p555 = pneg %p278
        %p556 = pneg %p275
        %p557 = scmp.lt.s32.totalorder %s31, 1
        %s558 = scalar_select %p557, %s31, 1
        %s559 = smul.addr %s558, 8
        %s560 = smul.addr %s559, 4
        %s561 = scalar_lea.vmem %s10, %s560
        %p562 = pneg %p304
        %p563 = pneg %p301
        %p564 = scmp.lt.s32.totalorder %s31, 1
        %s565 = scalar_select %p564, %s31, 1
        %s566 = smul.addr %s565, 8
        %s567 = scalar_lea.vmem %s11, %s566
        %p568 = pneg %p330
        %p569 = pneg %p327
        %p570 = pneg %p351
        %p571 = pneg %p348
        %p572 = pneg %p372
        %p573 = pneg %p369
        %p574 = pneg %p398
        %p575 = pneg %p395
        %s576 = smul.u32 2, %s30
        %p577 = scmp.lt.s32.totalorder %s576, 1
        %s578 = scalar_select %p577, %s576, 1
        %s579 = smul.addr %s578, 8
        %s580 = scalar_lea.vmem %s0, %s579
        %s581 = smul.u32 2, %s30
        %s582 = smul.u32 2, %s30
        %p583 = scmp.lt.s32.totalorder %s582, 1
        %s584 = scalar_select %p583, %s582, 1
        %s585 = scalar_lea.vmem %s1, %s584
        %s586 = smul.u32 2, %s30
        %p587 = scmp.lt.s32.totalorder %s31, 1
        %s588 = scalar_select %p587, %s31, 1
        %s589 = smul.addr %s588, 4
        %s590 = smul.addr %s589, 4
        %s591 = scalar_lea.vmem %s5, %s590
        %p592 = scmp.lt.s32.totalorder %s31, 1
        %s593 = scalar_select %p592, %s31, 1
        %s594 = scalar_lea.vmem %s6, %s593
        %p595 = scmp.lt.s32.totalorder %s31, 1
        %s596 = scalar_select %p595, %s31, 1
        %s597 = smul.addr %s596, 4
        %s598 = smul.addr %s597, 4
        %s599 = scalar_lea.vmem %s7, %s598
        %p600 = scmp.lt.s32.totalorder %s31, 1
        %s601 = scalar_select %p600, %s31, 1
        %s602 = smul.addr %s601, 4
        %s603 = smul.addr %s602, 4
        %s604 = scalar_lea.vmem %s8, %s603
        %p605 = scmp.lt.s32.totalorder %s31, 1
        %s606 = scalar_select %p605, %s31, 1
        %s607 = scalar_lea.vmem %s9, %s606
        %p608 = scmp.lt.s32.totalorder %s31, 1
        %s609 = scalar_select %p608, %s31, 1
        %s610 = smul.addr %s609, 8
        %s611 = smul.addr %s610, 4
        %s612 = scalar_lea.vmem %s10, %s611
        %p613 = scmp.lt.s32.totalorder %s31, 1
        %s614 = scalar_select %p613, %s31, 1
        %s615 = smul.addr %s614, 8
        %s616 = scalar_lea.vmem %s11, %s615
        %s617 = smul.u32 2, %s30
        %p619 = scmp.eq.s32.totalorder %s31, 0
        // Predicated region
        $region77: #{tpu_custom_call.1} parent=75 // pred_check
          %p620 = pneg %p619
        $region78: #{tpu_custom_call.1} parent=75 // pred_check_branch
          %622 = sbr.rel (%p620) target = $region80
        $region79: #{tpu_custom_call.1} parent=75 // pred_region
          %v623 = vld [vmem:[%s580] sm:$0xff]
          %v624 = vld [vmem:[%s580 + $0x8] sm:$0xff]
          %v625 = vld [vmem:[%s3] sm:$0xf]
          %v626 = vld [vmem:[%s3 + $0x4] sm:$0xf]
          %v627 = vld [vmem:[%s3 + $0x8] sm:$0xf]
          %v628 = vld [vmem:[%s3 + $0xc] sm:$0xf]
          %v629 = vld [vmem:[%s3 + $0x10] sm:$0xf]
          %v630 = vld [vmem:[%s3 + $0x14] sm:$0xf]
          %v631 = vld [vmem:[%s3 + $0x18] sm:$0xf]
          %v632 = vld [vmem:[%s3 + $0x1c] sm:$0xf]
          %v633 = vld [vmem:[%s3 + $0x20] sm:$0xf]
          %v634 = vld [vmem:[%s3 + $0x24] sm:$0xf]
          %v635 = vld [vmem:[%s3 + $0x28] sm:$0xf]
          %v636 = vld [vmem:[%s3 + $0x2c] sm:$0xf]
          %v637 = vld [vmem:[%s3 + $0x30] sm:$0xf]
          %v638 = vld [vmem:[%s3 + $0x34] sm:$0xf]
          %v639 = vld [vmem:[%s3 + $0x38] sm:$0xf]
          %v640 = vld [vmem:[%s3 + $0x3c] sm:$0xf]
          %v641 = vpack.c.bf16 %v624, %v623
          %v642 = vld [vmem:[%s4] sm:$0x1]
          %v644 = vlaneseq
          %v645 = vshrl.u32 %v644, 7
          %v646 = vsub.s32 0, %v645
          %v647 = vrot.slane %v642, %v646
          %v665 = vunpack.c.l.b16 %v625
          %v666 = vunpack.c.l.b16 %v626
          %v667 = vunpack.c.l.b16 %v627
          %v668 = vunpack.c.l.b16 %v628
          %v669 = vunpack.c.l.b16 %v629
          %v670 = vunpack.c.l.b16 %v630
          %v671 = vunpack.c.l.b16 %v631
          %v672 = vunpack.c.l.b16 %v632
          %v673 = vunpack.c.l.b16 %v633
          %v674 = vunpack.c.l.b16 %v634
          %v675 = vunpack.c.l.b16 %v635
          %v676 = vunpack.c.l.b16 %v636
          %v677 = vunpack.c.l.b16 %v637
          %v678 = vunpack.c.l.b16 %v638
          %v679 = vunpack.c.l.b16 %v639
          %v680 = vunpack.c.l.b16 %v640
          %v681 = vpack.c.b16 %v666, %v665
          %v682 = vpack.c.b16 %v668, %v667
          %v683 = vpack.c.b16 %v670, %v669
          %v684 = vpack.c.b16 %v672, %v671
          %v685 = vpack.c.b16 %v674, %v673
          %v686 = vpack.c.b16 %v676, %v675
          %v687 = vpack.c.b16 %v678, %v677
          %v688 = vpack.c.b16 %v680, %v679
          %697 = vmatprep.subr.bf16.mxu0 0
          %698 = vmatpush1.bf16.msra.mxu0 %v688
          %699 = vmatprep.subr.bf16.mxu0 0
          %700 = vmatpush1.bf16.msra.mxu0 %v687
          %701 = vmatprep.subr.bf16.mxu0 0
          %702 = vmatpush1.bf16.msra.mxu0 %v686
          %703 = vmatprep.subr.bf16.mxu0 0
          %704 = vmatpush1.bf16.msra.mxu0 %v685
          %705 = vmatprep.subr.bf16.mxu0 0
          %706 = vmatpush1.bf16.msra.mxu0 %v684
          %707 = vmatprep.subr.bf16.mxu0 0
          %708 = vmatpush1.bf16.msra.mxu0 %v683
          %709 = vmatprep.subr.bf16.mxu0 0
          %710 = vmatpush1.bf16.msra.mxu0 %v682
          %711 = vmatprep.subr.bf16.mxu0 0
          %712 = vmatpush1.bf16.msra.mxu0 %v681
          %713 = vmatprep.subr.bf16.mxu0 0
          %714 = vmatpush2.bf16.msra.mxu0 0
          %715 = vmatprep.subr.bf16.mxu0 0
          %716 = vmatpush2.bf16.msra.mxu0 0
          %717 = vmatprep.subr.bf16.mxu0 0
          %718 = vmatpush2.bf16.msra.mxu0 0
          %719 = vmatprep.subr.bf16.mxu0 0
          %720 = vmatpush2.bf16.msra.mxu0 0
          %721 = vmatprep.subr.bf16.mxu0 0
          %722 = vmatpush2.bf16.msra.mxu0 0
          %723 = vmatprep.subr.bf16.mxu0 0
          %724 = vmatpush2.bf16.msra.mxu0 0
          %725 = vmatprep.subr.bf16.mxu0 0
          %726 = vmatpush2.bf16.msra.mxu0 0
          %727 = vmatprep.subr.bf16.mxu0 0
          %728 = vmatpush2.bf16.msra.mxu0 0
          %729 = vmatprep.mubr.bf16.mxu0 0
          %730 = vmatmul.mubr.bf16.gmra.mxu0 %v641
          %v731 = vpop.f32.mrf.mxu0
          %v732 = vadd.f32 %v647, %v731
          %v733 = vpop.f32.mrf.mxu0
          %v734 = vpop.f32.mrf.mxu0
          %v735 = vadd.f32 %v647, %v734
          %v736 = vpop.f32.mrf.mxu0
          %737 = vdwg.mxu0
          %v738 = vmul.f32 %v732, 5.656854
          %v739 = vmul.f32 %v735, 5.656854
          %v740 = vld [vmem:[%s2] sm:$0xff]
          %v741 = vadd.f32 %v738, %v740
          %v742 = vadd.f32 %v739, %v740
          %vm743 = vcmask 261120
          %744 = vst.msk [vmem:[#allocation2] sm:$0xff] %vm743, %v741
          %745 = vst.msk [vmem:[#allocation2 + $0x8] sm:$0xff] %vm743, %v742
        $region80: #{tpu_custom_call.1} parent=75 // pred_fallthru
          _
        %v746 = vld [vmem:[#allocation2] sm:$0xff]
        %v747 = vld [vmem:[#allocation2 + $0x8] sm:$0xff]
        %v748 = vld [vmem:[%s616] sm:$0x3f]
        %v749 = vld [vmem:[%s591] sm:$0xf]
        %v750 = vld [vmem:[%s591 + $0x4] sm:$0xf]
        %v751 = vld [vmem:[%s591 + $0x8] sm:$0xf]
        %v752 = vld [vmem:[%s591 + $0xc] sm:$0xf]
        %v753 = vpack.c.bf16 %v747, %v746
        %v754 = vld [vmem:[%s594] sm:$0x1]
        %v756 = vlaneseq
        %v757 = vshrl.u32 %v756, 7
        %v758 = vsub.s32 0, %v757
        %v759 = vrot.slane %v754, %v758
        %v765 = vunpack.c.l.b16 %v749
        %v766 = vunpack.c.l.b16 %v750
        %v767 = vunpack.c.l.b16 %v751
        %v768 = vunpack.c.l.b16 %v752
        %v769 = vpack.c.b16 %v766, %v765
        %v770 = vpack.c.b16 %v768, %v767
        %vm773 = vcmask 261120
        %v775 = vsel %vm773, %v753, 0
        %777 = vmatprep.subr.bf16.mxu0 0
        %778 = vmatpush1.bf16.msra.mxu0 0
        %779 = vmatprep.subr.bf16.mxu0 0
        %780 = vmatpush1.bf16.msra.mxu0 0
        %781 = vmatprep.subr.bf16.mxu0 0
        %782 = vmatpush1.bf16.msra.mxu0 0
        %783 = vmatprep.subr.bf16.mxu0 0
        %784 = vmatpush1.bf16.msra.mxu0 0
        %785 = vmatprep.subr.bf16.mxu0 0
        %786 = vmatpush1.bf16.msra.mxu0 0
        %787 = vmatprep.subr.bf16.mxu0 0
        %788 = vmatpush1.bf16.msra.mxu0 0
        %789 = vmatprep.subr.bf16.mxu0 0
        %790 = vmatpush1.bf16.msra.mxu0 %v770
        %791 = vmatprep.subr.bf16.mxu0 0
        %792 = vmatpush1.bf16.msra.mxu0 %v769
        %793 = vmatprep.subr.bf16.mxu0 0
        %794 = vmatpush2.bf16.msra.mxu0 0
        %795 = vmatprep.subr.bf16.mxu0 0
        %796 = vmatpush2.bf16.msra.mxu0 0
        %797 = vmatprep.subr.bf16.mxu0 0
        %798 = vmatpush2.bf16.msra.mxu0 0
        %799 = vmatprep.subr.bf16.mxu0 0
        %800 = vmatpush2.bf16.msra.mxu0 0
        %801 = vmatprep.subr.bf16.mxu0 0
        %802 = vmatpush2.bf16.msra.mxu0 0
        %803 = vmatprep.subr.bf16.mxu0 0
        %804 = vmatpush2.bf16.msra.mxu0 0
        %805 = vmatprep.subr.bf16.mxu0 0
        %806 = vmatpush2.bf16.msra.mxu0 0
        %807 = vmatprep.subr.bf16.mxu0 0
        %808 = vmatpush2.bf16.msra.mxu0 0
        %809 = vmatprep.mubr.bf16.mxu0 0
        %810 = vmatmul.mubr.bf16.gmra.mxu0 %v775
        %v811 = vpop.f32.mrf.mxu0
        %v812 = vadd.f32 %v759, %v811
        %v813 = vpop.f32.mrf.mxu0
        %v814 = vpop.f32.mrf.mxu0
        %v815 = vadd.f32 %v759, %v814
        %v816 = vpop.f32.mrf.mxu0
        %817 = vdwg.mxu0
        %820 = vrot.lane.b32.xlu0 %v812, 120
        %v821 = vpop.permute.xlu0 %820
        %822 = vrot.lane.b32.xlu0 %v815, 120
        %v823 = vpop.permute.xlu0 %822
        %826 = vrot.lane.b32.xlu0 %v812, 112
        %v827 = vpop.permute.xlu0 %826
        %828 = vrot.lane.b32.xlu0 %v815, 112
        %v829 = vpop.permute.xlu0 %828
        %832 = vrot.lane.b32.xlu0 %v812, 104
        %v833 = vpop.permute.xlu0 %832
        %834 = vrot.lane.b32.xlu0 %v815, 104
        %v835 = vpop.permute.xlu0 %834
        %v838 = vcombine.low %v812, %v827
        %v839 = vcombine.high %v812, %v827
        %v841 = vunpack.c.l.s4 1983009808
        %v842 = vunpack.c.0.s8 %v841
        %v843 = vlaneseq
        %v844 = vshrl.u32 %v843, 7
        %v845 = vsub.s32 %v842, %v844
        %v846 = vrot.slane %v838, %v845
        %v848 = vunpack.c.l.s4 1983009808
        %v849 = vunpack.c.0.s8 %v848
        %v850 = vlaneseq
        %v851 = vshrl.u32 %v850, 7
        %v852 = vsub.s32 %v849, %v851
        %v853 = vrot.slane %v839, %v852
        %v854 = vcombine.low %v821, %v833
        %v855 = vcombine.high %v821, %v833
        %v857 = vunpack.c.l.s4 1983009808
        %v858 = vunpack.c.0.s8 %v857
        %v859 = vlaneseq
        %v860 = vshrl.u32 %v859, 7
        %v861 = vsub.s32 %v858, %v860
        %v862 = vrot.slane %v854, %v861
        %v864 = vunpack.c.l.s4 1983009808
        %v865 = vunpack.c.0.s8 %v864
        %v866 = vlaneseq
        %v867 = vshrl.u32 %v866, 7
        %v868 = vsub.s32 %v865, %v867
        %v869 = vrot.slane %v855, %v868
        %v870 = vcombine.low %v846, %v862
        %v871 = vcombine.high %v846, %v862
        %v873 = vunpack.c.l.s4 1934713408
        %v874 = vunpack.c.0.s8 %v873
        %v875 = vlaneseq
        %v876 = vshrl.u32 %v875, 7
        %v877 = vsub.s32 %v874, %v876
        %v878 = vrot.slane %v870, %v877
        %v880 = vunpack.c.l.s4 1934713408
        %v881 = vunpack.c.0.s8 %v880
        %v882 = vlaneseq
        %v883 = vshrl.u32 %v882, 7
        %v884 = vsub.s32 %v881, %v883
        %v885 = vrot.slane %v871, %v884
        %v886 = vcombine.low %v853, %v869
        %v887 = vcombine.high %v853, %v869
        %v889 = vunpack.c.l.s4 1934713408
        %v890 = vunpack.c.0.s8 %v889
        %v891 = vlaneseq
        %v892 = vshrl.u32 %v891, 7
        %v893 = vsub.s32 %v890, %v892
        %v894 = vrot.slane %v886, %v893
        %v896 = vunpack.c.l.s4 1934713408
        %v897 = vunpack.c.0.s8 %v896
        %v898 = vlaneseq
        %v899 = vshrl.u32 %v898, 7
        %v900 = vsub.s32 %v897, %v899
        %v901 = vrot.slane %v887, %v900
        %v902 = vcombine.high %v878, 0.0
        %v903 = vcombine.high %v885, 0.0
        %v904 = vcombine.high %v894, 0.0
        %v905 = vcombine.high %v901, 0.0
        %v906 = vcombine.low %v815, %v829
        %v907 = vcombine.high %v815, %v829
        %v909 = vunpack.c.l.s4 1983009808
        %v910 = vunpack.c.0.s8 %v909
        %v911 = vlaneseq
        %v912 = vshrl.u32 %v911, 7
        %v913 = vsub.s32 %v910, %v912
        %v914 = vrot.slane %v906, %v913
        %v916 = vunpack.c.l.s4 1983009808
        %v917 = vunpack.c.0.s8 %v916
        %v918 = vlaneseq
        %v919 = vshrl.u32 %v918, 7
        %v920 = vsub.s32 %v917, %v919
        %v921 = vrot.slane %v907, %v920
        %v922 = vcombine.low %v823, %v835
        %v923 = vcombine.high %v823, %v835
        %v925 = vunpack.c.l.s4 1983009808
        %v926 = vunpack.c.0.s8 %v925
        %v927 = vlaneseq
        %v928 = vshrl.u32 %v927, 7
        %v929 = vsub.s32 %v926, %v928
        %v930 = vrot.slane %v922, %v929
        %v932 = vunpack.c.l.s4 1983009808
        %v933 = vunpack.c.0.s8 %v932
        %v934 = vlaneseq
        %v935 = vshrl.u32 %v934, 7
        %v936 = vsub.s32 %v933, %v935
        %v937 = vrot.slane %v923, %v936
        %v938 = vcombine.low %v914, %v930
        %v939 = vcombine.high %v914, %v930
        %v941 = vunpack.c.l.s4 1934713408
        %v942 = vunpack.c.0.s8 %v941
        %v943 = vlaneseq
        %v944 = vshrl.u32 %v943, 7
        %v945 = vsub.s32 %v942, %v944
        %v946 = vrot.slane %v938, %v945
        %v948 = vunpack.c.l.s4 1934713408
        %v949 = vunpack.c.0.s8 %v948
        %v950 = vlaneseq
        %v951 = vshrl.u32 %v950, 7
        %v952 = vsub.s32 %v949, %v951
        %v953 = vrot.slane %v939, %v952
        %v954 = vcombine.low %v921, %v937
        %v955 = vcombine.high %v921, %v937
        %v957 = vunpack.c.l.s4 1934713408
        %v958 = vunpack.c.0.s8 %v957
        %v959 = vlaneseq
        %v960 = vshrl.u32 %v959, 7
        %v961 = vsub.s32 %v958, %v960
        %v962 = vrot.slane %v954, %v961
        %v964 = vunpack.c.l.s4 1934713408
        %v965 = vunpack.c.0.s8 %v964
        %v966 = vlaneseq
        %v967 = vshrl.u32 %v966, 7
        %v968 = vsub.s32 %v965, %v967
        %v969 = vrot.slane %v955, %v968
        %v970 = vcombine.high %v946, 0.0
        %v971 = vcombine.high %v953, 0.0
        %v972 = vcombine.high %v962, 0.0
        %v973 = vcombine.high %v969, 0.0
        %v974 = vcombine.low %v878, %v885
        %v976 = vunpack.c.l.s4 1983009808
        %v977 = vunpack.c.0.s8 %v976
        %v978 = vlaneseq
        %v979 = vshrl.u32 %v978, 7
        %v980 = vsub.s32 %v977, %v979
        %v981 = vrot.slane %v974, %v980
        %v982 = vcombine.low %v902, %v903
        %v984 = vunpack.c.l.s4 1983009808
        %v985 = vunpack.c.0.s8 %v984
        %v986 = vlaneseq
        %v987 = vshrl.u32 %v986, 7
        %v988 = vsub.s32 %v985, %v987
        %v989 = vrot.slane %v982, %v988
        %v990 = vcombine.low %v894, %v901
        %v992 = vunpack.c.l.s4 1983009808
        %v993 = vunpack.c.0.s8 %v992
        %v994 = vlaneseq
        %v995 = vshrl.u32 %v994, 7
        %v996 = vsub.s32 %v993, %v995
        %v997 = vrot.slane %v990, %v996
        %v998 = vcombine.low %v904, %v905
        %v1000 = vunpack.c.l.s4 1983009808
        %v1001 = vunpack.c.0.s8 %v1000
        %v1002 = vlaneseq
        %v1003 = vshrl.u32 %v1002, 7
        %v1004 = vsub.s32 %v1001, %v1003
        %v1005 = vrot.slane %v998, %v1004
        %v1006 = vcombine.low %v981, %v989
        %v1007 = vcombine.high %v981, %v989
        %v1009 = vunpack.c.l.s4 1934713408
        %v1010 = vunpack.c.0.s8 %v1009
        %v1011 = vlaneseq
        %v1012 = vshrl.u32 %v1011, 7
        %v1013 = vsub.s32 %v1010, %v1012
        %v1014 = vrot.slane %v1006, %v1013
        %v1016 = vunpack.c.l.s4 1934713408
        %v1017 = vunpack.c.0.s8 %v1016
        %v1018 = vlaneseq
        %v1019 = vshrl.u32 %v1018, 7
        %v1020 = vsub.s32 %v1017, %v1019
        %v1021 = vrot.slane %v1007, %v1020
        %v1022 = vcombine.low %v997, %v1005
        %v1023 = vcombine.high %v997, %v1005
        %v1025 = vunpack.c.l.s4 1934713408
        %v1026 = vunpack.c.0.s8 %v1025
        %v1027 = vlaneseq
        %v1028 = vshrl.u32 %v1027, 7
        %v1029 = vsub.s32 %v1026, %v1028
        %v1030 = vrot.slane %v1022, %v1029
        %v1032 = vunpack.c.l.s4 1934713408
        %v1033 = vunpack.c.0.s8 %v1032
        %v1034 = vlaneseq
        %v1035 = vshrl.u32 %v1034, 7
        %v1036 = vsub.s32 %v1033, %v1035
        %v1037 = vrot.slane %v1023, %v1036
        %v1038 = vcombine.low %v1014, %v1030
        %v1039 = vcombine.high %v1014, %v1030
        %v1040 = vcombine.low %v1021, %v1037
        %v1041 = vcombine.high %v1021, %v1037
        %v1042 = vcombine.low %v946, %v953
        %v1044 = vunpack.c.l.s4 1983009808
        %v1045 = vunpack.c.0.s8 %v1044
        %v1046 = vlaneseq
        %v1047 = vshrl.u32 %v1046, 7
        %v1048 = vsub.s32 %v1045, %v1047
        %v1049 = vrot.slane %v1042, %v1048
        %v1050 = vcombine.low %v970, %v971
        %v1052 = vunpack.c.l.s4 1983009808
        %v1053 = vunpack.c.0.s8 %v1052
        %v1054 = vlaneseq
        %v1055 = vshrl.u32 %v1054, 7
        %v1056 = vsub.s32 %v1053, %v1055
        %v1057 = vrot.slane %v1050, %v1056
        %v1058 = vcombine.low %v962, %v969
        %v1060 = vunpack.c.l.s4 1983009808
        %v1061 = vunpack.c.0.s8 %v1060
        %v1062 = vlaneseq
        %v1063 = vshrl.u32 %v1062, 7
        %v1064 = vsub.s32 %v1061, %v1063
        %v1065 = vrot.slane %v1058, %v1064
        %v1066 = vcombine.low %v972, %v973
        %v1068 = vunpack.c.l.s4 1983009808
        %v1069 = vunpack.c.0.s8 %v1068
        %v1070 = vlaneseq
        %v1071 = vshrl.u32 %v1070, 7
        %v1072 = vsub.s32 %v1069, %v1071
        %v1073 = vrot.slane %v1066, %v1072
        %v1074 = vcombine.low %v1049, %v1057
        %v1075 = vcombine.high %v1049, %v1057
        %v1077 = vunpack.c.l.s4 1934713408
        %v1078 = vunpack.c.0.s8 %v1077
        %v1079 = vlaneseq
        %v1080 = vshrl.u32 %v1079, 7
        %v1081 = vsub.s32 %v1078, %v1080
        %v1082 = vrot.slane %v1074, %v1081
        %v1084 = vunpack.c.l.s4 1934713408
        %v1085 = vunpack.c.0.s8 %v1084
        %v1086 = vlaneseq
        %v1087 = vshrl.u32 %v1086, 7
        %v1088 = vsub.s32 %v1085, %v1087
        %v1089 = vrot.slane %v1075, %v1088
        %v1090 = vcombine.low %v1065, %v1073
        %v1091 = vcombine.high %v1065, %v1073
        %v1093 = vunpack.c.l.s4 1934713408
        %v1094 = vunpack.c.0.s8 %v1093
        %v1095 = vlaneseq
        %v1096 = vshrl.u32 %v1095, 7
        %v1097 = vsub.s32 %v1094, %v1096
        %v1098 = vrot.slane %v1090, %v1097
        %v1100 = vunpack.c.l.s4 1934713408
        %v1101 = vunpack.c.0.s8 %v1100
        %v1102 = vlaneseq
        %v1103 = vshrl.u32 %v1102, 7
        %v1104 = vsub.s32 %v1101, %v1103
        %v1105 = vrot.slane %v1091, %v1104
        %v1106 = vcombine.low %v1082, %v1098
        %v1107 = vcombine.high %v1082, %v1098
        %v1108 = vcombine.low %v1089, %v1105
        %v1109 = vcombine.high %v1089, %v1105
        %v1110 = vpack.c.bf16 %v1038, %v1038
        %v1111 = vpack.c.bf16 %v1039, %v1039
        %v1112 = vpack.c.bf16 %v1040, %v1040
        %v1113 = vpack.c.bf16 %v1041, %v1041
        %v1114 = vpack.c.bf16 %v1106, %v1106
        %v1115 = vpack.c.bf16 %v1107, %v1107
        %v1116 = vpack.c.bf16 %v1108, %v1108
        %v1117 = vpack.c.bf16 %v1109, %v1109
        %1118 = vrot.lane.b32.xlu0 %v812, 96
        %v1119 = vpop.permute.xlu0 %1118
        %1120 = vrot.lane.b32.xlu0 %v815, 96
        %v1121 = vpop.permute.xlu0 %1120
        %1122 = vrot.lane.b32.xlu0 %v821, 96
        %v1123 = vpop.permute.xlu0 %1122
        %1124 = vrot.lane.b32.xlu0 %v823, 96
        %v1125 = vpop.permute.xlu0 %1124
        %1126 = vrot.lane.b32.xlu0 %v827, 96
        %v1127 = vpop.permute.xlu0 %1126
        %1128 = vrot.lane.b32.xlu0 %v829, 96
        %v1129 = vpop.permute.xlu0 %1128
        %1130 = vrot.lane.b32.xlu0 %v833, 96
        %v1131 = vpop.permute.xlu0 %1130
        %1132 = vrot.lane.b32.xlu0 %v835, 96
        %v1133 = vpop.permute.xlu0 %1132
        %v1142 = vcombine.low %v1119, %v1127
        %v1143 = vcombine.high %v1119, %v1127
        %v1145 = vunpack.c.l.s4 1983009808
        %v1146 = vunpack.c.0.s8 %v1145
        %v1147 = vlaneseq
        %v1148 = vshrl.u32 %v1147, 7
        %v1149 = vsub.s32 %v1146, %v1148
        %v1150 = vrot.slane %v1142, %v1149
        %v1152 = vunpack.c.l.s4 1983009808
        %v1153 = vunpack.c.0.s8 %v1152
        %v1154 = vlaneseq
        %v1155 = vshrl.u32 %v1154, 7
        %v1156 = vsub.s32 %v1153, %v1155
        %v1157 = vrot.slane %v1143, %v1156
        %v1158 = vcombine.low %v1123, %v1131
        %v1159 = vcombine.high %v1123, %v1131
        %v1161 = vunpack.c.l.s4 1983009808
        %v1162 = vunpack.c.0.s8 %v1161
        %v1163 = vlaneseq
        %v1164 = vshrl.u32 %v1163, 7
        %v1165 = vsub.s32 %v1162, %v1164
        %v1166 = vrot.slane %v1158, %v1165
        %v1168 = vunpack.c.l.s4 1983009808
        %v1169 = vunpack.c.0.s8 %v1168
        %v1170 = vlaneseq
        %v1171 = vshrl.u32 %v1170, 7
        %v1172 = vsub.s32 %v1169, %v1171
        %v1173 = vrot.slane %v1159, %v1172
        %v1174 = vcombine.low %v1150, %v1166
        %v1175 = vcombine.high %v1150, %v1166
        %v1177 = vunpack.c.l.s4 1934713408
        %v1178 = vunpack.c.0.s8 %v1177
        %v1179 = vlaneseq
        %v1180 = vshrl.u32 %v1179, 7
        %v1181 = vsub.s32 %v1178, %v1180
        %v1182 = vrot.slane %v1174, %v1181
        %v1184 = vunpack.c.l.s4 1934713408
        %v1185 = vunpack.c.0.s8 %v1184
        %v1186 = vlaneseq
        %v1187 = vshrl.u32 %v1186, 7
        %v1188 = vsub.s32 %v1185, %v1187
        %v1189 = vrot.slane %v1175, %v1188
        %v1190 = vcombine.low %v1157, %v1173
        %v1191 = vcombine.high %v1157, %v1173
        %v1193 = vunpack.c.l.s4 1934713408
        %v1194 = vunpack.c.0.s8 %v1193
        %v1195 = vlaneseq
        %v1196 = vshrl.u32 %v1195, 7
        %v1197 = vsub.s32 %v1194, %v1196
        %v1198 = vrot.slane %v1190, %v1197
        %v1200 = vunpack.c.l.s4 1934713408
        %v1201 = vunpack.c.0.s8 %v1200
        %v1202 = vlaneseq
        %v1203 = vshrl.u32 %v1202, 7
        %v1204 = vsub.s32 %v1201, %v1203
        %v1205 = vrot.slane %v1191, %v1204
        %v1206 = vcombine.high %v1182, 0.0
        %v1207 = vcombine.high %v1189, 0.0
        %v1208 = vcombine.high %v1198, 0.0
        %v1209 = vcombine.high %v1205, 0.0
        %v1210 = vcombine.low %v1121, %v1129
        %v1211 = vcombine.high %v1121, %v1129
        %v1213 = vunpack.c.l.s4 1983009808
        %v1214 = vunpack.c.0.s8 %v1213
        %v1215 = vlaneseq
        %v1216 = vshrl.u32 %v1215, 7
        %v1217 = vsub.s32 %v1214, %v1216
        %v1218 = vrot.slane %v1210, %v1217
        %v1220 = vunpack.c.l.s4 1983009808
        %v1221 = vunpack.c.0.s8 %v1220
        %v1222 = vlaneseq
        %v1223 = vshrl.u32 %v1222, 7
        %v1224 = vsub.s32 %v1221, %v1223
        %v1225 = vrot.slane %v1211, %v1224
        %v1226 = vcombine.low %v1125, %v1133
        %v1227 = vcombine.high %v1125, %v1133
        %v1229 = vunpack.c.l.s4 1983009808
        %v1230 = vunpack.c.0.s8 %v1229
        %v1231 = vlaneseq
        %v1232 = vshrl.u32 %v1231, 7
        %v1233 = vsub.s32 %v1230, %v1232
        %v1234 = vrot.slane %v1226, %v1233
        %v1236 = vunpack.c.l.s4 1983009808
        %v1237 = vunpack.c.0.s8 %v1236
        %v1238 = vlaneseq
        %v1239 = vshrl.u32 %v1238, 7
        %v1240 = vsub.s32 %v1237, %v1239
        %v1241 = vrot.slane %v1227, %v1240
        %v1242 = vcombine.low %v1218, %v1234
        %v1243 = vcombine.high %v1218, %v1234
        %v1245 = vunpack.c.l.s4 1934713408
        %v1246 = vunpack.c.0.s8 %v1245
        %v1247 = vlaneseq
        %v1248 = vshrl.u32 %v1247, 7
        %v1249 = vsub.s32 %v1246, %v1248
        %v1250 = vrot.slane %v1242, %v1249
        %v1252 = vunpack.c.l.s4 1934713408
        %v1253 = vunpack.c.0.s8 %v1252
        %v1254 = vlaneseq
        %v1255 = vshrl.u32 %v1254, 7
        %v1256 = vsub.s32 %v1253, %v1255
        %v1257 = vrot.slane %v1243, %v1256
        %v1258 = vcombine.low %v1225, %v1241
        %v1259 = vcombine.high %v1225, %v1241
        %v1261 = vunpack.c.l.s4 1934713408
        %v1262 = vunpack.c.0.s8 %v1261
        %v1263 = vlaneseq
        %v1264 = vshrl.u32 %v1263, 7
        %v1265 = vsub.s32 %v1262, %v1264
        %v1266 = vrot.slane %v1258, %v1265
        %v1268 = vunpack.c.l.s4 1934713408
        %v1269 = vunpack.c.0.s8 %v1268
        %v1270 = vlaneseq
        %v1271 = vshrl.u32 %v1270, 7
        %v1272 = vsub.s32 %v1269, %v1271
        %v1273 = vrot.slane %v1259, %v1272
        %v1274 = vcombine.high %v1250, 0.0
        %v1275 = vcombine.high %v1257, 0.0
        %v1276 = vcombine.high %v1266, 0.0
        %v1277 = vcombine.high %v1273, 0.0
        %v1278 = vcombine.low %v1182, %v1189
        %v1280 = vunpack.c.l.s4 1983009808
        %v1281 = vunpack.c.0.s8 %v1280
        %v1282 = vlaneseq
        %v1283 = vshrl.u32 %v1282, 7
        %v1284 = vsub.s32 %v1281, %v1283
        %v1285 = vrot.slane %v1278, %v1284
        %v1286 = vcombine.low %v1206, %v1207
        %v1288 = vunpack.c.l.s4 1983009808
        %v1289 = vunpack.c.0.s8 %v1288
        %v1290 = vlaneseq
        %v1291 = vshrl.u32 %v1290, 7
        %v1292 = vsub.s32 %v1289, %v1291
        %v1293 = vrot.slane %v1286, %v1292
        %v1294 = vcombine.low %v1198, %v1205
        %v1296 = vunpack.c.l.s4 1983009808
        %v1297 = vunpack.c.0.s8 %v1296
        %v1298 = vlaneseq
        %v1299 = vshrl.u32 %v1298, 7
        %v1300 = vsub.s32 %v1297, %v1299
        %v1301 = vrot.slane %v1294, %v1300
        %v1302 = vcombine.low %v1208, %v1209
        %v1304 = vunpack.c.l.s4 1983009808
        %v1305 = vunpack.c.0.s8 %v1304
        %v1306 = vlaneseq
        %v1307 = vshrl.u32 %v1306, 7
        %v1308 = vsub.s32 %v1305, %v1307
        %v1309 = vrot.slane %v1302, %v1308
        %v1310 = vcombine.low %v1285, %v1293
        %v1311 = vcombine.high %v1285, %v1293
        %v1313 = vunpack.c.l.s4 1934713408
        %v1314 = vunpack.c.0.s8 %v1313
        %v1315 = vlaneseq
        %v1316 = vshrl.u32 %v1315, 7
        %v1317 = vsub.s32 %v1314, %v1316
        %v1318 = vrot.slane %v1310, %v1317
        %v1320 = vunpack.c.l.s4 1934713408
        %v1321 = vunpack.c.0.s8 %v1320
        %v1322 = vlaneseq
        %v1323 = vshrl.u32 %v1322, 7
        %v1324 = vsub.s32 %v1321, %v1323
        %v1325 = vrot.slane %v1311, %v1324
        %v1326 = vcombine.low %v1301, %v1309
        %v1327 = vcombine.high %v1301, %v1309
        %v1329 = vunpack.c.l.s4 1934713408
        %v1330 = vunpack.c.0.s8 %v1329
        %v1331 = vlaneseq
        %v1332 = vshrl.u32 %v1331, 7
        %v1333 = vsub.s32 %v1330, %v1332
        %v1334 = vrot.slane %v1326, %v1333
        %v1336 = vunpack.c.l.s4 1934713408
        %v1337 = vunpack.c.0.s8 %v1336
        %v1338 = vlaneseq
        %v1339 = vshrl.u32 %v1338, 7
        %v1340 = vsub.s32 %v1337, %v1339
        %v1341 = vrot.slane %v1327, %v1340
        %v1342 = vcombine.low %v1318, %v1334
        %v1343 = vcombine.high %v1318, %v1334
        %v1344 = vcombine.low %v1325, %v1341
        %v1345 = vcombine.high %v1325, %v1341
        %v1346 = vcombine.low %v1250, %v1257
        %v1348 = vunpack.c.l.s4 1983009808
        %v1349 = vunpack.c.0.s8 %v1348
        %v1350 = vlaneseq
        %v1351 = vshrl.u32 %v1350, 7
        %v1352 = vsub.s32 %v1349, %v1351
        %v1353 = vrot.slane %v1346, %v1352
        %v1354 = vcombine.low %v1274, %v1275
        %v1356 = vunpack.c.l.s4 1983009808
        %v1357 = vunpack.c.0.s8 %v1356
        %v1358 = vlaneseq
        %v1359 = vshrl.u32 %v1358, 7
        %v1360 = vsub.s32 %v1357, %v1359
        %v1361 = vrot.slane %v1354, %v1360
        %v1362 = vcombine.low %v1266, %v1273
        %v1364 = vunpack.c.l.s4 1983009808
        %v1365 = vunpack.c.0.s8 %v1364
        %v1366 = vlaneseq
        %v1367 = vshrl.u32 %v1366, 7
        %v1368 = vsub.s32 %v1365, %v1367
        %v1369 = vrot.slane %v1362, %v1368
        %v1370 = vcombine.low %v1276, %v1277
        %v1372 = vunpack.c.l.s4 1983009808
        %v1373 = vunpack.c.0.s8 %v1372
        %v1374 = vlaneseq
        %v1375 = vshrl.u32 %v1374, 7
        %v1376 = vsub.s32 %v1373, %v1375
        %v1377 = vrot.slane %v1370, %v1376
        %v1378 = vcombine.low %v1353, %v1361
        %v1379 = vcombine.high %v1353, %v1361
        %v1381 = vunpack.c.l.s4 1934713408
        %v1382 = vunpack.c.0.s8 %v1381
        %v1383 = vlaneseq
        %v1384 = vshrl.u32 %v1383, 7
        %v1385 = vsub.s32 %v1382, %v1384
        %v1386 = vrot.slane %v1378, %v1385
        %v1388 = vunpack.c.l.s4 1934713408
        %v1389 = vunpack.c.0.s8 %v1388
        %v1390 = vlaneseq
        %v1391 = vshrl.u32 %v1390, 7
        %v1392 = vsub.s32 %v1389, %v1391
        %v1393 = vrot.slane %v1379, %v1392
        %v1394 = vcombine.low %v1369, %v1377
        %v1395 = vcombine.high %v1369, %v1377
        %v1397 = vunpack.c.l.s4 1934713408
        %v1398 = vunpack.c.0.s8 %v1397
        %v1399 = vlaneseq
        %v1400 = vshrl.u32 %v1399, 7
        %v1401 = vsub.s32 %v1398, %v1400
        %v1402 = vrot.slane %v1394, %v1401
        %v1404 = vunpack.c.l.s4 1934713408
        %v1405 = vunpack.c.0.s8 %v1404
        %v1406 = vlaneseq
        %v1407 = vshrl.u32 %v1406, 7
        %v1408 = vsub.s32 %v1405, %v1407
        %v1409 = vrot.slane %v1395, %v1408
        %v1410 = vcombine.low %v1386, %v1402
        %v1411 = vcombine.high %v1386, %v1402
        %v1412 = vcombine.low %v1393, %v1409
        %v1413 = vcombine.high %v1393, %v1409
        %v1414 = vpack.c.bf16 %v1342, %v1342
        %v1415 = vpack.c.bf16 %v1343, %v1343
        %v1416 = vpack.c.bf16 %v1344, %v1344
        %v1417 = vpack.c.bf16 %v1345, %v1345
        %v1418 = vpack.c.bf16 %v1410, %v1410
        %v1419 = vpack.c.bf16 %v1411, %v1411
        %v1420 = vpack.c.bf16 %v1412, %v1412
        %v1421 = vpack.c.bf16 %v1413, %v1413
        %1422 = vrot.lane.b32.xlu0 %v812, 64
        %v1423 = vpop.permute.xlu0 %1422
        %1424 = vrot.lane.b32.xlu0 %v815, 64
        %v1425 = vpop.permute.xlu0 %1424
        %1426 = vrot.lane.b32.xlu0 %v821, 64
        %v1427 = vpop.permute.xlu0 %1426
        %1428 = vrot.lane.b32.xlu0 %v823, 64
        %v1429 = vpop.permute.xlu0 %1428
        %1430 = vrot.lane.b32.xlu0 %v827, 64
        %v1431 = vpop.permute.xlu0 %1430
        %1432 = vrot.lane.b32.xlu0 %v829, 64
        %v1433 = vpop.permute.xlu0 %1432
        %1434 = vrot.lane.b32.xlu0 %v833, 64
        %v1435 = vpop.permute.xlu0 %1434
        %1436 = vrot.lane.b32.xlu0 %v835, 64
        %v1437 = vpop.permute.xlu0 %1436
        %v1446 = vcombine.low %v1423, %v1431
        %v1447 = vcombine.high %v1423, %v1431
        %v1449 = vunpack.c.l.s4 1983009808
        %v1450 = vunpack.c.0.s8 %v1449
        %v1451 = vlaneseq
        %v1452 = vshrl.u32 %v1451, 7
        %v1453 = vsub.s32 %v1450, %v1452
        %v1454 = vrot.slane %v1446, %v1453
        %v1456 = vunpack.c.l.s4 1983009808
        %v1457 = vunpack.c.0.s8 %v1456
        %v1458 = vlaneseq
        %v1459 = vshrl.u32 %v1458, 7
        %v1460 = vsub.s32 %v1457, %v1459
        %v1461 = vrot.slane %v1447, %v1460
        %v1462 = vcombine.low %v1427, %v1435
        %v1463 = vcombine.high %v1427, %v1435
        %v1465 = vunpack.c.l.s4 1983009808
        %v1466 = vunpack.c.0.s8 %v1465
        %v1467 = vlaneseq
        %v1468 = vshrl.u32 %v1467, 7
        %v1469 = vsub.s32 %v1466, %v1468
        %v1470 = vrot.slane %v1462, %v1469
        %v1472 = vunpack.c.l.s4 1983009808
        %v1473 = vunpack.c.0.s8 %v1472
        %v1474 = vlaneseq
        %v1475 = vshrl.u32 %v1474, 7
        %v1476 = vsub.s32 %v1473, %v1475
        %v1477 = vrot.slane %v1463, %v1476
        %v1478 = vcombine.low %v1454, %v1470
        %v1479 = vcombine.high %v1454, %v1470
        %v1481 = vunpack.c.l.s4 1934713408
        %v1482 = vunpack.c.0.s8 %v1481
        %v1483 = vlaneseq
        %v1484 = vshrl.u32 %v1483, 7
        %v1485 = vsub.s32 %v1482, %v1484
        %v1486 = vrot.slane %v1478, %v1485
        %v1488 = vunpack.c.l.s4 1934713408
        %v1489 = vunpack.c.0.s8 %v1488
        %v1490 = vlaneseq
        %v1491 = vshrl.u32 %v1490, 7
        %v1492 = vsub.s32 %v1489, %v1491
        %v1493 = vrot.slane %v1479, %v1492
        %v1494 = vcombine.low %v1461, %v1477
        %v1495 = vcombine.high %v1461, %v1477
        %v1497 = vunpack.c.l.s4 1934713408
        %v1498 = vunpack.c.0.s8 %v1497
        %v1499 = vlaneseq
        %v1500 = vshrl.u32 %v1499, 7
        %v1501 = vsub.s32 %v1498, %v1500
        %v1502 = vrot.slane %v1494, %v1501
        %v1504 = vunpack.c.l.s4 1934713408
        %v1505 = vunpack.c.0.s8 %v1504
        %v1506 = vlaneseq
        %v1507 = vshrl.u32 %v1506, 7
        %v1508 = vsub.s32 %v1505, %v1507
        %v1509 = vrot.slane %v1495, %v1508
        %v1510 = vcombine.high %v1486, 0.0
        %v1511 = vcombine.high %v1493, 0.0
        %v1512 = vcombine.high %v1502, 0.0
        %v1513 = vcombine.high %v1509, 0.0
        %v1514 = vcombine.low %v1425, %v1433
        %v1515 = vcombine.high %v1425, %v1433
        %v1517 = vunpack.c.l.s4 1983009808
        %v1518 = vunpack.c.0.s8 %v1517
        %v1519 = vlaneseq
        %v1520 = vshrl.u32 %v1519, 7
        %v1521 = vsub.s32 %v1518, %v1520
        %v1522 = vrot.slane %v1514, %v1521
        %v1524 = vunpack.c.l.s4 1983009808
        %v1525 = vunpack.c.0.s8 %v1524
        %v1526 = vlaneseq
        %v1527 = vshrl.u32 %v1526, 7
        %v1528 = vsub.s32 %v1525, %v1527
        %v1529 = vrot.slane %v1515, %v1528
        %v1530 = vcombine.low %v1429, %v1437
        %v1531 = vcombine.high %v1429, %v1437
        %v1533 = vunpack.c.l.s4 1983009808
        %v1534 = vunpack.c.0.s8 %v1533
        %v1535 = vlaneseq
        %v1536 = vshrl.u32 %v1535, 7
        %v1537 = vsub.s32 %v1534, %v1536
        %v1538 = vrot.slane %v1530, %v1537
        %v1540 = vunpack.c.l.s4 1983009808
        %v1541 = vunpack.c.0.s8 %v1540
        %v1542 = vlaneseq
        %v1543 = vshrl.u32 %v1542, 7
        %v1544 = vsub.s32 %v1541, %v1543
        %v1545 = vrot.slane %v1531, %v1544
        %v1546 = vcombine.low %v1522, %v1538
        %v1547 = vcombine.high %v1522, %v1538
        %v1549 = vunpack.c.l.s4 1934713408
        %v1550 = vunpack.c.0.s8 %v1549
        %v1551 = vlaneseq
        %v1552 = vshrl.u32 %v1551, 7
        %v1553 = vsub.s32 %v1550, %v1552
        %v1554 = vrot.slane %v1546, %v1553
        %v1556 = vunpack.c.l.s4 1934713408
        %v1557 = vunpack.c.0.s8 %v1556
        %v1558 = vlaneseq
        %v1559 = vshrl.u32 %v1558, 7
        %v1560 = vsub.s32 %v1557, %v1559
        %v1561 = vrot.slane %v1547, %v1560
        %v1562 = vcombine.low %v1529, %v1545
        %v1563 = vcombine.high %v1529, %v1545
        %v1565 = vunpack.c.l.s4 1934713408
        %v1566 = vunpack.c.0.s8 %v1565
        %v1567 = vlaneseq
        %v1568 = vshrl.u32 %v1567, 7
        %v1569 = vsub.s32 %v1566, %v1568
        %v1570 = vrot.slane %v1562, %v1569
        %v1572 = vunpack.c.l.s4 1934713408
        %v1573 = vunpack.c.0.s8 %v1572
        %v1574 = vlaneseq
        %v1575 = vshrl.u32 %v1574, 7
        %v1576 = vsub.s32 %v1573, %v1575
        %v1577 = vrot.slane %v1563, %v1576
        %v1578 = vcombine.high %v1554, 0.0
        %v1579 = vcombine.high %v1561, 0.0
        %v1580 = vcombine.high %v1570, 0.0
        %v1581 = vcombine.high %v1577, 0.0
        %v1582 = vcombine.low %v1486, %v1493
        %v1584 = vunpack.c.l.s4 1983009808
        %v1585 = vunpack.c.0.s8 %v1584
        %v1586 = vlaneseq
        %v1587 = vshrl.u32 %v1586, 7
        %v1588 = vsub.s32 %v1585, %v1587
        %v1589 = vrot.slane %v1582, %v1588
        %v1590 = vcombine.low %v1510, %v1511
        %v1592 = vunpack.c.l.s4 1983009808
        %v1593 = vunpack.c.0.s8 %v1592
        %v1594 = vlaneseq
        %v1595 = vshrl.u32 %v1594, 7
        %v1596 = vsub.s32 %v1593, %v1595
        %v1597 = vrot.slane %v1590, %v1596
        %v1598 = vcombine.low %v1502, %v1509
        %v1600 = vunpack.c.l.s4 1983009808
        %v1601 = vunpack.c.0.s8 %v1600
        %v1602 = vlaneseq
        %v1603 = vshrl.u32 %v1602, 7
        %v1604 = vsub.s32 %v1601, %v1603
        %v1605 = vrot.slane %v1598, %v1604
        %v1606 = vcombine.low %v1512, %v1513
        %v1608 = vunpack.c.l.s4 1983009808
        %v1609 = vunpack.c.0.s8 %v1608
        %v1610 = vlaneseq
        %v1611 = vshrl.u32 %v1610, 7
        %v1612 = vsub.s32 %v1609, %v1611
        %v1613 = vrot.slane %v1606, %v1612
        %v1614 = vcombine.low %v1589, %v1597
        %v1615 = vcombine.high %v1589, %v1597
        %v1617 = vunpack.c.l.s4 1934713408
        %v1618 = vunpack.c.0.s8 %v1617
        %v1619 = vlaneseq
        %v1620 = vshrl.u32 %v1619, 7
        %v1621 = vsub.s32 %v1618, %v1620
        %v1622 = vrot.slane %v1614, %v1621
        %v1624 = vunpack.c.l.s4 1934713408
        %v1625 = vunpack.c.0.s8 %v1624
        %v1626 = vlaneseq
        %v1627 = vshrl.u32 %v1626, 7
        %v1628 = vsub.s32 %v1625, %v1627
        %v1629 = vrot.slane %v1615, %v1628
        %v1630 = vcombine.low %v1605, %v1613
        %v1631 = vcombine.high %v1605, %v1613
        %v1633 = vunpack.c.l.s4 1934713408
        %v1634 = vunpack.c.0.s8 %v1633
        %v1635 = vlaneseq
        %v1636 = vshrl.u32 %v1635, 7
        %v1637 = vsub.s32 %v1634, %v1636
        %v1638 = vrot.slane %v1630, %v1637
        %v1640 = vunpack.c.l.s4 1934713408
        %v1641 = vunpack.c.0.s8 %v1640
        %v1642 = vlaneseq
        %v1643 = vshrl.u32 %v1642, 7
        %v1644 = vsub.s32 %v1641, %v1643
        %v1645 = vrot.slane %v1631, %v1644
        %v1646 = vcombine.low %v1622, %v1638
        %v1647 = vcombine.high %v1622, %v1638
        %v1648 = vcombine.low %v1629, %v1645
        %v1649 = vcombine.high %v1629, %v1645
        %v1650 = vcombine.low %v1554, %v1561
        %v1652 = vunpack.c.l.s4 1983009808
        %v1653 = vunpack.c.0.s8 %v1652
        %v1654 = vlaneseq
        %v1655 = vshrl.u32 %v1654, 7
        %v1656 = vsub.s32 %v1653, %v1655
        %v1657 = vrot.slane %v1650, %v1656
        %v1658 = vcombine.low %v1578, %v1579
        %v1660 = vunpack.c.l.s4 1983009808
        %v1661 = vunpack.c.0.s8 %v1660
        %v1662 = vlaneseq
        %v1663 = vshrl.u32 %v1662, 7
        %v1664 = vsub.s32 %v1661, %v1663
        %v1665 = vrot.slane %v1658, %v1664
        %v1666 = vcombine.low %v1570, %v1577
        %v1668 = vunpack.c.l.s4 1983009808
        %v1669 = vunpack.c.0.s8 %v1668
        %v1670 = vlaneseq
        %v1671 = vshrl.u32 %v1670, 7
        %v1672 = vsub.s32 %v1669, %v1671
        %v1673 = vrot.slane %v1666, %v1672
        %v1674 = vcombine.low %v1580, %v1581
        %v1676 = vunpack.c.l.s4 1983009808
        %v1677 = vunpack.c.0.s8 %v1676
        %v1678 = vlaneseq
        %v1679 = vshrl.u32 %v1678, 7
        %v1680 = vsub.s32 %v1677, %v1679
        %v1681 = vrot.slane %v1674, %v1680
        %v1682 = vcombine.low %v1657, %v1665
        %v1683 = vcombine.high %v1657, %v1665
        %v1685 = vunpack.c.l.s4 1934713408
        %v1686 = vunpack.c.0.s8 %v1685
        %v1687 = vlaneseq
        %v1688 = vshrl.u32 %v1687, 7
        %v1689 = vsub.s32 %v1686, %v1688
        %v1690 = vrot.slane %v1682, %v1689
        %v1692 = vunpack.c.l.s4 1934713408
        %v1693 = vunpack.c.0.s8 %v1692
        %v1694 = vlaneseq
        %v1695 = vshrl.u32 %v1694, 7
        %v1696 = vsub.s32 %v1693, %v1695
        %v1697 = vrot.slane %v1683, %v1696
        %v1698 = vcombine.low %v1673, %v1681
        %v1699 = vcombine.high %v1673, %v1681
        %v1701 = vunpack.c.l.s4 1934713408
        %v1702 = vunpack.c.0.s8 %v1701
        %v1703 = vlaneseq
        %v1704 = vshrl.u32 %v1703, 7
        %v1705 = vsub.s32 %v1702, %v1704
        %v1706 = vrot.slane %v1698, %v1705
        %v1708 = vunpack.c.l.s4 1934713408
        %v1709 = vunpack.c.0.s8 %v1708
        %v1710 = vlaneseq
        %v1711 = vshrl.u32 %v1710, 7
        %v1712 = vsub.s32 %v1709, %v1711
        %v1713 = vrot.slane %v1699, %v1712
        %v1714 = vcombine.low %v1690, %v1706
        %v1715 = vcombine.high %v1690, %v1706
        %v1716 = vcombine.low %v1697, %v1713
        %v1717 = vcombine.high %v1697, %v1713
        %v1718 = vpack.c.bf16 %v1646, %v1646
        %v1719 = vpack.c.bf16 %v1647, %v1647
        %v1720 = vpack.c.bf16 %v1648, %v1648
        %v1721 = vpack.c.bf16 %v1649, %v1649
        %v1722 = vpack.c.bf16 %v1714, %v1714
        %v1723 = vpack.c.bf16 %v1715, %v1715
        %v1724 = vpack.c.bf16 %v1716, %v1716
        %v1725 = vpack.c.bf16 %v1717, %v1717
        %v1726 = vld [vmem:[%s585] sm:$0x1]
        %v1727 = vld [vmem:[%s585 + $0x1] sm:$0x1]
        %v1728 = vsub.f32 1.0, %v1726
        %v1729 = vsub.f32 1.0, %v1727
        %v1730 = vmul.f32 %v1728, -1e+30
        %v1731 = vmul.f32 %v1729, -1e+30
        %v1734 = vlaneseq
        %v1735 = vshrl.u32 %v1734, 7
        %v1736 = vsub.s32 0, %v1735
        %v1737 = vrot.slane %v1730, %v1736
        %v1738 = vlaneseq
        %v1739 = vshrl.u32 %v1738, 7
        %v1740 = vsub.s32 0, %v1739
        %v1741 = vrot.slane %v1731, %v1740
        %v1743 = vunpack.c.l.s4 1966171168
        %v1744 = vunpack.c.0.s8 %v1743
        %v1745 = vlaneseq
        %v1746 = vshrl.u32 %v1745, 7
        %v1747 = vsub.s32 %v1744, %v1746
        %v1748 = vrot.slane %v1737, %v1747
        %v1749 = vcombine.high %v1748, %v1748
        %v1751 = vunpack.c.l.s4 1966171168
        %v1752 = vunpack.c.0.s8 %v1751
        %v1753 = vlaneseq
        %v1754 = vshrl.u32 %v1753, 7
        %v1755 = vsub.s32 %v1752, %v1754
        %v1756 = vrot.slane %v1748, %v1755
        %v1758 = vunpack.c.l.s4 1966171168
        %v1759 = vunpack.c.0.s8 %v1758
        %v1760 = vlaneseq
        %v1761 = vshrl.u32 %v1760, 7
        %v1762 = vsub.s32 %v1759, %v1761
        %v1763 = vrot.slane %v1749, %v1762
        %v1764 = vcombine.high %v1756, %v1756
        %v1765 = vcombine.high %v1763, %v1763
        %v1767 = vunpack.c.l.s4 1966171168
        %v1768 = vunpack.c.0.s8 %v1767
        %v1769 = vlaneseq
        %v1770 = vshrl.u32 %v1769, 7
        %v1771 = vsub.s32 %v1768, %v1770
        %v1772 = vrot.slane %v1741, %v1771
        %v1773 = vcombine.high %v1772, %v1772
        %v1775 = vunpack.c.l.s4 1966171168
        %v1776 = vunpack.c.0.s8 %v1775
        %v1777 = vlaneseq
        %v1778 = vshrl.u32 %v1777, 7
        %v1779 = vsub.s32 %v1776, %v1778
        %v1780 = vrot.slane %v1772, %v1779
        %v1782 = vunpack.c.l.s4 1966171168
        %v1783 = vunpack.c.0.s8 %v1782
        %v1784 = vlaneseq
        %v1785 = vshrl.u32 %v1784, 7
        %v1786 = vsub.s32 %v1783, %v1785
        %v1787 = vrot.slane %v1773, %v1786
        %v1788 = vcombine.high %v1780, %v1780
        %v1789 = vcombine.high %v1787, %v1787
        %v1790 = vlaneseq
        %v1791 = vshrl.u32 %v1790, 7
        %v1792 = vsub.s32 0, %v1791
        %v1793 = vrot.slane %v1756, %v1792
        %v1794 = vlaneseq
        %v1795 = vshrl.u32 %v1794, 7
        %v1796 = vsub.s32 0, %v1795
        %v1797 = vrot.slane %v1763, %v1796
        %v1798 = vlaneseq
        %v1799 = vshrl.u32 %v1798, 7
        %v1800 = vsub.s32 0, %v1799
        %v1801 = vrot.slane %v1764, %v1800
        %v1802 = vlaneseq
        %v1803 = vshrl.u32 %v1802, 7
        %v1804 = vsub.s32 0, %v1803
        %v1805 = vrot.slane %v1765, %v1804
        %v1806 = vlaneseq
        %v1807 = vshrl.u32 %v1806, 7
        %v1808 = vsub.s32 0, %v1807
        %v1809 = vrot.slane %v1780, %v1808
        %v1810 = vlaneseq
        %v1811 = vshrl.u32 %v1810, 7
        %v1812 = vsub.s32 0, %v1811
        %v1813 = vrot.slane %v1787, %v1812
        %v1814 = vlaneseq
        %v1815 = vshrl.u32 %v1814, 7
        %v1816 = vsub.s32 0, %v1815
        %v1817 = vrot.slane %v1788, %v1816
        %v1818 = vlaneseq
        %v1819 = vshrl.u32 %v1818, 7
        %v1820 = vsub.s32 0, %v1819
        %v1821 = vrot.slane %v1789, %v1820
        %vm1830 = vcmask 64512
        %v1832 = vsel %vm1830, %v1110, 0
        %v1835 = vsel %vm1830, %v1414, 0
        %1837 = vmatprep.subr.bf16.mxu0 0
        %1838 = vmatpush1.bf16.xpose.msra.mxu0 0
        %1839 = vmatprep.subr.bf16.mxu0 0
        %1840 = vmatpush1.bf16.xpose.msra.mxu0 0
        %1841 = vmatprep.subr.bf16.mxu0 0
        %1842 = vmatpush1.bf16.xpose.msra.mxu0 0
        %1843 = vmatprep.subr.bf16.mxu0 0
        %1844 = vmatpush1.bf16.xpose.msra.mxu0 0
        %1845 = vmatprep.subr.bf16.mxu0 0
        %1846 = vmatpush1.bf16.xpose.msra.mxu0 0
        %1847 = vmatprep.subr.bf16.mxu0 0
        %1848 = vmatpush1.bf16.xpose.msra.mxu0 0
        %1849 = vmatprep.subr.bf16.mxu0 0
        %1850 = vmatpush1.bf16.xpose.msra.mxu0 0
        %1851 = vmatprep.subr.bf16.mxu0 0
        %1852 = vmatpush1.bf16.xpose.msra.mxu0 %v1835
        %1853 = vmatprep.subr.bf16.mxu0 0
        %1854 = vmatpush2.bf16.xpose.msra.mxu0 0
        %1855 = vmatprep.subr.bf16.mxu0 0
        %1856 = vmatpush2.bf16.xpose.msra.mxu0 0
        %1857 = vmatprep.subr.bf16.mxu0 0
        %1858 = vmatpush2.bf16.xpose.msra.mxu0 0
        %1859 = vmatprep.subr.bf16.mxu0 0
        %1860 = vmatpush2.bf16.xpose.msra.mxu0 0
        %1861 = vmatprep.subr.bf16.mxu0 0
        %1862 = vmatpush2.bf16.xpose.msra.mxu0 0
        %1863 = vmatprep.subr.bf16.mxu0 0
        %1864 = vmatpush2.bf16.xpose.msra.mxu0 0
        %1865 = vmatprep.subr.bf16.mxu0 0
        %1866 = vmatpush2.bf16.xpose.msra.mxu0 0
        %1867 = vmatprep.subr.bf16.mxu0 0
        %1868 = vmatpush2.bf16.xpose.msra.mxu0 0
        %1869 = vmatprep.mubr.bf16.mxu0 0
        %1870 = vmatmul.mubr.bf16.gmra.mxu0 %v1832
        %v1871 = vpop.f32.mrf.mxu0
        %v1872 = vadd.f32 %v1793, %v1871
        %v1873 = vpop.f32.mrf.mxu0
        %v1874 = vpop.f32.mrf.mxu0
        %v1875 = vpop.f32.mrf.mxu0
        %1876 = vdwg.mxu0
        %v1878 = vsel %vm1830, %v1111, 0
        %v1881 = vsel %vm1830, %v1415, 0
        %1883 = vmatprep.subr.bf16.mxu0 0
        %1884 = vmatpush1.bf16.xpose.msra.mxu0 0
        %1885 = vmatprep.subr.bf16.mxu0 0
        %1886 = vmatpush1.bf16.xpose.msra.mxu0 0
        %1887 = vmatprep.subr.bf16.mxu0 0
        %1888 = vmatpush1.bf16.xpose.msra.mxu0 0
        %1889 = vmatprep.subr.bf16.mxu0 0
        %1890 = vmatpush1.bf16.xpose.msra.mxu0 0
        %1891 = vmatprep.subr.bf16.mxu0 0
        %1892 = vmatpush1.bf16.xpose.msra.mxu0 0
        %1893 = vmatprep.subr.bf16.mxu0 0
        %1894 = vmatpush1.bf16.xpose.msra.mxu0 0
        %1895 = vmatprep.subr.bf16.mxu0 0
        %1896 = vmatpush1.bf16.xpose.msra.mxu0 0
        %1897 = vmatprep.subr.bf16.mxu0 0
        %1898 = vmatpush1.bf16.xpose.msra.mxu0 %v1881
        %1899 = vmatprep.subr.bf16.mxu0 0
        %1900 = vmatpush2.bf16.xpose.msra.mxu0 0
        %1901 = vmatprep.subr.bf16.mxu0 0
        %1902 = vmatpush2.bf16.xpose.msra.mxu0 0
        %1903 = vmatprep.subr.bf16.mxu0 0
        %1904 = vmatpush2.bf16.xpose.msra.mxu0 0
        %1905 = vmatprep.subr.bf16.mxu0 0
        %1906 = vmatpush2.bf16.xpose.msra.mxu0 0
        %1907 = vmatprep.subr.bf16.mxu0 0
        %1908 = vmatpush2.bf16.xpose.msra.mxu0 0
        %1909 = vmatprep.subr.bf16.mxu0 0
        %1910 = vmatpush2.bf16.xpose.msra.mxu0 0
        %1911 = vmatprep.subr.bf16.mxu0 0
        %1912 = vmatpush2.bf16.xpose.msra.mxu0 0
        %1913 = vmatprep.subr.bf16.mxu0 0
        %1914 = vmatpush2.bf16.xpose.msra.mxu0 0
        %1915 = vmatprep.mubr.bf16.mxu0 0
        %1916 = vmatmul.mubr.bf16.gmra.mxu0 %v1878
        %v1917 = vpop.f32.mrf.mxu0
        %v1918 = vadd.f32 %v1797, %v1917
        %v1919 = vpop.f32.mrf.mxu0
        %v1920 = vpop.f32.mrf.mxu0
        %v1921 = vpop.f32.mrf.mxu0
        %1922 = vdwg.mxu0
        %v1924 = vsel %vm1830, %v1112, 0
        %v1927 = vsel %vm1830, %v1416, 0
        %1929 = vmatprep.subr.bf16.mxu0 0
        %1930 = vmatpush1.bf16.xpose.msra.mxu0 0
        %1931 = vmatprep.subr.bf16.mxu0 0
        %1932 = vmatpush1.bf16.xpose.msra.mxu0 0
        %1933 = vmatprep.subr.bf16.mxu0 0
        %1934 = vmatpush1.bf16.xpose.msra.mxu0 0
        %1935 = vmatprep.subr.bf16.mxu0 0
        %1936 = vmatpush1.bf16.xpose.msra.mxu0 0
        %1937 = vmatprep.subr.bf16.mxu0 0
        %1938 = vmatpush1.bf16.xpose.msra.mxu0 0
        %1939 = vmatprep.subr.bf16.mxu0 0
        %1940 = vmatpush1.bf16.xpose.msra.mxu0 0
        %1941 = vmatprep.subr.bf16.mxu0 0
        %1942 = vmatpush1.bf16.xpose.msra.mxu0 0
        %1943 = vmatprep.subr.bf16.mxu0 0
        %1944 = vmatpush1.bf16.xpose.msra.mxu0 %v1927
        %1945 = vmatprep.subr.bf16.mxu0 0
        %1946 = vmatpush2.bf16.xpose.msra.mxu0 0
        %1947 = vmatprep.subr.bf16.mxu0 0
        %1948 = vmatpush2.bf16.xpose.msra.mxu0 0
        %1949 = vmatprep.subr.bf16.mxu0 0
        %1950 = vmatpush2.bf16.xpose.msra.mxu0 0
        %1951 = vmatprep.subr.bf16.mxu0 0
        %1952 = vmatpush2.bf16.xpose.msra.mxu0 0
        %1953 = vmatprep.subr.bf16.mxu0 0
        %1954 = vmatpush2.bf16.xpose.msra.mxu0 0
        %1955 = vmatprep.subr.bf16.mxu0 0
        %1956 = vmatpush2.bf16.xpose.msra.mxu0 0
        %1957 = vmatprep.subr.bf16.mxu0 0
        %1958 = vmatpush2.bf16.xpose.msra.mxu0 0
        %1959 = vmatprep.subr.bf16.mxu0 0
        %1960 = vmatpush2.bf16.xpose.msra.mxu0 0
        %1961 = vmatprep.mubr.bf16.mxu0 0
        %1962 = vmatmul.mubr.bf16.gmra.mxu0 %v1924
        %v1963 = vpop.f32.mrf.mxu0
        %v1964 = vadd.f32 %v1801, %v1963
        %v1965 = vpop.f32.mrf.mxu0
        %v1966 = vpop.f32.mrf.mxu0
        %v1967 = vpop.f32.mrf.mxu0
        %1968 = vdwg.mxu0
        %v1970 = vsel %vm1830, %v1113, 0
        %v1973 = vsel %vm1830, %v1417, 0
        %1975 = vmatprep.subr.bf16.mxu0 0
        %1976 = vmatpush1.bf16.xpose.msra.mxu0 0
        %1977 = vmatprep.subr.bf16.mxu0 0
        %1978 = vmatpush1.bf16.xpose.msra.mxu0 0
        %1979 = vmatprep.subr.bf16.mxu0 0
        %1980 = vmatpush1.bf16.xpose.msra.mxu0 0
        %1981 = vmatprep.subr.bf16.mxu0 0
        %1982 = vmatpush1.bf16.xpose.msra.mxu0 0
        %1983 = vmatprep.subr.bf16.mxu0 0
        %1984 = vmatpush1.bf16.xpose.msra.mxu0 0
        %1985 = vmatprep.subr.bf16.mxu0 0
        %1986 = vmatpush1.bf16.xpose.msra.mxu0 0
        %1987 = vmatprep.subr.bf16.mxu0 0
        %1988 = vmatpush1.bf16.xpose.msra.mxu0 0
        %1989 = vmatprep.subr.bf16.mxu0 0
        %1990 = vmatpush1.bf16.xpose.msra.mxu0 %v1973
        %1991 = vmatprep.subr.bf16.mxu0 0
        %1992 = vmatpush2.bf16.xpose.msra.mxu0 0
        %1993 = vmatprep.subr.bf16.mxu0 0
        %1994 = vmatpush2.bf16.xpose.msra.mxu0 0
        %1995 = vmatprep.subr.bf16.mxu0 0
        %1996 = vmatpush2.bf16.xpose.msra.mxu0 0
        %1997 = vmatprep.subr.bf16.mxu0 0
        %1998 = vmatpush2.bf16.xpose.msra.mxu0 0
        %1999 = vmatprep.subr.bf16.mxu0 0
        %2000 = vmatpush2.bf16.xpose.msra.mxu0 0
        %2001 = vmatprep.subr.bf16.mxu0 0
        %2002 = vmatpush2.bf16.xpose.msra.mxu0 0
        %2003 = vmatprep.subr.bf16.mxu0 0
        %2004 = vmatpush2.bf16.xpose.msra.mxu0 0
        %2005 = vmatprep.subr.bf16.mxu0 0
        %2006 = vmatpush2.bf16.xpose.msra.mxu0 0
        %2007 = vmatprep.mubr.bf16.mxu0 0
        %2008 = vmatmul.mubr.bf16.gmra.mxu0 %v1970
        %v2009 = vpop.f32.mrf.mxu0
        %v2010 = vadd.f32 %v1805, %v2009
        %v2011 = vpop.f32.mrf.mxu0
        %v2012 = vpop.f32.mrf.mxu0
        %v2013 = vpop.f32.mrf.mxu0
        %2014 = vdwg.mxu0
        %v2016 = vsel %vm1830, %v1114, 0
        %v2019 = vsel %vm1830, %v1418, 0
        %2021 = vmatprep.subr.bf16.mxu0 0
        %2022 = vmatpush1.bf16.xpose.msra.mxu0 0
        %2023 = vmatprep.subr.bf16.mxu0 0
        %2024 = vmatpush1.bf16.xpose.msra.mxu0 0
        %2025 = vmatprep.subr.bf16.mxu0 0
        %2026 = vmatpush1.bf16.xpose.msra.mxu0 0
        %2027 = vmatprep.subr.bf16.mxu0 0
        %2028 = vmatpush1.bf16.xpose.msra.mxu0 0
        %2029 = vmatprep.subr.bf16.mxu0 0
        %2030 = vmatpush1.bf16.xpose.msra.mxu0 0
        %2031 = vmatprep.subr.bf16.mxu0 0
        %2032 = vmatpush1.bf16.xpose.msra.mxu0 0
        %2033 = vmatprep.subr.bf16.mxu0 0
        %2034 = vmatpush1.bf16.xpose.msra.mxu0 0
        %2035 = vmatprep.subr.bf16.mxu0 0
        %2036 = vmatpush1.bf16.xpose.msra.mxu0 %v2019
        %2037 = vmatprep.subr.bf16.mxu0 0
        %2038 = vmatpush2.bf16.xpose.msra.mxu0 0
        %2039 = vmatprep.subr.bf16.mxu0 0
        %2040 = vmatpush2.bf16.xpose.msra.mxu0 0
        %2041 = vmatprep.subr.bf16.mxu0 0
        %2042 = vmatpush2.bf16.xpose.msra.mxu0 0
        %2043 = vmatprep.subr.bf16.mxu0 0
        %2044 = vmatpush2.bf16.xpose.msra.mxu0 0
        %2045 = vmatprep.subr.bf16.mxu0 0
        %2046 = vmatpush2.bf16.xpose.msra.mxu0 0
        %2047 = vmatprep.subr.bf16.mxu0 0
        %2048 = vmatpush2.bf16.xpose.msra.mxu0 0
        %2049 = vmatprep.subr.bf16.mxu0 0
        %2050 = vmatpush2.bf16.xpose.msra.mxu0 0
        %2051 = vmatprep.subr.bf16.mxu0 0
        %2052 = vmatpush2.bf16.xpose.msra.mxu0 0
        %2053 = vmatprep.mubr.bf16.mxu0 0
        %2054 = vmatmul.mubr.bf16.gmra.mxu0 %v2016
        %v2055 = vpop.f32.mrf.mxu0
        %v2056 = vadd.f32 %v1809, %v2055
        %v2057 = vpop.f32.mrf.mxu0
        %v2058 = vpop.f32.mrf.mxu0
        %v2059 = vpop.f32.mrf.mxu0
        %2060 = vdwg.mxu0
        %v2062 = vsel %vm1830, %v1115, 0
        %v2065 = vsel %vm1830, %v1419, 0
        %2067 = vmatprep.subr.bf16.mxu0 0
        %2068 = vmatpush1.bf16.xpose.msra.mxu0 0
        %2069 = vmatprep.subr.bf16.mxu0 0
        %2070 = vmatpush1.bf16.xpose.msra.mxu0 0
        %2071 = vmatprep.subr.bf16.mxu0 0
        %2072 = vmatpush1.bf16.xpose.msra.mxu0 0
        %2073 = vmatprep.subr.bf16.mxu0 0
        %2074 = vmatpush1.bf16.xpose.msra.mxu0 0
        %2075 = vmatprep.subr.bf16.mxu0 0
        %2076 = vmatpush1.bf16.xpose.msra.mxu0 0
        %2077 = vmatprep.subr.bf16.mxu0 0
        %2078 = vmatpush1.bf16.xpose.msra.mxu0 0
        %2079 = vmatprep.subr.bf16.mxu0 0
        %2080 = vmatpush1.bf16.xpose.msra.mxu0 0
        %2081 = vmatprep.subr.bf16.mxu0 0
        %2082 = vmatpush1.bf16.xpose.msra.mxu0 %v2065
        %2083 = vmatprep.subr.bf16.mxu0 0
        %2084 = vmatpush2.bf16.xpose.msra.mxu0 0
        %2085 = vmatprep.subr.bf16.mxu0 0
        %2086 = vmatpush2.bf16.xpose.msra.mxu0 0
        %2087 = vmatprep.subr.bf16.mxu0 0
        %2088 = vmatpush2.bf16.xpose.msra.mxu0 0
        %2089 = vmatprep.subr.bf16.mxu0 0
        %2090 = vmatpush2.bf16.xpose.msra.mxu0 0
        %2091 = vmatprep.subr.bf16.mxu0 0
        %2092 = vmatpush2.bf16.xpose.msra.mxu0 0
        %2093 = vmatprep.subr.bf16.mxu0 0
        %2094 = vmatpush2.bf16.xpose.msra.mxu0 0
        %2095 = vmatprep.subr.bf16.mxu0 0
        %2096 = vmatpush2.bf16.xpose.msra.mxu0 0
        %2097 = vmatprep.subr.bf16.mxu0 0
        %2098 = vmatpush2.bf16.xpose.msra.mxu0 0
        %2099 = vmatprep.mubr.bf16.mxu0 0
        %2100 = vmatmul.mubr.bf16.gmra.mxu0 %v2062
        %v2101 = vpop.f32.mrf.mxu0
        %v2102 = vadd.f32 %v1813, %v2101
        %v2103 = vpop.f32.mrf.mxu0
        %v2104 = vpop.f32.mrf.mxu0
        %v2105 = vpop.f32.mrf.mxu0
        %2106 = vdwg.mxu0
        %v2108 = vsel %vm1830, %v1116, 0
        %v2111 = vsel %vm1830, %v1420, 0
        %2113 = vmatprep.subr.bf16.mxu0 0
        %2114 = vmatpush1.bf16.xpose.msra.mxu0 0
        %2115 = vmatprep.subr.bf16.mxu0 0
        %2116 = vmatpush1.bf16.xpose.msra.mxu0 0
        %2117 = vmatprep.subr.bf16.mxu0 0
        %2118 = vmatpush1.bf16.xpose.msra.mxu0 0
        %2119 = vmatprep.subr.bf16.mxu0 0
        %2120 = vmatpush1.bf16.xpose.msra.mxu0 0
        %2121 = vmatprep.subr.bf16.mxu0 0
        %2122 = vmatpush1.bf16.xpose.msra.mxu0 0
        %2123 = vmatprep.subr.bf16.mxu0 0
        %2124 = vmatpush1.bf16.xpose.msra.mxu0 0
        %2125 = vmatprep.subr.bf16.mxu0 0
        %2126 = vmatpush1.bf16.xpose.msra.mxu0 0
        %2127 = vmatprep.subr.bf16.mxu0 0
        %2128 = vmatpush1.bf16.xpose.msra.mxu0 %v2111
        %2129 = vmatprep.subr.bf16.mxu0 0
        %2130 = vmatpush2.bf16.xpose.msra.mxu0 0
        %2131 = vmatprep.subr.bf16.mxu0 0
        %2132 = vmatpush2.bf16.xpose.msra.mxu0 0
        %2133 = vmatprep.subr.bf16.mxu0 0
        %2134 = vmatpush2.bf16.xpose.msra.mxu0 0
        %2135 = vmatprep.subr.bf16.mxu0 0
        %2136 = vmatpush2.bf16.xpose.msra.mxu0 0
        %2137 = vmatprep.subr.bf16.mxu0 0
        %2138 = vmatpush2.bf16.xpose.msra.mxu0 0
        %2139 = vmatprep.subr.bf16.mxu0 0
        %2140 = vmatpush2.bf16.xpose.msra.mxu0 0
        %2141 = vmatprep.subr.bf16.mxu0 0
        %2142 = vmatpush2.bf16.xpose.msra.mxu0 0
        %2143 = vmatprep.subr.bf16.mxu0 0
        %2144 = vmatpush2.bf16.xpose.msra.mxu0 0
        %2145 = vmatprep.mubr.bf16.mxu0 0
        %2146 = vmatmul.mubr.bf16.gmra.mxu0 %v2108
        %v2147 = vpop.f32.mrf.mxu0
        %v2148 = vadd.f32 %v1817, %v2147
        %v2149 = vpop.f32.mrf.mxu0
        %v2150 = vpop.f32.mrf.mxu0
        %v2151 = vpop.f32.mrf.mxu0
        %2152 = vdwg.mxu0
        %v2154 = vsel %vm1830, %v1117, 0
        %v2157 = vsel %vm1830, %v1421, 0
        %2159 = vmatprep.subr.bf16.mxu0 0
        %2160 = vmatpush1.bf16.xpose.msra.mxu0 0
        %2161 = vmatprep.subr.bf16.mxu0 0
        %2162 = vmatpush1.bf16.xpose.msra.mxu0 0
        %2163 = vmatprep.subr.bf16.mxu0 0
        %2164 = vmatpush1.bf16.xpose.msra.mxu0 0
        %2165 = vmatprep.subr.bf16.mxu0 0
        %2166 = vmatpush1.bf16.xpose.msra.mxu0 0
        %2167 = vmatprep.subr.bf16.mxu0 0
        %2168 = vmatpush1.bf16.xpose.msra.mxu0 0
        %2169 = vmatprep.subr.bf16.mxu0 0
        %2170 = vmatpush1.bf16.xpose.msra.mxu0 0
        %2171 = vmatprep.subr.bf16.mxu0 0
        %2172 = vmatpush1.bf16.xpose.msra.mxu0 0
        %2173 = vmatprep.subr.bf16.mxu0 0
        %2174 = vmatpush1.bf16.xpose.msra.mxu0 %v2157
        %2175 = vmatprep.subr.bf16.mxu0 0
        %2176 = vmatpush2.bf16.xpose.msra.mxu0 0
        %2177 = vmatprep.subr.bf16.mxu0 0
        %2178 = vmatpush2.bf16.xpose.msra.mxu0 0
        %2179 = vmatprep.subr.bf16.mxu0 0
        %2180 = vmatpush2.bf16.xpose.msra.mxu0 0
        %2181 = vmatprep.subr.bf16.mxu0 0
        %2182 = vmatpush2.bf16.xpose.msra.mxu0 0
        %2183 = vmatprep.subr.bf16.mxu0 0
        %2184 = vmatpush2.bf16.xpose.msra.mxu0 0
        %2185 = vmatprep.subr.bf16.mxu0 0
        %2186 = vmatpush2.bf16.xpose.msra.mxu0 0
        %2187 = vmatprep.subr.bf16.mxu0 0
        %2188 = vmatpush2.bf16.xpose.msra.mxu0 0
        %2189 = vmatprep.subr.bf16.mxu0 0
        %2190 = vmatpush2.bf16.xpose.msra.mxu0 0
        %2191 = vmatprep.mubr.bf16.mxu0 0
        %2192 = vmatmul.mubr.bf16.gmra.mxu0 %v2154
        %v2193 = vpop.f32.mrf.mxu0
        %v2194 = vadd.f32 %v1821, %v2193
        %v2195 = vpop.f32.mrf.mxu0
        %v2196 = vpop.f32.mrf.mxu0
        %v2197 = vpop.f32.mrf.mxu0
        %2198 = vdwg.mxu0
        %v2199 = vsel %vm1830, %v1872, -inf
        %2200 = vmax.xlane.f32.xlu0 %v2199
        %v2201 = vpop.xlane.xlu0 %2200
        %v2202 = vsel %vm1830, %v1918, -inf
        %2203 = vmax.xlane.f32.xlu0 %v2202
        %v2204 = vpop.xlane.xlu0 %2203
        %v2205 = vsel %vm1830, %v1964, -inf
        %2206 = vmax.xlane.f32.xlu0 %v2205
        %v2207 = vpop.xlane.xlu0 %2206
        %v2208 = vsel %vm1830, %v2010, -inf
        %2209 = vmax.xlane.f32.xlu0 %v2208
        %v2210 = vpop.xlane.xlu0 %2209
        %v2211 = vsel %vm1830, %v2056, -inf
        %2212 = vmax.xlane.f32.xlu0 %v2211
        %v2213 = vpop.xlane.xlu0 %2212
        %v2214 = vsel %vm1830, %v2102, -inf
        %2215 = vmax.xlane.f32.xlu0 %v2214
        %v2216 = vpop.xlane.xlu0 %2215
        %v2217 = vsel %vm1830, %v2148, -inf
        %2218 = vmax.xlane.f32.xlu0 %v2217
        %v2219 = vpop.xlane.xlu0 %2218
        %v2220 = vsel %vm1830, %v2194, -inf
        %2221 = vmax.xlane.f32.xlu0 %v2220
        %v2222 = vpop.xlane.xlu0 %2221
        %v2223 = vsub.f32 %v1872, %v2201
        %v2224 = vsub.f32 %v1918, %v2204
        %v2225 = vsub.f32 %v1964, %v2207
        %v2226 = vsub.f32 %v2010, %v2210
        %v2227 = vsub.f32 %v2056, %v2213
        %v2228 = vsub.f32 %v2102, %v2216
        %v2229 = vsub.f32 %v2148, %v2219
        %v2230 = vsub.f32 %v2194, %v2222
        %v2231 = vmul.f32 %v2223, 1.442695
        %v2232 = vpow.pop %v2231
        %v2233 = vmul.f32 %v2224, 1.442695
        %v2234 = vpow.pop %v2233
        %v2235 = vmul.f32 %v2225, 1.442695
        %v2236 = vpow.pop %v2235
        %v2237 = vmul.f32 %v2226, 1.442695
        %v2238 = vpow.pop %v2237
        %v2239 = vmul.f32 %v2227, 1.442695
        %v2240 = vpow.pop %v2239
        %v2241 = vmul.f32 %v2228, 1.442695
        %v2242 = vpow.pop %v2241
        %v2243 = vmul.f32 %v2229, 1.442695
        %v2244 = vpow.pop %v2243
        %v2245 = vmul.f32 %v2230, 1.442695
        %v2246 = vpow.pop %v2245
        %v2247 = vsel %vm1830, %v2232, 0.0
        %2248 = vadd.xlane.f32.xlu0 %v2247
        %v2249 = vpop.xlane.xlu0 %2248
        %v2250 = vsel %vm1830, %v2234, 0.0
        %2251 = vadd.xlane.f32.xlu0 %v2250
        %v2252 = vpop.xlane.xlu0 %2251
        %v2253 = vsel %vm1830, %v2236, 0.0
        %2254 = vadd.xlane.f32.xlu0 %v2253
        %v2255 = vpop.xlane.xlu0 %2254
        %v2256 = vsel %vm1830, %v2238, 0.0
        %2257 = vadd.xlane.f32.xlu0 %v2256
        %v2258 = vpop.xlane.xlu0 %2257
        %v2259 = vsel %vm1830, %v2240, 0.0
        %2260 = vadd.xlane.f32.xlu0 %v2259
        %v2261 = vpop.xlane.xlu0 %2260
        %v2262 = vsel %vm1830, %v2242, 0.0
        %2263 = vadd.xlane.f32.xlu0 %v2262
        %v2264 = vpop.xlane.xlu0 %2263
        %v2265 = vsel %vm1830, %v2244, 0.0
        %2266 = vadd.xlane.f32.xlu0 %v2265
        %v2267 = vpop.xlane.xlu0 %2266
        %v2268 = vsel %vm1830, %v2246, 0.0
        %2269 = vadd.xlane.f32.xlu0 %v2268
        %v2270 = vpop.xlane.xlu0 %2269
        %v2271 = vpack.c.bf16 %v2232, %v2232
        %v2272 = vpack.c.bf16 %v2234, %v2234
        %v2273 = vpack.c.bf16 %v2236, %v2236
        %v2274 = vpack.c.bf16 %v2238, %v2238
        %v2275 = vpack.c.bf16 %v2240, %v2240
        %v2276 = vpack.c.bf16 %v2242, %v2242
        %v2277 = vpack.c.bf16 %v2244, %v2244
        %v2278 = vpack.c.bf16 %v2246, %v2246
        %v2280 = vsel %vm1830, %v2271, 0
        %vm2282 = vcmask 1043456
        %v2284 = vsel %vm2282, %v1718, 0
        %2286 = vmatprep.subr.bf16.mxu0 0
        %2287 = vmatpush1.bf16.msra.mxu0 0
        %2288 = vmatprep.subr.bf16.mxu0 0
        %2289 = vmatpush1.bf16.msra.mxu0 0
        %2290 = vmatprep.subr.bf16.mxu0 0
        %2291 = vmatpush1.bf16.msra.mxu0 0
        %2292 = vmatprep.subr.bf16.mxu0 0
        %2293 = vmatpush1.bf16.msra.mxu0 0
        %2294 = vmatprep.subr.bf16.mxu0 0
        %2295 = vmatpush1.bf16.msra.mxu0 0
        %2296 = vmatprep.subr.bf16.mxu0 0
        %2297 = vmatpush1.bf16.msra.mxu0 0
        %2298 = vmatprep.subr.bf16.mxu0 0
        %2299 = vmatpush1.bf16.msra.mxu0 0
        %2300 = vmatprep.subr.bf16.mxu0 0
        %2301 = vmatpush1.bf16.msra.mxu0 %v2284
        %2302 = vmatprep.subr.bf16.mxu0 0
        %2303 = vmatpush2.bf16.msra.mxu0 0
        %2304 = vmatprep.subr.bf16.mxu0 0
        %2305 = vmatpush2.bf16.msra.mxu0 0
        %2306 = vmatprep.subr.bf16.mxu0 0
        %2307 = vmatpush2.bf16.msra.mxu0 0
        %2308 = vmatprep.subr.bf16.mxu0 0
        %2309 = vmatpush2.bf16.msra.mxu0 0
        %2310 = vmatprep.subr.bf16.mxu0 0
        %2311 = vmatpush2.bf16.msra.mxu0 0
        %2312 = vmatprep.subr.bf16.mxu0 0
        %2313 = vmatpush2.bf16.msra.mxu0 0
        %2314 = vmatprep.subr.bf16.mxu0 0
        %2315 = vmatpush2.bf16.msra.mxu0 0
        %2316 = vmatprep.subr.bf16.mxu0 0
        %2317 = vmatpush2.bf16.msra.mxu0 0
        %2318 = vmatprep.mubr.bf16.mxu0 0
        %2319 = vmatmul.mubr.bf16.gmra.mxu0 %v2280
        %v2320 = vpop.f32.mrf.mxu0
        %v2321 = vadd.f32 0.0, %v2320
        %v2322 = vpop.f32.mrf.mxu0
        %v2323 = vpop.f32.mrf.mxu0
        %v2324 = vpop.f32.mrf.mxu0
        %2325 = vdwg.mxu0
        %v2327 = vsel %vm1830, %v2272, 0
        %v2330 = vsel %vm2282, %v1719, 0
        %2332 = vmatprep.subr.bf16.mxu0 0
        %2333 = vmatpush1.bf16.msra.mxu0 0
        %2334 = vmatprep.subr.bf16.mxu0 0
        %2335 = vmatpush1.bf16.msra.mxu0 0
        %2336 = vmatprep.subr.bf16.mxu0 0
        %2337 = vmatpush1.bf16.msra.mxu0 0
        %2338 = vmatprep.subr.bf16.mxu0 0
        %2339 = vmatpush1.bf16.msra.mxu0 0
        %2340 = vmatprep.subr.bf16.mxu0 0
        %2341 = vmatpush1.bf16.msra.mxu0 0
        %2342 = vmatprep.subr.bf16.mxu0 0
        %2343 = vmatpush1.bf16.msra.mxu0 0
        %2344 = vmatprep.subr.bf16.mxu0 0
        %2345 = vmatpush1.bf16.msra.mxu0 0
        %2346 = vmatprep.subr.bf16.mxu0 0
        %2347 = vmatpush1.bf16.msra.mxu0 %v2330
        %2348 = vmatprep.subr.bf16.mxu0 0
        %2349 = vmatpush2.bf16.msra.mxu0 0
        %2350 = vmatprep.subr.bf16.mxu0 0
        %2351 = vmatpush2.bf16.msra.mxu0 0
        %2352 = vmatprep.subr.bf16.mxu0 0
        %2353 = vmatpush2.bf16.msra.mxu0 0
        %2354 = vmatprep.subr.bf16.mxu0 0
        %2355 = vmatpush2.bf16.msra.mxu0 0
        %2356 = vmatprep.subr.bf16.mxu0 0
        %2357 = vmatpush2.bf16.msra.mxu0 0
        %2358 = vmatprep.subr.bf16.mxu0 0
        %2359 = vmatpush2.bf16.msra.mxu0 0
        %2360 = vmatprep.subr.bf16.mxu0 0
        %2361 = vmatpush2.bf16.msra.mxu0 0
        %2362 = vmatprep.subr.bf16.mxu0 0
        %2363 = vmatpush2.bf16.msra.mxu0 0
        %2364 = vmatprep.mubr.bf16.mxu0 0
        %2365 = vmatmul.mubr.bf16.gmra.mxu0 %v2327
        %v2366 = vpop.f32.mrf.mxu0
        %v2367 = vadd.f32 0.0, %v2366
        %v2368 = vpop.f32.mrf.mxu0
        %v2369 = vpop.f32.mrf.mxu0
        %v2370 = vpop.f32.mrf.mxu0
        %2371 = vdwg.mxu0
        %v2373 = vsel %vm1830, %v2273, 0
        %v2376 = vsel %vm2282, %v1720, 0
        %2378 = vmatprep.subr.bf16.mxu0 0
        %2379 = vmatpush1.bf16.msra.mxu0 0
        %2380 = vmatprep.subr.bf16.mxu0 0
        %2381 = vmatpush1.bf16.msra.mxu0 0
        %2382 = vmatprep.subr.bf16.mxu0 0
        %2383 = vmatpush1.bf16.msra.mxu0 0
        %2384 = vmatprep.subr.bf16.mxu0 0
        %2385 = vmatpush1.bf16.msra.mxu0 0
        %2386 = vmatprep.subr.bf16.mxu0 0
        %2387 = vmatpush1.bf16.msra.mxu0 0
        %2388 = vmatprep.subr.bf16.mxu0 0
        %2389 = vmatpush1.bf16.msra.mxu0 0
        %2390 = vmatprep.subr.bf16.mxu0 0
        %2391 = vmatpush1.bf16.msra.mxu0 0
        %2392 = vmatprep.subr.bf16.mxu0 0
        %2393 = vmatpush1.bf16.msra.mxu0 %v2376
        %2394 = vmatprep.subr.bf16.mxu0 0
        %2395 = vmatpush2.bf16.msra.mxu0 0
        %2396 = vmatprep.subr.bf16.mxu0 0
        %2397 = vmatpush2.bf16.msra.mxu0 0
        %2398 = vmatprep.subr.bf16.mxu0 0
        %2399 = vmatpush2.bf16.msra.mxu0 0
        %2400 = vmatprep.subr.bf16.mxu0 0
        %2401 = vmatpush2.bf16.msra.mxu0 0
        %2402 = vmatprep.subr.bf16.mxu0 0
        %2403 = vmatpush2.bf16.msra.mxu0 0
        %2404 = vmatprep.subr.bf16.mxu0 0
        %2405 = vmatpush2.bf16.msra.mxu0 0
        %2406 = vmatprep.subr.bf16.mxu0 0
        %2407 = vmatpush2.bf16.msra.mxu0 0
        %2408 = vmatprep.subr.bf16.mxu0 0
        %2409 = vmatpush2.bf16.msra.mxu0 0
        %2410 = vmatprep.mubr.bf16.mxu0 0
        %2411 = vmatmul.mubr.bf16.gmra.mxu0 %v2373
        %v2412 = vpop.f32.mrf.mxu0
        %v2413 = vadd.f32 0.0, %v2412
        %v2414 = vpop.f32.mrf.mxu0
        %v2415 = vpop.f32.mrf.mxu0
        %v2416 = vpop.f32.mrf.mxu0
        %2417 = vdwg.mxu0
        %v2419 = vsel %vm1830, %v2274, 0
        %v2422 = vsel %vm2282, %v1721, 0
        %2424 = vmatprep.subr.bf16.mxu0 0
        %2425 = vmatpush1.bf16.msra.mxu0 0
        %2426 = vmatprep.subr.bf16.mxu0 0
        %2427 = vmatpush1.bf16.msra.mxu0 0
        %2428 = vmatprep.subr.bf16.mxu0 0
        %2429 = vmatpush1.bf16.msra.mxu0 0
        %2430 = vmatprep.subr.bf16.mxu0 0
        %2431 = vmatpush1.bf16.msra.mxu0 0
        %2432 = vmatprep.subr.bf16.mxu0 0
        %2433 = vmatpush1.bf16.msra.mxu0 0
        %2434 = vmatprep.subr.bf16.mxu0 0
        %2435 = vmatpush1.bf16.msra.mxu0 0
        %2436 = vmatprep.subr.bf16.mxu0 0
        %2437 = vmatpush1.bf16.msra.mxu0 0
        %2438 = vmatprep.subr.bf16.mxu0 0
        %2439 = vmatpush1.bf16.msra.mxu0 %v2422
        %2440 = vmatprep.subr.bf16.mxu0 0
        %2441 = vmatpush2.bf16.msra.mxu0 0
        %2442 = vmatprep.subr.bf16.mxu0 0
        %2443 = vmatpush2.bf16.msra.mxu0 0
        %2444 = vmatprep.subr.bf16.mxu0 0
        %2445 = vmatpush2.bf16.msra.mxu0 0
        %2446 = vmatprep.subr.bf16.mxu0 0
        %2447 = vmatpush2.bf16.msra.mxu0 0
        %2448 = vmatprep.subr.bf16.mxu0 0
        %2449 = vmatpush2.bf16.msra.mxu0 0
        %2450 = vmatprep.subr.bf16.mxu0 0
        %2451 = vmatpush2.bf16.msra.mxu0 0
        %2452 = vmatprep.subr.bf16.mxu0 0
        %2453 = vmatpush2.bf16.msra.mxu0 0
        %2454 = vmatprep.subr.bf16.mxu0 0
        %2455 = vmatpush2.bf16.msra.mxu0 0
        %2456 = vmatprep.mubr.bf16.mxu0 0
        %2457 = vmatmul.mubr.bf16.gmra.mxu0 %v2419
        %v2458 = vpop.f32.mrf.mxu0
        %v2459 = vadd.f32 0.0, %v2458
        %v2460 = vpop.f32.mrf.mxu0
        %v2461 = vpop.f32.mrf.mxu0
        %v2462 = vpop.f32.mrf.mxu0
        %2463 = vdwg.mxu0
        %v2465 = vsel %vm1830, %v2275, 0
        %v2468 = vsel %vm2282, %v1722, 0
        %2470 = vmatprep.subr.bf16.mxu0 0
        %2471 = vmatpush1.bf16.msra.mxu0 0
        %2472 = vmatprep.subr.bf16.mxu0 0
        %2473 = vmatpush1.bf16.msra.mxu0 0
        %2474 = vmatprep.subr.bf16.mxu0 0
        %2475 = vmatpush1.bf16.msra.mxu0 0
        %2476 = vmatprep.subr.bf16.mxu0 0
        %2477 = vmatpush1.bf16.msra.mxu0 0
        %2478 = vmatprep.subr.bf16.mxu0 0
        %2479 = vmatpush1.bf16.msra.mxu0 0
        %2480 = vmatprep.subr.bf16.mxu0 0
        %2481 = vmatpush1.bf16.msra.mxu0 0
        %2482 = vmatprep.subr.bf16.mxu0 0
        %2483 = vmatpush1.bf16.msra.mxu0 0
        %2484 = vmatprep.subr.bf16.mxu0 0
        %2485 = vmatpush1.bf16.msra.mxu0 %v2468
        %2486 = vmatprep.subr.bf16.mxu0 0
        %2487 = vmatpush2.bf16.msra.mxu0 0
        %2488 = vmatprep.subr.bf16.mxu0 0
        %2489 = vmatpush2.bf16.msra.mxu0 0
        %2490 = vmatprep.subr.bf16.mxu0 0
        %2491 = vmatpush2.bf16.msra.mxu0 0
        %2492 = vmatprep.subr.bf16.mxu0 0
        %2493 = vmatpush2.bf16.msra.mxu0 0
        %2494 = vmatprep.subr.bf16.mxu0 0
        %2495 = vmatpush2.bf16.msra.mxu0 0
        %2496 = vmatprep.subr.bf16.mxu0 0
        %2497 = vmatpush2.bf16.msra.mxu0 0
        %2498 = vmatprep.subr.bf16.mxu0 0
        %2499 = vmatpush2.bf16.msra.mxu0 0
        %2500 = vmatprep.subr.bf16.mxu0 0
        %2501 = vmatpush2.bf16.msra.mxu0 0
        %2502 = vmatprep.mubr.bf16.mxu0 0
        %2503 = vmatmul.mubr.bf16.gmra.mxu0 %v2465
        %v2504 = vpop.f32.mrf.mxu0
        %v2505 = vadd.f32 0.0, %v2504
        %v2506 = vpop.f32.mrf.mxu0
        %v2507 = vpop.f32.mrf.mxu0
        %v2508 = vpop.f32.mrf.mxu0
        %2509 = vdwg.mxu0
        %v2511 = vsel %vm1830, %v2276, 0
        %v2514 = vsel %vm2282, %v1723, 0
        %2516 = vmatprep.subr.bf16.mxu0 0
        %2517 = vmatpush1.bf16.msra.mxu0 0
        %2518 = vmatprep.subr.bf16.mxu0 0
        %2519 = vmatpush1.bf16.msra.mxu0 0
        %2520 = vmatprep.subr.bf16.mxu0 0
        %2521 = vmatpush1.bf16.msra.mxu0 0
        %2522 = vmatprep.subr.bf16.mxu0 0
        %2523 = vmatpush1.bf16.msra.mxu0 0
        %2524 = vmatprep.subr.bf16.mxu0 0
        %2525 = vmatpush1.bf16.msra.mxu0 0
        %2526 = vmatprep.subr.bf16.mxu0 0
        %2527 = vmatpush1.bf16.msra.mxu0 0
        %2528 = vmatprep.subr.bf16.mxu0 0
        %2529 = vmatpush1.bf16.msra.mxu0 0
        %2530 = vmatprep.subr.bf16.mxu0 0
        %2531 = vmatpush1.bf16.msra.mxu0 %v2514
        %2532 = vmatprep.subr.bf16.mxu0 0
        %2533 = vmatpush2.bf16.msra.mxu0 0
        %2534 = vmatprep.subr.bf16.mxu0 0
        %2535 = vmatpush2.bf16.msra.mxu0 0
        %2536 = vmatprep.subr.bf16.mxu0 0
        %2537 = vmatpush2.bf16.msra.mxu0 0
        %2538 = vmatprep.subr.bf16.mxu0 0
        %2539 = vmatpush2.bf16.msra.mxu0 0
        %2540 = vmatprep.subr.bf16.mxu0 0
        %2541 = vmatpush2.bf16.msra.mxu0 0
        %2542 = vmatprep.subr.bf16.mxu0 0
        %2543 = vmatpush2.bf16.msra.mxu0 0
        %2544 = vmatprep.subr.bf16.mxu0 0
        %2545 = vmatpush2.bf16.msra.mxu0 0
        %2546 = vmatprep.subr.bf16.mxu0 0
        %2547 = vmatpush2.bf16.msra.mxu0 0
        %2548 = vmatprep.mubr.bf16.mxu0 0
        %2549 = vmatmul.mubr.bf16.gmra.mxu0 %v2511
        %v2550 = vpop.f32.mrf.mxu0
        %v2551 = vadd.f32 0.0, %v2550
        %v2552 = vpop.f32.mrf.mxu0
        %v2553 = vpop.f32.mrf.mxu0
        %v2554 = vpop.f32.mrf.mxu0
        %2555 = vdwg.mxu0
        %v2557 = vsel %vm1830, %v2277, 0
        %v2560 = vsel %vm2282, %v1724, 0
        %2562 = vmatprep.subr.bf16.mxu0 0
        %2563 = vmatpush1.bf16.msra.mxu0 0
        %2564 = vmatprep.subr.bf16.mxu0 0
        %2565 = vmatpush1.bf16.msra.mxu0 0
        %2566 = vmatprep.subr.bf16.mxu0 0
        %2567 = vmatpush1.bf16.msra.mxu0 0
        %2568 = vmatprep.subr.bf16.mxu0 0
        %2569 = vmatpush1.bf16.msra.mxu0 0
        %2570 = vmatprep.subr.bf16.mxu0 0
        %2571 = vmatpush1.bf16.msra.mxu0 0
        %2572 = vmatprep.subr.bf16.mxu0 0
        %2573 = vmatpush1.bf16.msra.mxu0 0
        %2574 = vmatprep.subr.bf16.mxu0 0
        %2575 = vmatpush1.bf16.msra.mxu0 0
        %2576 = vmatprep.subr.bf16.mxu0 0
        %2577 = vmatpush1.bf16.msra.mxu0 %v2560
        %2578 = vmatprep.subr.bf16.mxu0 0
        %2579 = vmatpush2.bf16.msra.mxu0 0
        %2580 = vmatprep.subr.bf16.mxu0 0
        %2581 = vmatpush2.bf16.msra.mxu0 0
        %2582 = vmatprep.subr.bf16.mxu0 0
        %2583 = vmatpush2.bf16.msra.mxu0 0
        %2584 = vmatprep.subr.bf16.mxu0 0
        %2585 = vmatpush2.bf16.msra.mxu0 0
        %2586 = vmatprep.subr.bf16.mxu0 0
        %2587 = vmatpush2.bf16.msra.mxu0 0
        %2588 = vmatprep.subr.bf16.mxu0 0
        %2589 = vmatpush2.bf16.msra.mxu0 0
        %2590 = vmatprep.subr.bf16.mxu0 0
        %2591 = vmatpush2.bf16.msra.mxu0 0
        %2592 = vmatprep.subr.bf16.mxu0 0
        %2593 = vmatpush2.bf16.msra.mxu0 0
        %2594 = vmatprep.mubr.bf16.mxu0 0
        %2595 = vmatmul.mubr.bf16.gmra.mxu0 %v2557
        %v2596 = vpop.f32.mrf.mxu0
        %v2597 = vadd.f32 0.0, %v2596
        %v2598 = vpop.f32.mrf.mxu0
        %v2599 = vpop.f32.mrf.mxu0
        %v2600 = vpop.f32.mrf.mxu0
        %2601 = vdwg.mxu0
        %v2603 = vsel %vm1830, %v2278, 0
        %v2606 = vsel %vm2282, %v1725, 0
        %2608 = vmatprep.subr.bf16.mxu0 0
        %2609 = vmatpush1.bf16.msra.mxu0 0
        %2610 = vmatprep.subr.bf16.mxu0 0
        %2611 = vmatpush1.bf16.msra.mxu0 0
        %2612 = vmatprep.subr.bf16.mxu0 0
        %2613 = vmatpush1.bf16.msra.mxu0 0
        %2614 = vmatprep.subr.bf16.mxu0 0
        %2615 = vmatpush1.bf16.msra.mxu0 0
        %2616 = vmatprep.subr.bf16.mxu0 0
        %2617 = vmatpush1.bf16.msra.mxu0 0
        %2618 = vmatprep.subr.bf16.mxu0 0
        %2619 = vmatpush1.bf16.msra.mxu0 0
        %2620 = vmatprep.subr.bf16.mxu0 0
        %2621 = vmatpush1.bf16.msra.mxu0 0
        %2622 = vmatprep.subr.bf16.mxu0 0
        %2623 = vmatpush1.bf16.msra.mxu0 %v2606
        %2624 = vmatprep.subr.bf16.mxu0 0
        %2625 = vmatpush2.bf16.msra.mxu0 0
        %2626 = vmatprep.subr.bf16.mxu0 0
        %2627 = vmatpush2.bf16.msra.mxu0 0
        %2628 = vmatprep.subr.bf16.mxu0 0
        %2629 = vmatpush2.bf16.msra.mxu0 0
        %2630 = vmatprep.subr.bf16.mxu0 0
        %2631 = vmatpush2.bf16.msra.mxu0 0
        %2632 = vmatprep.subr.bf16.mxu0 0
        %2633 = vmatpush2.bf16.msra.mxu0 0
        %2634 = vmatprep.subr.bf16.mxu0 0
        %2635 = vmatpush2.bf16.msra.mxu0 0
        %2636 = vmatprep.subr.bf16.mxu0 0
        %2637 = vmatpush2.bf16.msra.mxu0 0
        %2638 = vmatprep.subr.bf16.mxu0 0
        %2639 = vmatpush2.bf16.msra.mxu0 0
        %2640 = vmatprep.mubr.bf16.mxu0 0
        %2641 = vmatmul.mubr.bf16.gmra.mxu0 %v2603
        %v2642 = vpop.f32.mrf.mxu0
        %v2643 = vadd.f32 0.0, %v2642
        %v2644 = vpop.f32.mrf.mxu0
        %v2645 = vpop.f32.mrf.mxu0
        %v2646 = vpop.f32.mrf.mxu0
        %2647 = vdwg.mxu0
        %v2648 = vrcp.pop %v2249
        %v2649 = vrcp.pop %v2252
        %v2650 = vrcp.pop %v2255
        %v2651 = vrcp.pop %v2258
        %v2652 = vrcp.pop %v2261
        %v2653 = vrcp.pop %v2264
        %v2654 = vrcp.pop %v2267
        %v2655 = vrcp.pop %v2270
        %v2656 = vmul.f32 %v2321, %v2648
        %v2657 = vmul.f32 %v2367, %v2649
        %v2658 = vmul.f32 %v2413, %v2650
        %v2659 = vmul.f32 %v2459, %v2651
        %v2660 = vmul.f32 %v2505, %v2652
        %v2661 = vmul.f32 %v2551, %v2653
        %v2662 = vmul.f32 %v2597, %v2654
        %v2663 = vmul.f32 %v2643, %v2655
        %v2664 = vcombine.low %v2656, %v2658
        %v2665 = vcombine.high %v2656, %v2658
        %v2667 = vunpack.c.l.s4 1983009808
        %v2668 = vunpack.c.0.s8 %v2667
        %v2669 = vlaneseq
        %v2670 = vshrl.u32 %v2669, 7
        %v2671 = vsub.s32 %v2668, %v2670
        %v2672 = vrot.slane %v2664, %v2671
        %v2674 = vunpack.c.l.s4 1983009808
        %v2675 = vunpack.c.0.s8 %v2674
        %v2676 = vlaneseq
        %v2677 = vshrl.u32 %v2676, 7
        %v2678 = vsub.s32 %v2675, %v2677
        %v2679 = vrot.slane %v2665, %v2678
        %v2680 = vcombine.low %v2657, %v2659
        %v2681 = vcombine.high %v2657, %v2659
        %v2683 = vunpack.c.l.s4 1983009808
        %v2684 = vunpack.c.0.s8 %v2683
        %v2685 = vlaneseq
        %v2686 = vshrl.u32 %v2685, 7
        %v2687 = vsub.s32 %v2684, %v2686
        %v2688 = vrot.slane %v2680, %v2687
        %v2690 = vunpack.c.l.s4 1983009808
        %v2691 = vunpack.c.0.s8 %v2690
        %v2692 = vlaneseq
        %v2693 = vshrl.u32 %v2692, 7
        %v2694 = vsub.s32 %v2691, %v2693
        %v2695 = vrot.slane %v2681, %v2694
        %v2696 = vcombine.low %v2672, %v2688
        %v2697 = vcombine.high %v2672, %v2688
        %v2699 = vunpack.c.l.s4 1934713408
        %v2700 = vunpack.c.0.s8 %v2699
        %v2701 = vlaneseq
        %v2702 = vshrl.u32 %v2701, 7
        %v2703 = vsub.s32 %v2700, %v2702
        %v2704 = vrot.slane %v2696, %v2703
        %v2706 = vunpack.c.l.s4 1934713408
        %v2707 = vunpack.c.0.s8 %v2706
        %v2708 = vlaneseq
        %v2709 = vshrl.u32 %v2708, 7
        %v2710 = vsub.s32 %v2707, %v2709
        %v2711 = vrot.slane %v2697, %v2710
        %v2712 = vcombine.low %v2679, %v2695
        %v2713 = vcombine.high %v2679, %v2695
        %v2715 = vunpack.c.l.s4 1934713408
        %v2716 = vunpack.c.0.s8 %v2715
        %v2717 = vlaneseq
        %v2718 = vshrl.u32 %v2717, 7
        %v2719 = vsub.s32 %v2716, %v2718
        %v2720 = vrot.slane %v2712, %v2719
        %v2722 = vunpack.c.l.s4 1934713408
        %v2723 = vunpack.c.0.s8 %v2722
        %v2724 = vlaneseq
        %v2725 = vshrl.u32 %v2724, 7
        %v2726 = vsub.s32 %v2723, %v2725
        %v2727 = vrot.slane %v2713, %v2726
        %v2728 = vcombine.high %v2704, 0.0
        %v2729 = vcombine.high %v2711, 0.0
        %v2730 = vcombine.high %v2720, 0.0
        %v2731 = vcombine.high %v2727, 0.0
        %v2732 = vcombine.low %v2660, %v2662
        %v2733 = vcombine.high %v2660, %v2662
        %v2735 = vunpack.c.l.s4 1983009808
        %v2736 = vunpack.c.0.s8 %v2735
        %v2737 = vlaneseq
        %v2738 = vshrl.u32 %v2737, 7
        %v2739 = vsub.s32 %v2736, %v2738
        %v2740 = vrot.slane %v2732, %v2739
        %v2742 = vunpack.c.l.s4 1983009808
        %v2743 = vunpack.c.0.s8 %v2742
        %v2744 = vlaneseq
        %v2745 = vshrl.u32 %v2744, 7
        %v2746 = vsub.s32 %v2743, %v2745
        %v2747 = vrot.slane %v2733, %v2746
        %v2748 = vcombine.low %v2661, %v2663
        %v2749 = vcombine.high %v2661, %v2663
        %v2751 = vunpack.c.l.s4 1983009808
        %v2752 = vunpack.c.0.s8 %v2751
        %v2753 = vlaneseq
        %v2754 = vshrl.u32 %v2753, 7
        %v2755 = vsub.s32 %v2752, %v2754
        %v2756 = vrot.slane %v2748, %v2755
        %v2758 = vunpack.c.l.s4 1983009808
        %v2759 = vunpack.c.0.s8 %v2758
        %v2760 = vlaneseq
        %v2761 = vshrl.u32 %v2760, 7
        %v2762 = vsub.s32 %v2759, %v2761
        %v2763 = vrot.slane %v2749, %v2762
        %v2764 = vcombine.low %v2740, %v2756
        %v2765 = vcombine.high %v2740, %v2756
        %v2767 = vunpack.c.l.s4 1934713408
        %v2768 = vunpack.c.0.s8 %v2767
        %v2769 = vlaneseq
        %v2770 = vshrl.u32 %v2769, 7
        %v2771 = vsub.s32 %v2768, %v2770
        %v2772 = vrot.slane %v2764, %v2771
        %v2774 = vunpack.c.l.s4 1934713408
        %v2775 = vunpack.c.0.s8 %v2774
        %v2776 = vlaneseq
        %v2777 = vshrl.u32 %v2776, 7
        %v2778 = vsub.s32 %v2775, %v2777
        %v2779 = vrot.slane %v2765, %v2778
        %v2780 = vcombine.low %v2747, %v2763
        %v2781 = vcombine.high %v2747, %v2763
        %v2783 = vunpack.c.l.s4 1934713408
        %v2784 = vunpack.c.0.s8 %v2783
        %v2785 = vlaneseq
        %v2786 = vshrl.u32 %v2785, 7
        %v2787 = vsub.s32 %v2784, %v2786
        %v2788 = vrot.slane %v2780, %v2787
        %v2790 = vunpack.c.l.s4 1934713408
        %v2791 = vunpack.c.0.s8 %v2790
        %v2792 = vlaneseq
        %v2793 = vshrl.u32 %v2792, 7
        %v2794 = vsub.s32 %v2791, %v2793
        %v2795 = vrot.slane %v2781, %v2794
        %v2796 = vcombine.high %v2772, 0.0
        %v2797 = vcombine.high %v2779, 0.0
        %v2798 = vcombine.high %v2788, 0.0
        %v2799 = vcombine.high %v2795, 0.0
        %v2800 = vcombine.low %v2704, %v2711
        %v2802 = vunpack.c.l.s4 1983009808
        %v2803 = vunpack.c.0.s8 %v2802
        %v2804 = vlaneseq
        %v2805 = vshrl.u32 %v2804, 7
        %v2806 = vsub.s32 %v2803, %v2805
        %v2807 = vrot.slane %v2800, %v2806
        %v2808 = vcombine.low %v2728, %v2729
        %v2810 = vunpack.c.l.s4 1983009808
        %v2811 = vunpack.c.0.s8 %v2810
        %v2812 = vlaneseq
        %v2813 = vshrl.u32 %v2812, 7
        %v2814 = vsub.s32 %v2811, %v2813
        %v2815 = vrot.slane %v2808, %v2814
        %v2816 = vcombine.low %v2720, %v2727
        %v2818 = vunpack.c.l.s4 1983009808
        %v2819 = vunpack.c.0.s8 %v2818
        %v2820 = vlaneseq
        %v2821 = vshrl.u32 %v2820, 7
        %v2822 = vsub.s32 %v2819, %v2821
        %v2823 = vrot.slane %v2816, %v2822
        %v2824 = vcombine.low %v2730, %v2731
        %v2826 = vunpack.c.l.s4 1983009808
        %v2827 = vunpack.c.0.s8 %v2826
        %v2828 = vlaneseq
        %v2829 = vshrl.u32 %v2828, 7
        %v2830 = vsub.s32 %v2827, %v2829
        %v2831 = vrot.slane %v2824, %v2830
        %v2832 = vcombine.low %v2807, %v2815
        %v2833 = vcombine.high %v2807, %v2815
        %v2835 = vunpack.c.l.s4 1934713408
        %v2836 = vunpack.c.0.s8 %v2835
        %v2837 = vlaneseq
        %v2838 = vshrl.u32 %v2837, 7
        %v2839 = vsub.s32 %v2836, %v2838
        %v2840 = vrot.slane %v2832, %v2839
        %v2842 = vunpack.c.l.s4 1934713408
        %v2843 = vunpack.c.0.s8 %v2842
        %v2844 = vlaneseq
        %v2845 = vshrl.u32 %v2844, 7
        %v2846 = vsub.s32 %v2843, %v2845
        %v2847 = vrot.slane %v2833, %v2846
        %v2848 = vcombine.low %v2823, %v2831
        %v2849 = vcombine.high %v2823, %v2831
        %v2851 = vunpack.c.l.s4 1934713408
        %v2852 = vunpack.c.0.s8 %v2851
        %v2853 = vlaneseq
        %v2854 = vshrl.u32 %v2853, 7
        %v2855 = vsub.s32 %v2852, %v2854
        %v2856 = vrot.slane %v2848, %v2855
        %v2858 = vunpack.c.l.s4 1934713408
        %v2859 = vunpack.c.0.s8 %v2858
        %v2860 = vlaneseq
        %v2861 = vshrl.u32 %v2860, 7
        %v2862 = vsub.s32 %v2859, %v2861
        %v2863 = vrot.slane %v2849, %v2862
        %v2864 = vcombine.low %v2840, %v2856
        %v2865 = vcombine.high %v2840, %v2856
        %v2866 = vcombine.low %v2847, %v2863
        %v2867 = vcombine.high %v2847, %v2863
        %v2868 = vcombine.low %v2772, %v2779
        %v2870 = vunpack.c.l.s4 1983009808
        %v2871 = vunpack.c.0.s8 %v2870
        %v2872 = vlaneseq
        %v2873 = vshrl.u32 %v2872, 7
        %v2874 = vsub.s32 %v2871, %v2873
        %v2875 = vrot.slane %v2868, %v2874
        %v2876 = vcombine.low %v2796, %v2797
        %v2878 = vunpack.c.l.s4 1983009808
        %v2879 = vunpack.c.0.s8 %v2878
        %v2880 = vlaneseq
        %v2881 = vshrl.u32 %v2880, 7
        %v2882 = vsub.s32 %v2879, %v2881
        %v2883 = vrot.slane %v2876, %v2882
        %v2884 = vcombine.low %v2788, %v2795
        %v2886 = vunpack.c.l.s4 1983009808
        %v2887 = vunpack.c.0.s8 %v2886
        %v2888 = vlaneseq
        %v2889 = vshrl.u32 %v2888, 7
        %v2890 = vsub.s32 %v2887, %v2889
        %v2891 = vrot.slane %v2884, %v2890
        %v2892 = vcombine.low %v2798, %v2799
        %v2894 = vunpack.c.l.s4 1983009808
        %v2895 = vunpack.c.0.s8 %v2894
        %v2896 = vlaneseq
        %v2897 = vshrl.u32 %v2896, 7
        %v2898 = vsub.s32 %v2895, %v2897
        %v2899 = vrot.slane %v2892, %v2898
        %v2900 = vcombine.low %v2875, %v2883
        %v2901 = vcombine.high %v2875, %v2883
        %v2903 = vunpack.c.l.s4 1934713408
        %v2904 = vunpack.c.0.s8 %v2903
        %v2905 = vlaneseq
        %v2906 = vshrl.u32 %v2905, 7
        %v2907 = vsub.s32 %v2904, %v2906
        %v2908 = vrot.slane %v2900, %v2907
        %v2910 = vunpack.c.l.s4 1934713408
        %v2911 = vunpack.c.0.s8 %v2910
        %v2912 = vlaneseq
        %v2913 = vshrl.u32 %v2912, 7
        %v2914 = vsub.s32 %v2911, %v2913
        %v2915 = vrot.slane %v2901, %v2914
        %v2916 = vcombine.low %v2891, %v2899
        %v2917 = vcombine.high %v2891, %v2899
        %v2919 = vunpack.c.l.s4 1934713408
        %v2920 = vunpack.c.0.s8 %v2919
        %v2921 = vlaneseq
        %v2922 = vshrl.u32 %v2921, 7
        %v2923 = vsub.s32 %v2920, %v2922
        %v2924 = vrot.slane %v2916, %v2923
        %v2926 = vunpack.c.l.s4 1934713408
        %v2927 = vunpack.c.0.s8 %v2926
        %v2928 = vlaneseq
        %v2929 = vshrl.u32 %v2928, 7
        %v2930 = vsub.s32 %v2927, %v2929
        %v2931 = vrot.slane %v2917, %v2930
        %v2932 = vcombine.low %v2908, %v2924
        %v2933 = vcombine.high %v2908, %v2924
        %v2934 = vcombine.low %v2915, %v2931
        %v2935 = vcombine.high %v2915, %v2931
        %2938 = vrot.lane.b32.xlu0 %v2865, 8
        %v2939 = vpop.permute.xlu0 %2938
        %2940 = vrot.lane.b32.xlu0 %v2933, 8
        %v2941 = vpop.permute.xlu0 %2940
        %2946 = vrot.lane.b32.xlu0 %v2866, 16
        %v2947 = vpop.permute.xlu0 %2946
        %2948 = vrot.lane.b32.xlu0 %v2934, 16
        %v2949 = vpop.permute.xlu0 %2948
        %2954 = vrot.lane.b32.xlu0 %v2867, 24
        %v2955 = vpop.permute.xlu0 %2954
        %2956 = vrot.lane.b32.xlu0 %v2935, 24
        %v2957 = vpop.permute.xlu0 %2956
        %v2960 = vsel %vm1830, %v2864, %v2939
        %v2961 = vsel %vm1830, %v2932, %v2941
        %vm2962 = vcmask 130048
        %v2963 = vsel %vm2962, %v2960, %v2947
        %v2964 = vsel %vm2962, %v2961, %v2949
        %vm2965 = vcmask 195584
        %v2966 = vsel %vm2965, %v2963, %v2955
        %v2967 = vsel %vm2965, %v2964, %v2957
        %v2968 = vld [vmem:[%s599] sm:$0xf]
        %v2969 = vld [vmem:[%s599 + $0x4] sm:$0xf]
        %v2970 = vld [vmem:[%s599 + $0x8] sm:$0xf]
        %v2971 = vld [vmem:[%s599 + $0xc] sm:$0xf]
        %v2972 = vpack.c.bf16 %v2967, %v2966
        %v2973 = vlaneseq
        %v2974 = vshrl.u32 %v2973, 7
        %v2975 = vsub.s32 0, %v2974
        %v2976 = vrot.slane %v748, %v2975
        %v2981 = vunpack.c.l.b16 %v2968
        %v2982 = vunpack.c.l.b16 %v2969
        %v2983 = vunpack.c.l.b16 %v2970
        %v2984 = vunpack.c.l.b16 %v2971
        %v2985 = vpack.c.b16 %v2982, %v2981
        %v2986 = vpack.c.b16 %v2984, %v2983
        %v2990 = vsel %vm773, %v2972, 0
        %2992 = vmatprep.subr.bf16.mxu0 0
        %2993 = vmatpush1.bf16.msra.mxu0 0
        %2994 = vmatprep.subr.bf16.mxu0 0
        %2995 = vmatpush1.bf16.msra.mxu0 0
        %2996 = vmatprep.subr.bf16.mxu0 0
        %2997 = vmatpush1.bf16.msra.mxu0 0
        %2998 = vmatprep.subr.bf16.mxu0 0
        %2999 = vmatpush1.bf16.msra.mxu0 0
        %3000 = vmatprep.subr.bf16.mxu0 0
        %3001 = vmatpush1.bf16.msra.mxu0 0
        %3002 = vmatprep.subr.bf16.mxu0 0
        %3003 = vmatpush1.bf16.msra.mxu0 0
        %3004 = vmatprep.subr.bf16.mxu0 0
        %3005 = vmatpush1.bf16.msra.mxu0 %v2986
        %3006 = vmatprep.subr.bf16.mxu0 0
        %3007 = vmatpush1.bf16.msra.mxu0 %v2985
        %3008 = vmatprep.subr.bf16.mxu0 0
        %3009 = vmatpush2.bf16.msra.mxu0 0
        %3010 = vmatprep.subr.bf16.mxu0 0
        %3011 = vmatpush2.bf16.msra.mxu0 0
        %3012 = vmatprep.subr.bf16.mxu0 0
        %3013 = vmatpush2.bf16.msra.mxu0 0
        %3014 = vmatprep.subr.bf16.mxu0 0
        %3015 = vmatpush2.bf16.msra.mxu0 0
        %3016 = vmatprep.subr.bf16.mxu0 0
        %3017 = vmatpush2.bf16.msra.mxu0 0
        %3018 = vmatprep.subr.bf16.mxu0 0
        %3019 = vmatpush2.bf16.msra.mxu0 0
        %3020 = vmatprep.subr.bf16.mxu0 0
        %3021 = vmatpush2.bf16.msra.mxu0 0
        %3022 = vmatprep.subr.bf16.mxu0 0
        %3023 = vmatpush2.bf16.msra.mxu0 0
        %3024 = vmatprep.mubr.bf16.mxu0 0
        %3025 = vmatmul.mubr.bf16.gmra.mxu0 %v2990
        %v3026 = vpop.f32.mrf.mxu0
        %v3027 = vadd.f32 %v2976, %v3026
        %v3028 = vpop.f32.mrf.mxu0
        %v3029 = vpop.f32.mrf.mxu0
        %v3030 = vadd.f32 %v2976, %v3029
        %v3031 = vpop.f32.mrf.mxu0
        %3032 = vdwg.mxu0
        %v3033 = vadd.f32 %v746, %v3027
        %v3034 = vadd.f32 %v747, %v3030
        %v3035 = vlaneseq
        %v3036 = vshrl.u32 %v3035, 7
        %v3037 = vsub.s32 2, %v3036
        %v3038 = vrot.slane %v748, %v3037
        %v3039 = vmul.f32 %v3033, %v3038
        %v3040 = vmul.f32 %v3034, %v3038
        %v3041 = vlaneseq
        %v3042 = vshrl.u32 %v3041, 7
        %v3043 = vsub.s32 3, %v3042
        %v3044 = vrot.slane %v748, %v3043
        %v3045 = vadd.f32 %v3039, %v3044
        %v3046 = vadd.f32 %v3040, %v3044
        %v3047 = vld [vmem:[%s604] sm:$0xf]
        %v3048 = vld [vmem:[%s604 + $0x4] sm:$0xf]
        %v3049 = vld [vmem:[%s604 + $0x8] sm:$0xf]
        %v3050 = vld [vmem:[%s604 + $0xc] sm:$0xf]
        %v3051 = vpack.c.bf16 %v3046, %v3045
        %v3052 = vld [vmem:[%s607] sm:$0x1]
        %v3054 = vlaneseq
        %v3055 = vshrl.u32 %v3054, 7
        %v3056 = vsub.s32 0, %v3055
        %v3057 = vrot.slane %v3052, %v3056
        %v3063 = vunpack.c.l.b16 %v3047
        %v3064 = vunpack.c.l.b16 %v3048
        %v3065 = vunpack.c.l.b16 %v3049
        %v3066 = vunpack.c.l.b16 %v3050
        %v3067 = vpack.c.b16 %v3064, %v3063
        %v3068 = vpack.c.b16 %v3066, %v3065
        %v3072 = vsel %vm773, %v3051, 0
        %3074 = vmatprep.subr.bf16.mxu0 0
        %3075 = vmatpush1.bf16.msra.mxu0 0
        %3076 = vmatprep.subr.bf16.mxu0 0
        %3077 = vmatpush1.bf16.msra.mxu0 0
        %3078 = vmatprep.subr.bf16.mxu0 0
        %3079 = vmatpush1.bf16.msra.mxu0 0
        %3080 = vmatprep.subr.bf16.mxu0 0
        %3081 = vmatpush1.bf16.msra.mxu0 0
        %3082 = vmatprep.subr.bf16.mxu0 0
        %3083 = vmatpush1.bf16.msra.mxu0 0
        %3084 = vmatprep.subr.bf16.mxu0 0
        %3085 = vmatpush1.bf16.msra.mxu0 0
        %3086 = vmatprep.subr.bf16.mxu0 0
        %3087 = vmatpush1.bf16.msra.mxu0 %v3068
        %3088 = vmatprep.subr.bf16.mxu0 0
        %3089 = vmatpush1.bf16.msra.mxu0 %v3067
        %3090 = vmatprep.subr.bf16.mxu0 0
        %3091 = vmatpush2.bf16.msra.mxu0 0
        %3092 = vmatprep.subr.bf16.mxu0 0
        %3093 = vmatpush2.bf16.msra.mxu0 0
        %3094 = vmatprep.subr.bf16.mxu0 0
        %3095 = vmatpush2.bf16.msra.mxu0 0
        %3096 = vmatprep.subr.bf16.mxu0 0
        %3097 = vmatpush2.bf16.msra.mxu0 0
        %3098 = vmatprep.subr.bf16.mxu0 0
        %3099 = vmatpush2.bf16.msra.mxu0 0
        %3100 = vmatprep.subr.bf16.mxu0 0
        %3101 = vmatpush2.bf16.msra.mxu0 0
        %3102 = vmatprep.subr.bf16.mxu0 0
        %3103 = vmatpush2.bf16.msra.mxu0 0
        %3104 = vmatprep.subr.bf16.mxu0 0
        %3105 = vmatpush2.bf16.msra.mxu0 0
        %3106 = vmatprep.mubr.bf16.mxu0 0
        %3107 = vmatmul.mubr.bf16.gmra.mxu0 %v3072
        %v3108 = vpop.f32.mrf.mxu0
        %v3109 = vadd.f32 %v3057, %v3108
        %v3110 = vpop.f32.mrf.mxu0
        %v3111 = vpop.f32.mrf.mxu0
        %v3112 = vadd.f32 %v3057, %v3111
        %v3113 = vpop.f32.mrf.mxu0
        %3114 = vdwg.mxu0
        %v3115 = vmul.f32 %v3109, 0.5
        %v3116 = vmul.f32 %v3112, 0.5
        %v3117 = vmul.f32 %v3109, 0.70710677
        %v3118 = vmul.f32 %v3112, 0.70710677
        %vm3119 = vcmp.ge.f32.partialorder %v3117, 0.0
        %vm3120 = vcmp.ge.f32.partialorder %v3118, 0.0
        %v3121 = vsel %vm3119, 1.0, -1.0
        %v3122 = vsel %vm3120, 1.0, -1.0
        %v3123 = vand.u32 2147483647, %v3117
        %v3124 = vand.u32 2147483647, %v3118
        %v3125 = vmul.f32 %v3123, 0.3275911
        %v3126 = vmul.f32 %v3124, 0.3275911
        %v3127 = vadd.f32 %v3125, 1.0
        %v3128 = vadd.f32 %v3126, 1.0
        %v3129 = vrcp.pop %v3127
        %v3130 = vmul.f32 1.0, %v3129
        %v3131 = vrcp.pop %v3128
        %v3132 = vmul.f32 1.0, %v3131
        %v3133 = vmul.f32 %v3130, 1.0614054
        %v3134 = vmul.f32 %v3132, 1.0614054
        %v3135 = vadd.f32 %v3133, -1.4531521
        %v3136 = vadd.f32 %v3134, -1.4531521
        %v3137 = vmul.f32 %v3135, %v3130
        %v3138 = vmul.f32 %v3136, %v3132
        %v3139 = vadd.f32 %v3137, 1.4214138
        %v3140 = vadd.f32 %v3138, 1.4214138
        %v3141 = vmul.f32 %v3139, %v3130
        %v3142 = vmul.f32 %v3140, %v3132
        %v3143 = vadd.f32 %v3141, -0.28449672
        %v3144 = vadd.f32 %v3142, -0.28449672
        %v3145 = vmul.f32 %v3143, %v3130
        %v3146 = vmul.f32 %v3144, %v3132
        %v3147 = vadd.f32 %v3145, 0.2548296
        %v3148 = vadd.f32 %v3146, 0.2548296
        %v3149 = vmul.f32 %v3147, %v3130
        %v3150 = vmul.f32 %v3148, %v3132
        %v3151 = vsub.f32 0.0, %v3123
        %v3152 = vsub.f32 0.0, %v3124
        %v3153 = vmul.f32 %v3151, %v3123
        %v3154 = vmul.f32 %v3152, %v3124
        %v3155 = vmul.f32 %v3153, 1.442695
        %v3156 = vpow.pop %v3155
        %v3157 = vmul.f32 %v3154, 1.442695
        %v3158 = vpow.pop %v3157
        %v3159 = vmul.f32 %v3149, %v3156
        %v3160 = vmul.f32 %v3150, %v3158
        %v3161 = vsub.f32 1.0, %v3159
        %v3162 = vsub.f32 1.0, %v3160
        %v3163 = vmul.f32 %v3121, %v3161
        %v3164 = vmul.f32 %v3122, %v3162
        %v3165 = vadd.f32 %v3163, 1.0
        %v3166 = vadd.f32 %v3164, 1.0
        %v3167 = vmul.f32 %v3115, %v3165
        %v3168 = vmul.f32 %v3116, %v3166
        %v3169 = vld [vmem:[%s612] sm:$0xf]
        %v3170 = vld [vmem:[%s612 + $0x4] sm:$0xf]
        %v3171 = vld [vmem:[%s612 + $0x8] sm:$0xf]
        %v3172 = vld [vmem:[%s612 + $0xc] sm:$0xf]
        %v3173 = vld [vmem:[%s612 + $0x10] sm:$0xf]
        %v3174 = vld [vmem:[%s612 + $0x14] sm:$0xf]
        %v3175 = vld [vmem:[%s612 + $0x18] sm:$0xf]
        %v3176 = vld [vmem:[%s612 + $0x1c] sm:$0xf]
        %v3177 = vpack.c.bf16 %v3168, %v3167
        %v3178 = vlaneseq
        %v3179 = vshrl.u32 %v3178, 7
        %v3180 = vsub.s32 1, %v3179
        %v3181 = vrot.slane %v748, %v3180
        %v3190 = vunpack.c.l.b16 %v3169
        %v3191 = vunpack.c.l.b16 %v3170
        %v3192 = vunpack.c.l.b16 %v3171
        %v3193 = vunpack.c.l.b16 %v3172
        %v3194 = vunpack.c.l.b16 %v3173
        %v3195 = vunpack.c.l.b16 %v3174
        %v3196 = vunpack.c.l.b16 %v3175
        %v3197 = vunpack.c.l.b16 %v3176
        %v3198 = vpack.c.b16 %v3191, %v3190
        %v3199 = vpack.c.b16 %v3193, %v3192
        %v3200 = vpack.c.b16 %v3195, %v3194
        %v3201 = vpack.c.b16 %v3197, %v3196
        %vm3206 = vcmask 523264
        %v3208 = vsel %vm3206, %v3177, 0
        %3210 = vmatprep.subr.bf16.mxu0 0
        %3211 = vmatpush1.bf16.msra.mxu0 0
        %3212 = vmatprep.subr.bf16.mxu0 0
        %3213 = vmatpush1.bf16.msra.mxu0 0
        %3214 = vmatprep.subr.bf16.mxu0 0
        %3215 = vmatpush1.bf16.msra.mxu0 0
        %3216 = vmatprep.subr.bf16.mxu0 0
        %3217 = vmatpush1.bf16.msra.mxu0 0
        %3218 = vmatprep.subr.bf16.mxu0 0
        %3219 = vmatpush1.bf16.msra.mxu0 %v3201
        %3220 = vmatprep.subr.bf16.mxu0 0
        %3221 = vmatpush1.bf16.msra.mxu0 %v3200
        %3222 = vmatprep.subr.bf16.mxu0 0
        %3223 = vmatpush1.bf16.msra.mxu0 %v3199
        %3224 = vmatprep.subr.bf16.mxu0 0
        %3225 = vmatpush1.bf16.msra.mxu0 %v3198
        %3226 = vmatprep.subr.bf16.mxu0 0
        %3227 = vmatpush2.bf16.msra.mxu0 0
        %3228 = vmatprep.subr.bf16.mxu0 0
        %3229 = vmatpush2.bf16.msra.mxu0 0
        %3230 = vmatprep.subr.bf16.mxu0 0
        %3231 = vmatpush2.bf16.msra.mxu0 0
        %3232 = vmatprep.subr.bf16.mxu0 0
        %3233 = vmatpush2.bf16.msra.mxu0 0
        %3234 = vmatprep.subr.bf16.mxu0 0
        %3235 = vmatpush2.bf16.msra.mxu0 0
        %3236 = vmatprep.subr.bf16.mxu0 0
        %3237 = vmatpush2.bf16.msra.mxu0 0
        %3238 = vmatprep.subr.bf16.mxu0 0
        %3239 = vmatpush2.bf16.msra.mxu0 0
        %3240 = vmatprep.subr.bf16.mxu0 0
        %3241 = vmatpush2.bf16.msra.mxu0 0
        %3242 = vmatprep.mubr.bf16.mxu0 0
        %3243 = vmatmul.mubr.bf16.gmra.mxu0 %v3208
        %v3244 = vpop.f32.mrf.mxu0
        %v3245 = vadd.f32 %v3181, %v3244
        %v3246 = vpop.f32.mrf.mxu0
        %v3247 = vpop.f32.mrf.mxu0
        %v3248 = vadd.f32 %v3181, %v3247
        %v3249 = vpop.f32.mrf.mxu0
        %3250 = vdwg.mxu0
        %v3251 = vadd.f32 %v3045, %v3245
        %v3252 = vadd.f32 %v3046, %v3248
        %v3253 = vlaneseq
        %v3254 = vshrl.u32 %v3253, 7
        %v3255 = vsub.s32 4, %v3254
        %v3256 = vrot.slane %v748, %v3255
        %v3257 = vmul.f32 %v3251, %v3256
        %v3258 = vmul.f32 %v3252, %v3256
        %v3259 = vlaneseq
        %v3260 = vshrl.u32 %v3259, 7
        %v3261 = vsub.s32 5, %v3260
        %v3262 = vrot.slane %v748, %v3261
        %v3263 = vadd.f32 %v3257, %v3262
        %v3264 = vadd.f32 %v3258, %v3262
        %3265 = vst.msk [vmem:[#allocation2] sm:$0xff] %vm773, %v3263
        %3266 = vst.msk [vmem:[#allocation2 + $0x8] sm:$0xff] %vm773, %v3264
        %p3267 = scmp.eq.s32.totalorder %s31, 1
        // Predicated region
        $region81: #{tpu_custom_call.1} parent=75 // pred_check
          %p3268 = pneg %p3267
        $region82: #{tpu_custom_call.1} parent=75 // pred_check_branch
          %3270 = sbr.rel (%p3268) target = $region84
        $region83: #{tpu_custom_call.1} parent=75 // pred_region
          %v3271 = vmul.f32 %v3263, 0.5
          %v3272 = vmul.f32 %v3264, 0.5
          %v3273 = vmul.f32 %v3263, 0.70710677
          %v3274 = vmul.f32 %v3264, 0.70710677
          %vm3275 = vcmp.ge.f32.partialorder %v3273, 0.0
          %vm3276 = vcmp.ge.f32.partialorder %v3274, 0.0
          %v3277 = vsel %vm3275, 1.0, -1.0
          %v3278 = vsel %vm3276, 1.0, -1.0
          %v3279 = vand.u32 2147483647, %v3273
          %v3280 = vand.u32 2147483647, %v3274
          %v3281 = vmul.f32 %v3279, 0.3275911
          %v3282 = vmul.f32 %v3280, 0.3275911
          %v3283 = vadd.f32 %v3281, 1.0
          %v3284 = vadd.f32 %v3282, 1.0
          %v3285 = vrcp.pop %v3283
          %v3286 = vmul.f32 1.0, %v3285
          %v3287 = vrcp.pop %v3284
          %v3288 = vmul.f32 1.0, %v3287
          %v3289 = vmul.f32 %v3286, 1.0614054
          %v3290 = vmul.f32 %v3288, 1.0614054
          %v3291 = vadd.f32 %v3289, -1.4531521
          %v3292 = vadd.f32 %v3290, -1.4531521
          %v3293 = vmul.f32 %v3291, %v3286
          %v3294 = vmul.f32 %v3292, %v3288
          %v3295 = vadd.f32 %v3293, 1.4214138
          %v3296 = vadd.f32 %v3294, 1.4214138
          %v3297 = vmul.f32 %v3295, %v3286
          %v3298 = vmul.f32 %v3296, %v3288
          %v3299 = vadd.f32 %v3297, -0.28449672
          %v3300 = vadd.f32 %v3298, -0.28449672
          %v3301 = vmul.f32 %v3299, %v3286
          %v3302 = vmul.f32 %v3300, %v3288
          %v3303 = vadd.f32 %v3301, 0.2548296
          %v3304 = vadd.f32 %v3302, 0.2548296
          %v3305 = vmul.f32 %v3303, %v3286
          %v3306 = vmul.f32 %v3304, %v3288
          %v3307 = vsub.f32 0.0, %v3279
          %v3308 = vsub.f32 0.0, %v3280
          %v3309 = vmul.f32 %v3307, %v3279
          %v3310 = vmul.f32 %v3308, %v3280
          %v3311 = vmul.f32 %v3309, 1.442695
          %v3312 = vpow.pop %v3311
          %v3313 = vmul.f32 %v3310, 1.442695
          %v3314 = vpow.pop %v3313
          %v3315 = vmul.f32 %v3305, %v3312
          %v3316 = vmul.f32 %v3306, %v3314
          %v3317 = vsub.f32 1.0, %v3315
          %v3318 = vsub.f32 1.0, %v3316
          %v3319 = vmul.f32 %v3277, %v3317
          %v3320 = vmul.f32 %v3278, %v3318
          %v3321 = vadd.f32 %v3319, 1.0
          %v3322 = vadd.f32 %v3320, 1.0
          %v3323 = vmul.f32 %v3271, %v3321
          %v3324 = vmul.f32 %v3272, %v3322
          %v3325 = vld [vmem:[%s12] sm:$0xf]
          %v3326 = vld [vmem:[%s12 + $0x4] sm:$0xf]
          %v3327 = vld [vmem:[%s12 + $0x8] sm:$0xf]
          %v3328 = vld [vmem:[%s12 + $0xc] sm:$0xf]
          %v3329 = vpack.c.bf16 %v3324, %v3323
          %v3330 = vld [vmem:[%s13] sm:$0x1]
          %v3332 = vlaneseq
          %v3333 = vshrl.u32 %v3332, 7
          %v3334 = vsub.s32 0, %v3333
          %v3335 = vrot.slane %v3330, %v3334
          %v3341 = vunpack.c.l.b16 %v3325
          %v3342 = vunpack.c.l.b16 %v3326
          %v3343 = vunpack.c.l.b16 %v3327
          %v3344 = vunpack.c.l.b16 %v3328
          %v3345 = vpack.c.b16 %v3342, %v3341
          %v3346 = vpack.c.b16 %v3344, %v3343
          %v3350 = vsel %vm773, %v3329, 0
          %3352 = vmatprep.subr.bf16.mxu0 0
          %3353 = vmatpush1.bf16.msra.mxu0 0
          %3354 = vmatprep.subr.bf16.mxu0 0
          %3355 = vmatpush1.bf16.msra.mxu0 0
          %3356 = vmatprep.subr.bf16.mxu0 0
          %3357 = vmatpush1.bf16.msra.mxu0 0
          %3358 = vmatprep.subr.bf16.mxu0 0
          %3359 = vmatpush1.bf16.msra.mxu0 0
          %3360 = vmatprep.subr.bf16.mxu0 0
          %3361 = vmatpush1.bf16.msra.mxu0 0
          %3362 = vmatprep.subr.bf16.mxu0 0
          %3363 = vmatpush1.bf16.msra.mxu0 0
          %3364 = vmatprep.subr.bf16.mxu0 0
          %3365 = vmatpush1.bf16.msra.mxu0 %v3346
          %3366 = vmatprep.subr.bf16.mxu0 0
          %3367 = vmatpush1.bf16.msra.mxu0 %v3345
          %3368 = vmatprep.subr.bf16.mxu0 0
          %3369 = vmatpush2.bf16.msra.mxu0 0
          %3370 = vmatprep.subr.bf16.mxu0 0
          %3371 = vmatpush2.bf16.msra.mxu0 0
          %3372 = vmatprep.subr.bf16.mxu0 0
          %3373 = vmatpush2.bf16.msra.mxu0 0
          %3374 = vmatprep.subr.bf16.mxu0 0
          %3375 = vmatpush2.bf16.msra.mxu0 0
          %3376 = vmatprep.subr.bf16.mxu0 0
          %3377 = vmatpush2.bf16.msra.mxu0 0
          %3378 = vmatprep.subr.bf16.mxu0 0
          %3379 = vmatpush2.bf16.msra.mxu0 0
          %3380 = vmatprep.subr.bf16.mxu0 0
          %3381 = vmatpush2.bf16.msra.mxu0 0
          %3382 = vmatprep.subr.bf16.mxu0 0
          %3383 = vmatpush2.bf16.msra.mxu0 0
          %3384 = vmatprep.mubr.bf16.mxu0 0
          %3385 = vmatmul.mubr.bf16.gmra.mxu0 %v3350
          %v3386 = vpop.f32.mrf.mxu0
          %v3387 = vadd.f32 %v3335, %v3386
          %v3388 = vpop.f32.mrf.mxu0
          %v3389 = vpop.f32.mrf.mxu0
          %v3390 = vadd.f32 %v3335, %v3389
          %v3391 = vpop.f32.mrf.mxu0
          %3392 = vdwg.mxu0
          %3393 = vst [vmem:[#allocation3] sm:$0xff] %v3387
          %3394 = vst [vmem:[#allocation3 + $0x8] sm:$0xff] %v3390
        $region84: #{tpu_custom_call.1} parent=75 // pred_fallthru
          _
        // Predicated region
        $region85: #{tpu_custom_call.1} parent=75 // pred_check
          %p3395 = pneg %p395
        $region86: #{tpu_custom_call.1} parent=75 // pred_check_branch
          %3397 = sbr.rel (%p3395) target = $region88
        $region87: #{tpu_custom_call.1} parent=75 // pred_region
          %s3398 = smul.u32 2, %s30
          %s3400 = ssub.s32 256, 256
          %3401 = vsyncadd [#allocation4], %s3400
          %s3402 = smul.addr %s3398, 128
          %s3403 = scalar_lea.hbm %s14, %s3402
          %s3404 = sshll.u32 [#allocation3], 4
          %s3405 = int_to_ptr.vmem [resolvable:$true] %s3404
          %3410 = dma.vmem_to_hbm [thread:$0]  %s3405, 256, %s3403, [#allocation4], 128, 128, 8
        $region88: #{tpu_custom_call.1} parent=75 // pred_fallthru
          _
        // Predicated region
        $region89: #{tpu_custom_call.1} parent=75 // pred_check
          %p3411 = pneg %p395
        $region90: #{tpu_custom_call.1} parent=75 // pred_check_branch
          %3413 = sbr.rel (%p3411) target = $region92
        $region91: #{tpu_custom_call.1} parent=75 // pred_region
          %3414 = dma.done [#allocation4], 256
        $region92: #{tpu_custom_call.1} parent=75 // pred_fallthru
          _
      $region76: #{tpu_custom_call.1} parent=5 // pred_fallthru
        _
      %p3415 = scmp.le.s32.totalorder 2, %s21
      // Predicated region
      $region93: #{tpu_custom_call.1} parent=5 // pred_check
        %p3416 = pneg %p3415
      $region94: #{tpu_custom_call.1} parent=5 // pred_check_branch
        %3418 = sbr.rel (%p3416) target = $region96
      $region95: #{tpu_custom_call.1} parent=5 // pred_region
        %s3419 = ssub.s32 %s21, 2
      $region96: #{tpu_custom_call.1} parent=5 // pred_fallthru
        _
    $region6: #{tpu_custom_call.1} parent=1 // loop_footer
      %s25 = sadd.s32 1, %s21
    $region7: #{tpu_custom_call.1} parent=1 // loop_footer_branch
      %20 = sbr.rel target = $region3
    $region8: #{tpu_custom_call.1} parent=1 // loop_exit
      _
    %3420 = vsyncpa [#allocation4], 1
    %s3421 = scalar_lea.sflag [#allocation4], 1
    %3422 = vsyncpa %s3421, 1

</llo_original>
